<compile_context>
chip_gen: v5e
topology: v5e:2x2
jax: 0.10.0
libtpu: 0.0.40
codegen_flags: <defaults>
</compile_context>

<pallas_src>
import math
import functools

import jax
import jax.numpy as jnp
from jax import lax
from jax.experimental import pallas as pl
from jax.experimental.pallas import tpu as pltpu


NEG_INF = -1e30  # additive mask value (exp underflows to exactly 0 after max-subtraction)


# ----------------------------- Pallas kernels -------------------------------

def decoder_stack_kernel(x_ref,
                         wqkv_ref, bqkv_ref, wo_ref, bo_ref,
                         ln1_g_ref, ln1_b_ref,
                         w1_ref, b1_ref, w2_ref, b2_ref,
                         ln2_g_ref, ln2_b_ref,
                         o_ref,
                         mask_ref,
                         *, n_heads):
    """One grid step = (one sequence, one layer).  Grid = (B, num_layers)."""
    layer = pl.program_id(1)

    @pl.when(layer == 0)
    def _():
        # Initialize the VMEM-resident carry and build the causal mask once per sequence.
        o_ref[...] = x_ref[...]
        L = o_ref.shape[0]
        row = lax.broadcasted_iota(jnp.int32, (L, L), 0)
        col = lax.broadcasted_iota(jnp.int32, (L, L), 1)
        mask_ref[...] = jnp.where(col <= row, 0.0, NEG_INF).astype(jnp.float32)

    xb = o_ref[...]                                   # (L, D) bf16 carry
    x = xb.astype(jnp.float32)
    L, D = x.shape
    H = n_heads
    hd = D // H
    scale = 1.0 / math.sqrt(hd)

    # ---- fused QKV: a single lane-dense (L, D) @ (D, 3D) MXU matmul ----
    qkv = jnp.dot(xb, wqkv_ref[0], preferred_element_type=jnp.float32) + bqkv_ref[0]
    q = (qkv[:, :D] * scale).astype(jnp.bfloat16)     # 128-aligned lane slices
    k = qkv[:, D:2 * D].astype(jnp.bfloat16)
    v = qkv[:, 2 * D:].astype(jnp.bfloat16)

    mask = mask_ref[...]                              # (L, L) additive causal mask
    wo = wo_ref[0]                                    # (D, D) bf16
    trans_rhs = (((1,), (1,)), ((), ()))              # q @ k^T without materializing k^T

    # ---- per-head causal attention: all 2D MXU matmuls, no stack / concatenate ----
    attn = jnp.zeros((L, D), jnp.float32)
    for h in range(H):                                # small static head loop (unrolled)
        lo = h * hd
        qh = q[:, lo:lo + hd]
        kh = k[:, lo:lo + hd]
        vh = v[:, lo:lo + hd]
        s = lax.dot_general(qh, kh, trans_rhs, preferred_element_type=jnp.float32)
        s = s + mask
        m = jnp.max(s, axis=-1, keepdims=True)
        p = jnp.exp(s - m)
        p = p * pl.reciprocal(jnp.sum(p, axis=-1, keepdims=True), approx=True)  # EUP
        ctx = jnp.dot(p.astype(jnp.bfloat16), vh, preferred_element_type=jnp.float32)
        # per-head slice of Wo then sum over heads == concat(heads) @ Wo
        attn = attn + jnp.dot(ctx.astype(jnp.bfloat16), wo[lo:lo + hd, :],
                              preferred_element_type=jnp.float32)
    attn = attn + bo_ref[0]

    # ---- residual + LayerNorm 1 (f32 statistics) ----
    h1 = x + attn
    mu1 = jnp.mean(h1, axis=-1, keepdims=True)
    var1 = jnp.mean((h1 - mu1) ** 2, axis=-1, keepdims=True)
    h1 = (h1 - mu1) * lax.rsqrt(var1 + 1e-5) * ln1_g_ref[0] + ln1_b_ref[0]

    # ---- feed-forward (ReLU), bf16 MXU matmuls with f32 accumulation ----
    f = jnp.dot(h1.astype(jnp.bfloat16), w1_ref[0],
                preferred_element_type=jnp.float32) + b1_ref[0]
    f = jnp.maximum(f, 0.0)
    f = jnp.dot(f.astype(jnp.bfloat16), w2_ref[0],
                preferred_element_type=jnp.float32) + b2_ref[0]

    # ---- residual + LayerNorm 2 ----
    h2 = h1 + f
    mu2 = jnp.mean(h2, axis=-1, keepdims=True)
    var2 = jnp.mean((h2 - mu2) ** 2, axis=-1, keepdims=True)
    out = (h2 - mu2) * lax.rsqrt(var2 + 1e-5) * ln2_g_ref[0] + ln2_b_ref[0]

    o_ref[...] = out.astype(o_ref.dtype)              # carry to next layer (stays in VMEM)


def lm_head_kernel(x_ref, w_ref, b_ref, o_ref, acc_ref):
    """Tiled LM head: (M, D) @ (D, nvoc) + bias with K-axis accumulation."""
    @pl.when(pl.program_id(2) == 0)
    def _():
        acc_ref[...] = jnp.zeros_like(acc_ref)

    acc_ref[...] += jnp.dot(x_ref[...], w_ref[...], preferred_element_type=jnp.float32)

    @pl.when(pl.program_id(2) == pl.num_programs(2) - 1)
    def _():
        o_ref[...] = acc_ref[...] + b_ref[...]


# ------------------------------- host wrappers -------------------------------

def run_decoder_stack(src2d, p, *, n_heads, seq_len):
    BL, D = src2d.shape
    L = seq_len
    B = BL // L
    NL = p["wqkv"].shape[0]
    F = p["w1"].shape[2]

    def wmap(shape):
        nd = len(shape)
        return pl.BlockSpec((1,) + tuple(shape), lambda b, l, _nd=nd: (l,) + (0,) * _nd)

    in_specs = [
        pl.BlockSpec((L, D), lambda b, l: (b, 0)),     # activation: one sequence / grid step
        wmap((D, 3 * D)), wmap((1, 3 * D)),            # fused QKV weight / bias
        wmap((D, D)), wmap((1, D)),                    # Wo, bo
        wmap((1, D)), wmap((1, D)),                    # ln1 gamma / beta
        wmap((D, F)), wmap((1, F)),                    # W1, b1
        wmap((F, D)), wmap((1, D)),                    # W2, b2
        wmap((1, D)), wmap((1, D)),                    # ln2 gamma / beta
    ]

    # VMEM budget: double-buffered per-layer weights + activation blocks + f32 temporaries.
    w_layer = (D * 3 * D + D * D + D * F + F * D) * 2          # bf16 matmul weights / layer
    w_layer += (3 * D + D + F + 5 * D) * 4                     # f32 biases + LN params / layer
    act_blk = L * D * 2                                        # bf16 activation block
    interm = L * max(3 * D, F) * 4 * 6                         # headroom for f32 temporaries
    vmem_limit = 2 * w_layer + 4 * act_blk + interm + L * L * 4
    vmem_limit = int(min(max(vmem_limit, 16 * 1024 * 1024), 96 * 1024 * 1024))

    return pl.pallas_call(
        functools.partial(decoder_stack_kernel, n_heads=n_heads),
        out_shape=jax.ShapeDtypeStruct((BL, D), jnp.bfloat16),
        grid=(B, NL),
        in_specs=in_specs,
        out_specs=pl.BlockSpec((L, D), lambda b, l: (b, 0)),   # constant in l -> resident carry
        scratch_shapes=[pltpu.VMEM((L, L), jnp.float32)],      # additive causal mask
        compiler_params=pltpu.CompilerParams(
            dimension_semantics=("parallel", "arbitrary"),
            vmem_limit_bytes=vmem_limit),
    )(src2d,
      p["wqkv"], p["bqkv"], p["wo"], p["bo"],
      p["ln1_g"], p["ln1_b"], p["w1"], p["b1"], p["w2"], p["b2"],
      p["ln2_g"], p["ln2_b"])


def run_lm_head(x2d, w_t, b2d, *, tm=256, tn=512, tk=512):
    M, D = x2d.shape
    nvoc = w_t.shape[1]
    tm, tn, tk = min(tm, M), min(tn, nvoc), min(tk, D)
    assert M % tm == 0 and nvoc % tn == 0 and D % tk == 0

    vmem_limit = 2 * ((tm * tk + tk * tn) * 2 + tm * tn * 4) + tm * tn * 4 + 2 * tn * 4
    vmem_limit = int(min(max(vmem_limit * 2, 16 * 1024 * 1024), 96 * 1024 * 1024))

    return pl.pallas_call(
        lm_head_kernel,
        out_shape=jax.ShapeDtypeStruct((M, nvoc), jnp.float32),
        grid=(M // tm, nvoc // tn, D // tk),
        in_specs=[
            pl.BlockSpec((tm, tk), lambda i, j, k: (i, k)),
            pl.BlockSpec((tk, tn), lambda i, j, k: (k, j)),
            pl.BlockSpec((1, tn), lambda i, j, k: (0, j)),
        ],
        out_specs=pl.BlockSpec((tm, tn), lambda i, j, k: (i, j)),
        scratch_shapes=[pltpu.VMEM((tm, tn), jnp.float32)],
        compiler_params=pltpu.CompilerParams(
            dimension_semantics=("parallel", "parallel", "arbitrary"),
            vmem_limit_bytes=vmem_limit),
    )(x2d, w_t, b2d)


def positional_encoding(L, D):
    pos = jnp.arange(L, dtype=jnp.float32)[:, None]
    div = jnp.exp(jnp.arange(0, D, 2, dtype=jnp.float32) * (-math.log(10000.0) / D))
    pe = jnp.zeros((L, D), jnp.float32)
    pe = pe.at[:, 0::2].set(jnp.sin(pos * div))
    pe = pe.at[:, 1::2].set(jnp.cos(pos * div))
    return pe


@functools.partial(jax.jit, static_argnames=("n_heads",))
def lm_model_transformer_forward(tokens, params, *, n_heads):
    B, L = tokens.shape
    nvoc, D = params["embed"].shape

    # Embedding gather + dropout(identity) + PE + sqrt(D) scale (spec order: PE before scale).
    emb = params["embed"][tokens]                                   # (B, L, D) f32
    src = (emb + positional_encoding(L, D)[None]) * math.sqrt(D)
    src2d = src.reshape(B * L, D).astype(jnp.bfloat16)

    out2d = run_decoder_stack(src2d, params, n_heads=n_heads, seq_len=L)

    # final dropout -> identity (eval); LM head consumes the bf16 carry directly
    logits = run_lm_head(out2d, params["dec_w_t"], params["dec_b"])
    return logits.reshape(B, L, nvoc)


# ------------------------------ parameter init --------------------------------

def init_params(key, *, nvoc, dim, n_heads, num_layers, ffn_dim):
    keys = iter(jax.random.split(key, 2 + 12 * num_layers))

    def uni(shape, scl):
        return jax.random.uniform(next(keys), shape, jnp.float32, -scl, scl)

    s = 1.0 / math.sqrt(dim)
    sf = 1.0 / math.sqrt(ffn_dim)

    params = {
        "embed": uni((nvoc, dim), 0.1),                               # encoder.weight (f32)
        "dec_w_t": uni((nvoc, dim), 0.1).T.astype(jnp.bfloat16),      # decoder.weight^T
        "dec_b": jnp.zeros((1, nvoc), jnp.float32),                   # decoder.bias
    }

    per_layer = {k: [] for k in ("wqkv", "bqkv", "wo", "bo", "w1", "b1", "w2", "b2",
                                 "ln1_g", "ln1_b", "ln2_g", "ln2_b")}
    for _ in range(num_layers):
        wq, bq = uni((dim, dim), s), uni((dim,), s)
        wk, bk = uni((dim, dim), s), uni((dim,), s)
        wv, bv = uni((dim, dim), s), uni((dim,), s)
        wo, bo = uni((dim, dim), s), uni((dim,), s)
        w1, b1 = uni((dim, ffn_dim), s), uni((ffn_dim,), s)
        w2, b2 = uni((ffn_dim, dim), sf), uni((dim,), sf)

        per_layer["wqkv"].append(jnp.concatenate([wq, wk, wv], axis=1).astype(jnp.bfloat16))
        per_layer["bqkv"].append(jnp.concatenate([bq, bk, bv]).reshape(1, 3 * dim))
        per_layer["wo"].append(wo.astype(jnp.bfloat16))
        per_layer["bo"].append(bo.reshape(1, dim))
        per_layer["w1"].append(w1.astype(jnp.bfloat16))
        per_layer["b1"].append(b1.reshape(1, ffn_dim))
        per_layer["w2"].append(w2.astype(jnp.bfloat16))
        per_layer["b2"].append(b2.reshape(1, dim))
        per_layer["ln1_g"].append(jnp.ones((1, dim), jnp.float32))
        per_layer["ln1_b"].append(jnp.zeros((1, dim), jnp.float32))
        per_layer["ln2_g"].append(jnp.ones((1, dim), jnp.float32))
        per_layer["ln2_b"].append(jnp.zeros((1, dim), jnp.float32))

    params.update({k: jnp.stack(v, axis=0) for k, v in per_layer.items()})
    return params


# ----------------------------------- main -------------------------------------

if __name__ == "__main__":
    NVOC, DIM, NHEAD, NLAYERS, FFN = 256, 128, 8, 2, 512
    B, L = 2, 8

    key = jax.random.PRNGKey(0)
    k_tok, k_param = jax.random.split(key)

    params = init_params(k_param, nvoc=NVOC, dim=DIM, n_heads=NHEAD,
                         num_layers=NLAYERS, ffn_dim=FFN)
    tokens = jax.random.randint(k_tok, (B, L), 0, NVOC, dtype=jnp.int32)

    logits = lm_model_transformer_forward(tokens, params, n_heads=NHEAD)
    logits = jax.block_until_ready(logits)

    assert logits.shape == (B, L, NVOC), logits.shape
    assert bool(jnp.all(jnp.isfinite(logits)))
    print("KERNEL_OK")
</pallas_src>

<mosaic_0001>
module attributes {stable_mosaic.version = 11 : i64} {
  func.func @lm_head_kernel(%arg0: i32, %arg1: i32, %arg2: i32, %arg3: memref<16x128xbf16, #tpu.memory_space<vmem>>, %arg4: memref<128x256xbf16, #tpu.memory_space<vmem>>, %arg5: memref<1x256xf32, #tpu.memory_space<vmem>>, %arg6: memref<16x256xf32, #tpu.memory_space<vmem>>, %arg7: memref<16x256xf32, #tpu.memory_space<vmem>>) attributes {dimension_semantics = [#tpu.dimension_semantics<parallel>, #tpu.dimension_semantics<parallel>, #tpu.dimension_semantics<arbitrary>], iteration_bounds = array<i64: 1, 1, 1>, scalar_prefetch = 0 : i64, scratch_operands = 1 : i64, tpu.core_type = #tpu.core_type<tc>, window_params = [{transform_indices = @transform_0, window_bounds = array<i64: 16, 128>}, {transform_indices = @transform_1, window_bounds = array<i64: 128, 256>}, {transform_indices = @transform_2, window_bounds = array<i64: 1, 256>}, {transform_indices = @transform_3, window_bounds = array<i64: 16, 256>}]} {
    %c0_i32 = arith.constant 0 : i32
    %0 = arith.cmpi eq, %arg2, %c0_i32 : i32
    %1 = arith.extui %0 : i1 to i32
    %c0_i32_0 = arith.constant 0 : i32
    %2 = arith.cmpi ne, %1, %c0_i32_0 : i32
    scf.if %2 {
      %cst_10 = arith.constant 0.000000e+00 : f32
      %12 = vector.broadcast %cst_10 : f32 to vector<16x256xf32>
      %c0_11 = arith.constant 0 : index
      %c0_12 = arith.constant 0 : index
      %13 = vector.load %arg7[%c0_11, %c0_12] : memref<16x256xf32, #tpu.memory_space<vmem>>, vector<16x256xf32>
      tpu.vector_store %arg7[%c0_11, %c0_12], %12 {strides = array<i32>} : memref<16x256xf32, #tpu.memory_space<vmem>>, vector<16x256xf32>,
    } else {
    }
    %c0 = arith.constant 0 : index
    %c0_1 = arith.constant 0 : index
    %3 = vector.load %arg7[%c0, %c0_1] : memref<16x256xf32, #tpu.memory_space<vmem>>, vector<16x256xf32>
    %c0_2 = arith.constant 0 : index
    %c0_3 = arith.constant 0 : index
    %4 = vector.load %arg3[%c0_2, %c0_3] : memref<16x128xbf16, #tpu.memory_space<vmem>>, vector<16x128xbf16>
    %c0_4 = arith.constant 0 : index
    %c0_5 = arith.constant 0 : index
    %5 = vector.load %arg4[%c0_4, %c0_5] : memref<128x256xbf16, #tpu.memory_space<vmem>>, vector<128x256xbf16>
    %cst = arith.constant dense<0.000000e+00> : vector<16x256xf32>
    %6 = tpu.matmul %4, %5, %cst {dimension_numbers = #tpu.dot_dimension_numbers<[1], [0], [0], [1], [0, 0, 1, 1], [], []>} : vector<16x128xbf16>, vector<128x256xbf16>, vector<16x256xf32> -> vector<16x256xf32>
    %7 = arith.addf %3, %6 : vector<16x256xf32>
    %c0_6 = arith.constant 0 : index
    %c0_7 = arith.constant 0 : index
    %8 = vector.load %arg7[%c0_6, %c0_7] : memref<16x256xf32, #tpu.memory_space<vmem>>, vector<16x256xf32>
    tpu.vector_store %arg7[%c0_6, %c0_7], %7 {strides = array<i32>} : memref<16x256xf32, #tpu.memory_space<vmem>>, vector<16x256xf32>,
    %c0_i32_8 = arith.constant 0 : i32
    %9 = arith.cmpi eq, %arg2, %c0_i32_8 : i32
    %10 = arith.extui %9 : i1 to i32
    %c0_i32_9 = arith.constant 0 : i32
    %11 = arith.cmpi ne, %10, %c0_i32_9 : i32
    scf.if %11 {
      %c0_10 = arith.constant 0 : index
      %c0_11 = arith.constant 0 : index
      %12 = vector.load %arg7[%c0_10, %c0_11] : memref<16x256xf32, #tpu.memory_space<vmem>>, vector<16x256xf32>
      %c0_12 = arith.constant 0 : index
      %c0_13 = arith.constant 0 : index
      %13 = vector.load %arg5[%c0_12, %c0_13] : memref<1x256xf32, #tpu.memory_space<vmem>>, vector<1x256xf32>
      %14 = vector.broadcast %13 : vector<1x256xf32> to vector<16x256xf32>
      %15 = arith.addf %12, %14 : vector<16x256xf32>
      %c0_14 = arith.constant 0 : index
      %c0_15 = arith.constant 0 : index
      %16 = vector.load %arg6[%c0_14, %c0_15] : memref<16x256xf32, #tpu.memory_space<vmem>>, vector<16x256xf32>
      tpu.vector_store %arg6[%c0_14, %c0_15], %15 {strides = array<i32>} : memref<16x256xf32, #tpu.memory_space<vmem>>, vector<16x256xf32>,
    } else {
    }
    return
  }
  func.func @transform_0(%arg0: i32, %arg1: i32, %arg2: i32) -> (i32, i32) {
    %c0_i32 = arith.constant 0 : i32
    return %arg0, %arg2 : i32, i32
  }
  func.func @transform_1(%arg0: i32, %arg1: i32, %arg2: i32) -> (i32, i32) {
    %c0_i32 = arith.constant 0 : i32
    return %arg2, %arg1 : i32, i32
  }
  func.func @transform_2(%arg0: i32, %arg1: i32, %arg2: i32) -> (i32, i32) {
    %c0_i32 = arith.constant 0 : i32
    %c0_i32_0 = arith.constant 0 : i32
    return %c0_i32, %arg1 : i32, i32
  }
  func.func @transform_3(%arg0: i32, %arg1: i32, %arg2: i32) -> (i32, i32) {
    %c0_i32 = arith.constant 0 : i32
    return %arg0, %arg1 : i32, i32
  }
}

module attributes {stable_mosaic.version = 11 : i64} {
  func.func @decoder_stack_kernel(%arg0: i32, %arg1: i32, %arg2: memref<8x128xbf16, #tpu.memory_space<vmem>>, %arg3: memref<1x128x384xbf16, #tpu.memory_space<vmem>>, %arg4: memref<1x1x384xf32, #tpu.memory_space<vmem>>, %arg5: memref<1x128x128xbf16, #tpu.memory_space<vmem>>, %arg6: memref<1x1x128xf32, #tpu.memory_space<vmem>>, %arg7: memref<1x1x128xf32, #tpu.memory_space<vmem>>, %arg8: memref<1x1x128xf32, #tpu.memory_space<vmem>>, %arg9: memref<1x128x512xbf16, #tpu.memory_space<vmem>>, %arg10: memref<1x1x512xf32, #tpu.memory_space<vmem>>, %arg11: memref<1x512x128xbf16, #tpu.memory_space<vmem>>, %arg12: memref<1x1x128xf32, #tpu.memory_space<vmem>>, %arg13: memref<1x1x128xf32, #tpu.memory_space<vmem>>, %arg14: memref<1x1x128xf32, #tpu.memory_space<vmem>>, %arg15: memref<8x128xbf16, #tpu.memory_space<vmem>>, %arg16: memref<8x8xf32, #tpu.memory_space<vmem>>) attributes {dimension_semantics = [#tpu.dimension_semantics<parallel>, #tpu.dimension_semantics<arbitrary>], iteration_bounds = array<i64: 2, 2>, scalar_prefetch = 0 : i64, scratch_operands = 1 : i64, tpu.core_type = #tpu.core_type<tc>, window_params = [{transform_indices = @transform_0, window_bounds = array<i64: 8, 128>}, {transform_indices = @transform_1, window_bounds = array<i64: 1, 128, 384>}, {transform_indices = @transform_2, window_bounds = array<i64: 1, 1, 384>}, {transform_indices = @transform_3, window_bounds = array<i64: 1, 128, 128>}, {transform_indices = @transform_4, window_bounds = array<i64: 1, 1, 128>}, {transform_indices = @transform_5, window_bounds = array<i64: 1, 1, 128>}, {transform_indices = @transform_6, window_bounds = array<i64: 1, 1, 128>}, {transform_indices = @transform_7, window_bounds = array<i64: 1, 128, 512>}, {transform_indices = @transform_8, window_bounds = array<i64: 1, 1, 512>}, {transform_indices = @transform_9, window_bounds = array<i64: 1, 512, 128>}, {transform_indices = @transform_10, window_bounds = array<i64: 1, 1, 128>}, {transform_indices = @transform_11, window_bounds = array<i64: 1, 1, 128>}, {transform_indices = @transform_12, window_bounds = array<i64: 1, 1, 128>}, {transform_indices = @transform_13, window_bounds = array<i64: 8, 128>}]} {
    %c0_i32 = arith.constant 0 : i32
    %0 = arith.cmpi eq, %arg1, %c0_i32 : i32
    %1 = arith.extui %0 : i1 to i32
    %c0_i32_0 = arith.constant 0 : i32
    %2 = arith.cmpi ne, %1, %c0_i32_0 : i32
    scf.if %2 {
      %c0_97 = arith.constant 0 : index
      %c0_98 = arith.constant 0 : index
      %270 = vector.load %arg2[%c0_97, %c0_98] : memref<8x128xbf16, #tpu.memory_space<vmem>>, vector<8x128xbf16>
      %c0_99 = arith.constant 0 : index
      %c0_100 = arith.constant 0 : index
      %271 = vector.load %arg15[%c0_99, %c0_100] : memref<8x128xbf16, #tpu.memory_space<vmem>>, vector<8x128xbf16>
      tpu.vector_store %arg15[%c0_99, %c0_100], %270 {strides = array<i32>} : memref<8x128xbf16, #tpu.memory_space<vmem>>, vector<8x128xbf16>,
      %272 = tpu.iota {dimensions = array<i32: 0>} : vector<8x8xi32>
      %273 = tpu.iota {dimensions = array<i32: 1>} : vector<8x8xi32>
      %274 = arith.cmpi sle, %273, %272 : vector<8x8xi32>
      %cst_101 = arith.constant 0.000000e+00 : f32
      %cst_102 = arith.constant -1.000000e+30 : f32
      %275 = vector.broadcast %cst_101 : f32 to vector<8x8xf32>
      %276 = vector.broadcast %cst_102 : f32 to vector<8x8xf32>
      %277 = arith.select %274, %275, %276 : vector<8x8xi1>, vector<8x8xf32>
      %c0_103 = arith.constant 0 : index
      %c0_104 = arith.constant 0 : index
      %278 = vector.load %arg16[%c0_103, %c0_104] : memref<8x8xf32, #tpu.memory_space<vmem>>, vector<8x8xf32>
      tpu.vector_store %arg16[%c0_103, %c0_104], %277 {strides = array<i32>} : memref<8x8xf32, #tpu.memory_space<vmem>>, vector<8x8xf32>,
    } else {
    }
    %c0 = arith.constant 0 : index
    %c0_1 = arith.constant 0 : index
    %3 = vector.load %arg15[%c0, %c0_1] : memref<8x128xbf16, #tpu.memory_space<vmem>>, vector<8x128xbf16>
    %4 = arith.extf %3 : vector<8x128xbf16> to vector<8x128xf32>
    %c0_2 = arith.constant 0 : index
    %c0_3 = arith.constant 0 : index
    %c0_4 = arith.constant 0 : index
    %5 = vector.load %arg3[%c0_2, %c0_3, %c0_4] : memref<1x128x384xbf16, #tpu.memory_space<vmem>>, vector<1x128x384xbf16>
    %6 = vector.shape_cast %5 : vector<1x128x384xbf16> to vector<128x384xbf16>
    %cst = arith.constant dense<0.000000e+00> : vector<8x384xf32>
    %7 = tpu.matmul %3, %6, %cst {dimension_numbers = #tpu.dot_dimension_numbers<[1], [0], [0], [1], [0, 0, 1, 1], [], []>} : vector<8x128xbf16>, vector<128x384xbf16>, vector<8x384xf32> -> vector<8x384xf32>
    %c0_5 = arith.constant 0 : index
    %c0_6 = arith.constant 0 : index
    %c0_7 = arith.constant 0 : index
    %8 = vector.load %arg4[%c0_5, %c0_6, %c0_7] : memref<1x1x384xf32, #tpu.memory_space<vmem>>, vector<1x1x384xf32>
    %9 = vector.shape_cast %8 : vector<1x1x384xf32> to vector<1x384xf32>
    %10 = vector.broadcast %9 : vector<1x384xf32> to vector<8x384xf32>
    %11 = arith.addf %7, %10 : vector<8x384xf32>
    %12 = vector.extract_strided_slice %11 {offsets = [0, 0], sizes = [8, 128], strides = [1, 1]} : vector<8x384xf32> to vector<8x128xf32>
    %cst_8 = arith.constant 2.500000e-01 : f32
    %13 = vector.broadcast %cst_8 : f32 to vector<8x128xf32>
    %14 = arith.mulf %12, %13 : vector<8x128xf32>
    %15 = arith.truncf %14 : vector<8x128xf32> to vector<8x128xbf16>
    %16 = vector.extract_strided_slice %11 {offsets = [0, 128], sizes = [8, 128], strides = [1, 1]} : vector<8x384xf32> to vector<8x128xf32>
    %17 = arith.truncf %16 : vector<8x128xf32> to vector<8x128xbf16>
    %18 = vector.extract_strided_slice %11 {offsets = [0, 256], sizes = [8, 128], strides = [1, 1]} : vector<8x384xf32> to vector<8x128xf32>
    %19 = arith.truncf %18 : vector<8x128xf32> to vector<8x128xbf16>
    %c0_9 = arith.constant 0 : index
    %c0_10 = arith.constant 0 : index
    %20 = vector.load %arg16[%c0_9, %c0_10] : memref<8x8xf32, #tpu.memory_space<vmem>>, vector<8x8xf32>
    %c0_11 = arith.constant 0 : index
    %c0_12 = arith.constant 0 : index
    %c0_13 = arith.constant 0 : index
    %21 = vector.load %arg5[%c0_11, %c0_12, %c0_13] : memref<1x128x128xbf16, #tpu.memory_space<vmem>>, vector<1x128x128xbf16>
    %22 = vector.shape_cast %21 : vector<1x128x128xbf16> to vector<128x128xbf16>
    %cst_14 = arith.constant 0.000000e+00 : f32
    %23 = vector.broadcast %cst_14 : f32 to vector<8x128xf32>
    %24 = vector.extract_strided_slice %15 {offsets = [0, 0], sizes = [8, 16], strides = [1, 1]} : vector<8x128xbf16> to vector<8x16xbf16>
    %25 = vector.extract_strided_slice %17 {offsets = [0, 0], sizes = [8, 16], strides = [1, 1]} : vector<8x128xbf16> to vector<8x16xbf16>
    %26 = vector.extract_strided_slice %19 {offsets = [0, 0], sizes = [8, 16], strides = [1, 1]} : vector<8x128xbf16> to vector<8x16xbf16>
    %cst_15 = arith.constant dense<0.000000e+00> : vector<8x8xf32>
    %27 = tpu.matmul %24, %25, %cst_15 {dimension_numbers = #tpu.dot_dimension_numbers<[1], [1], [0], [0], [0, 0, 1, 0], [], []>} : vector<8x16xbf16>, vector<8x16xbf16>, vector<8x8xf32> -> vector<8x8xf32>
    %28 = arith.addf %27, %20 : vector<8x8xf32>
    %cst_16 = arith.constant dense<0xFF800000> : vector<8xf32>
    %29 = vector.multi_reduction <maximumf>, %28, %cst_16 [1] : vector<8x8xf32> to vector<8xf32>
    %30 = vector.shape_cast %29 : vector<8xf32> to vector<8x1xf32>
    %31 = vector.broadcast %30 : vector<8x1xf32> to vector<8x8xf32>
    %32 = arith.subf %28, %31 : vector<8x8xf32>
    %33 = math.exp %32 : vector<8x8xf32>
    %cst_17 = arith.constant dense<0.000000e+00> : vector<8xf32>
    %34 = vector.multi_reduction <add>, %33, %cst_17 [1] : vector<8x8xf32> to vector<8xf32>
    %35 = vector.shape_cast %34 : vector<8xf32> to vector<8x1xf32>
    %36 = tpu.reciprocal %35 {approx = true} : vector<8x1xf32> -> vector<8x1xf32>
    %37 = vector.broadcast %36 : vector<8x1xf32> to vector<8x8xf32>
    %38 = arith.mulf %33, %37 : vector<8x8xf32>
    %39 = arith.truncf %38 : vector<8x8xf32> to vector<8x8xbf16>
    %cst_18 = arith.constant dense<0.000000e+00> : vector<8x16xf32>
    %40 = tpu.matmul %39, %26, %cst_18 {dimension_numbers = #tpu.dot_dimension_numbers<[1], [0], [0], [1], [0, 0, 1, 1], [], []>} : vector<8x8xbf16>, vector<8x16xbf16>, vector<8x16xf32> -> vector<8x16xf32>
    %41 = arith.truncf %40 : vector<8x16xf32> to vector<8x16xbf16>
    %42 = vector.extract_strided_slice %22 {offsets = [0, 0], sizes = [16, 128], strides = [1, 1]} : vector<128x128xbf16> to vector<16x128xbf16>
    %cst_19 = arith.constant dense<0.000000e+00> : vector<8x128xf32>
    %43 = tpu.matmul %41, %42, %cst_19 {dimension_numbers = #tpu.dot_dimension_numbers<[1], [0], [0], [1], [0, 0, 1, 1], [], []>} : vector<8x16xbf16>, vector<16x128xbf16>, vector<8x128xf32> -> vector<8x128xf32>
    %44 = arith.addf %23, %43 : vector<8x128xf32>
    %45 = vector.extract_strided_slice %15 {offsets = [0, 16], sizes = [8, 16], strides = [1, 1]} : vector<8x128xbf16> to vector<8x16xbf16>
    %46 = vector.extract_strided_slice %17 {offsets = [0, 16], sizes = [8, 16], strides = [1, 1]} : vector<8x128xbf16> to vector<8x16xbf16>
    %47 = vector.extract_strided_slice %19 {offsets = [0, 16], sizes = [8, 16], strides = [1, 1]} : vector<8x128xbf16> to vector<8x16xbf16>
    %cst_20 = arith.constant dense<0.000000e+00> : vector<8x8xf32>
    %48 = tpu.matmul %45, %46, %cst_20 {dimension_numbers = #tpu.dot_dimension_numbers<[1], [1], [0], [0], [0, 0, 1, 0], [], []>} : vector<8x16xbf16>, vector<8x16xbf16>, vector<8x8xf32> -> vector<8x8xf32>
    %49 = arith.addf %48, %20 : vector<8x8xf32>
    %cst_21 = arith.constant dense<0xFF800000> : vector<8xf32>
    %50 = vector.multi_reduction <maximumf>, %49, %cst_21 [1] : vector<8x8xf32> to vector<8xf32>
    %51 = vector.shape_cast %50 : vector<8xf32> to vector<8x1xf32>
    %52 = vector.broadcast %51 : vector<8x1xf32> to vector<8x8xf32>
    %53 = arith.subf %49, %52 : vector<8x8xf32>
    %54 = math.exp %53 : vector<8x8xf32>
    %cst_22 = arith.constant dense<0.000000e+00> : vector<8xf32>
    %55 = vector.multi_reduction <add>, %54, %cst_22 [1] : vector<8x8xf32> to vector<8xf32>
    %56 = vector.shape_cast %55 : vector<8xf32> to vector<8x1xf32>
    %57 = tpu.reciprocal %56 {approx = true} : vector<8x1xf32> -> vector<8x1xf32>
    %58 = vector.broadcast %57 : vector<8x1xf32> to vector<8x8xf32>
    %59 = arith.mulf %54, %58 : vector<8x8xf32>
    %60 = arith.truncf %59 : vector<8x8xf32> to vector<8x8xbf16>
    %cst_23 = arith.constant dense<0.000000e+00> : vector<8x16xf32>
    %61 = tpu.matmul %60, %47, %cst_23 {dimension_numbers = #tpu.dot_dimension_numbers<[1], [0], [0], [1], [0, 0, 1, 1], [], []>} : vector<8x8xbf16>, vector<8x16xbf16>, vector<8x16xf32> -> vector<8x16xf32>
    %62 = arith.truncf %61 : vector<8x16xf32> to vector<8x16xbf16>
    %63 = vector.extract_strided_slice %22 {offsets = [16, 0], sizes = [16, 128], strides = [1, 1]} : vector<128x128xbf16> to vector<16x128xbf16>
    %cst_24 = arith.constant dense<0.000000e+00> : vector<8x128xf32>
    %64 = tpu.matmul %62, %63, %cst_24 {dimension_numbers = #tpu.dot_dimension_numbers<[1], [0], [0], [1], [0, 0, 1, 1], [], []>} : vector<8x16xbf16>, vector<16x128xbf16>, vector<8x128xf32> -> vector<8x128xf32>
    %65 = arith.addf %44, %64 : vector<8x128xf32>
    %66 = vector.extract_strided_slice %15 {offsets = [0, 32], sizes = [8, 16], strides = [1, 1]} : vector<8x128xbf16> to vector<8x16xbf16>
    %67 = vector.extract_strided_slice %17 {offsets = [0, 32], sizes = [8, 16], strides = [1, 1]} : vector<8x128xbf16> to vector<8x16xbf16>
    %68 = vector.extract_strided_slice %19 {offsets = [0, 32], sizes = [8, 16], strides = [1, 1]} : vector<8x128xbf16> to vector<8x16xbf16>
    %cst_25 = arith.constant dense<0.000000e+00> : vector<8x8xf32>
    %69 = tpu.matmul %66, %67, %cst_25 {dimension_numbers = #tpu.dot_dimension_numbers<[1], [1], [0], [0], [0, 0, 1, 0], [], []>} : vector<8x16xbf16>, vector<8x16xbf16>, vector<8x8xf32> -> vector<8x8xf32>
    %70 = arith.addf %69, %20 : vector<8x8xf32>
    %cst_26 = arith.constant dense<0xFF800000> : vector<8xf32>
    %71 = vector.multi_reduction <maximumf>, %70, %cst_26 [1] : vector<8x8xf32> to vector<8xf32>
    %72 = vector.shape_cast %71 : vector<8xf32> to vector<8x1xf32>
    %73 = vector.broadcast %72 : vector<8x1xf32> to vector<8x8xf32>
    %74 = arith.subf %70, %73 : vector<8x8xf32>
    %75 = math.exp %74 : vector<8x8xf32>
    %cst_27 = arith.constant dense<0.000000e+00> : vector<8xf32>
    %76 = vector.multi_reduction <add>, %75, %cst_27 [1] : vector<8x8xf32> to vector<8xf32>
    %77 = vector.shape_cast %76 : vector<8xf32> to vector<8x1xf32>
    %78 = tpu.reciprocal %77 {approx = true} : vector<8x1xf32> -> vector<8x1xf32>
    %79 = vector.broadcast %78 : vector<8x1xf32> to vector<8x8xf32>
    %80 = arith.mulf %75, %79 : vector<8x8xf32>
    %81 = arith.truncf %80 : vector<8x8xf32> to vector<8x8xbf16>
    %cst_28 = arith.constant dense<0.000000e+00> : vector<8x16xf32>
    %82 = tpu.matmul %81, %68, %cst_28 {dimension_numbers = #tpu.dot_dimension_numbers<[1], [0], [0], [1], [0, 0, 1, 1], [], []>} : vector<8x8xbf16>, vector<8x16xbf16>, vector<8x16xf32> -> vector<8x16xf32>
    %83 = arith.truncf %82 : vector<8x16xf32> to vector<8x16xbf16>
    %84 = vector.extract_strided_slice %22 {offsets = [32, 0], sizes = [16, 128], strides = [1, 1]} : vector<128x128xbf16> to vector<16x128xbf16>
    %cst_29 = arith.constant dense<0.000000e+00> : vector<8x128xf32>
    %85 = tpu.matmul %83, %84, %cst_29 {dimension_numbers = #tpu.dot_dimension_numbers<[1], [0], [0], [1], [0, 0, 1, 1], [], []>} : vector<8x16xbf16>, vector<16x128xbf16>, vector<8x128xf32> -> vector<8x128xf32>
    %86 = arith.addf %65, %85 : vector<8x128xf32>
    %87 = vector.extract_strided_slice %15 {offsets = [0, 48], sizes = [8, 16], strides = [1, 1]} : vector<8x128xbf16> to vector<8x16xbf16>
    %88 = vector.extract_strided_slice %17 {offsets = [0, 48], sizes = [8, 16], strides = [1, 1]} : vector<8x128xbf16> to vector<8x16xbf16>
    %89 = vector.extract_strided_slice %19 {offsets = [0, 48], sizes = [8, 16], strides = [1, 1]} : vector<8x128xbf16> to vector<8x16xbf16>
    %cst_30 = arith.constant dense<0.000000e+00> : vector<8x8xf32>
    %90 = tpu.matmul %87, %88, %cst_30 {dimension_numbers = #tpu.dot_dimension_numbers<[1], [1], [0], [0], [0, 0, 1, 0], [], []>} : vector<8x16xbf16>, vector<8x16xbf16>, vector<8x8xf32> -> vector<8x8xf32>
    %91 = arith.addf %90, %20 : vector<8x8xf32>
    %cst_31 = arith.constant dense<0xFF800000> : vector<8xf32>
    %92 = vector.multi_reduction <maximumf>, %91, %cst_31 [1] : vector<8x8xf32> to vector<8xf32>
    %93 = vector.shape_cast %92 : vector<8xf32> to vector<8x1xf32>
    %94 = vector.broadcast %93 : vector<8x1xf32> to vector<8x8xf32>
    %95 = arith.subf %91, %94 : vector<8x8xf32>
    %96 = math.exp %95 : vector<8x8xf32>
    %cst_32 = arith.constant dense<0.000000e+00> : vector<8xf32>
    %97 = vector.multi_reduction <add>, %96, %cst_32 [1] : vector<8x8xf32> to vector<8xf32>
    %98 = vector.shape_cast %97 : vector<8xf32> to vector<8x1xf32>
    %99 = tpu.reciprocal %98 {approx = true} : vector<8x1xf32> -> vector<8x1xf32>
    %100 = vector.broadcast %99 : vector<8x1xf32> to vector<8x8xf32>
    %101 = arith.mulf %96, %100 : vector<8x8xf32>
    %102 = arith.truncf %101 : vector<8x8xf32> to vector<8x8xbf16>
    %cst_33 = arith.constant dense<0.000000e+00> : vector<8x16xf32>
    %103 = tpu.matmul %102, %89, %cst_33 {dimension_numbers = #tpu.dot_dimension_numbers<[1], [0], [0], [1], [0, 0, 1, 1], [], []>} : vector<8x8xbf16>, vector<8x16xbf16>, vector<8x16xf32> -> vector<8x16xf32>
    %104 = arith.truncf %103 : vector<8x16xf32> to vector<8x16xbf16>
    %105 = vector.extract_strided_slice %22 {offsets = [48, 0], sizes = [16, 128], strides = [1, 1]} : vector<128x128xbf16> to vector<16x128xbf16>
    %cst_34 = arith.constant dense<0.000000e+00> : vector<8x128xf32>
    %106 = tpu.matmul %104, %105, %cst_34 {dimension_numbers = #tpu.dot_dimension_numbers<[1], [0], [0], [1], [0, 0, 1, 1], [], []>} : vector<8x16xbf16>, vector<16x128xbf16>, vector<8x128xf32> -> vector<8x128xf32>
    %107 = arith.addf %86, %106 : vector<8x128xf32>
    %108 = vector.extract_strided_slice %15 {offsets = [0, 64], sizes = [8, 16], strides = [1, 1]} : vector<8x128xbf16> to vector<8x16xbf16>
    %109 = vector.extract_strided_slice %17 {offsets = [0, 64], sizes = [8, 16], strides = [1, 1]} : vector<8x128xbf16> to vector<8x16xbf16>
    %110 = vector.extract_strided_slice %19 {offsets = [0, 64], sizes = [8, 16], strides = [1, 1]} : vector<8x128xbf16> to vector<8x16xbf16>
    %cst_35 = arith.constant dense<0.000000e+00> : vector<8x8xf32>
    %111 = tpu.matmul %108, %109, %cst_35 {dimension_numbers = #tpu.dot_dimension_numbers<[1], [1], [0], [0], [0, 0, 1, 0], [], []>} : vector<8x16xbf16>, vector<8x16xbf16>, vector<8x8xf32> -> vector<8x8xf32>
    %112 = arith.addf %111, %20 : vector<8x8xf32>
    %cst_36 = arith.constant dense<0xFF800000> : vector<8xf32>
    %113 = vector.multi_reduction <maximumf>, %112, %cst_36 [1] : vector<8x8xf32> to vector<8xf32>
    %114 = vector.shape_cast %113 : vector<8xf32> to vector<8x1xf32>
    %115 = vector.broadcast %114 : vector<8x1xf32> to vector<8x8xf32>
    %116 = arith.subf %112, %115 : vector<8x8xf32>
    %117 = math.exp %116 : vector<8x8xf32>
    %cst_37 = arith.constant dense<0.000000e+00> : vector<8xf32>
    %118 = vector.multi_reduction <add>, %117, %cst_37 [1] : vector<8x8xf32> to vector<8xf32>
    %119 = vector.shape_cast %118 : vector<8xf32> to vector<8x1xf32>
    %120 = tpu.reciprocal %119 {approx = true} : vector<8x1xf32> -> vector<8x1xf32>
    %121 = vector.broadcast %120 : vector<8x1xf32> to vector<8x8xf32>
    %122 = arith.mulf %117, %121 : vector<8x8xf32>
    %123 = arith.truncf %122 : vector<8x8xf32> to vector<8x8xbf16>
    %cst_38 = arith.constant dense<0.000000e+00> : vector<8x16xf32>
    %124 = tpu.matmul %123, %110, %cst_38 {dimension_numbers = #tpu.dot_dimension_numbers<[1], [0], [0], [1], [0, 0, 1, 1], [], []>} : vector<8x8xbf16>, vector<8x16xbf16>, vector<8x16xf32> -> vector<8x16xf32>
    %125 = arith.truncf %124 : vector<8x16xf32> to vector<8x16xbf16>
    %126 = vector.extract_strided_slice %22 {offsets = [64, 0], sizes = [16, 128], strides = [1, 1]} : vector<128x128xbf16> to vector<16x128xbf16>
    %cst_39 = arith.constant dense<0.000000e+00> : vector<8x128xf32>
    %127 = tpu.matmul %125, %126, %cst_39 {dimension_numbers = #tpu.dot_dimension_numbers<[1], [0], [0], [1], [0, 0, 1, 1], [], []>} : vector<8x16xbf16>, vector<16x128xbf16>, vector<8x128xf32> -> vector<8x128xf32>
    %128 = arith.addf %107, %127 : vector<8x128xf32>
    %129 = vector.extract_strided_slice %15 {offsets = [0, 80], sizes = [8, 16], strides = [1, 1]} : vector<8x128xbf16> to vector<8x16xbf16>
    %130 = vector.extract_strided_slice %17 {offsets = [0, 80], sizes = [8, 16], strides = [1, 1]} : vector<8x128xbf16> to vector<8x16xbf16>
    %131 = vector.extract_strided_slice %19 {offsets = [0, 80], sizes = [8, 16], strides = [1, 1]} : vector<8x128xbf16> to vector<8x16xbf16>
    %cst_40 = arith.constant dense<0.000000e+00> : vector<8x8xf32>
    %132 = tpu.matmul %129, %130, %cst_40 {dimension_numbers = #tpu.dot_dimension_numbers<[1], [1], [0], [0], [0, 0, 1, 0], [], []>} : vector<8x16xbf16>, vector<8x16xbf16>, vector<8x8xf32> -> vector<8x8xf32>
    %133 = arith.addf %132, %20 : vector<8x8xf32>
    %cst_41 = arith.constant dense<0xFF800000> : vector<8xf32>
    %134 = vector.multi_reduction <maximumf>, %133, %cst_41 [1] : vector<8x8xf32> to vector<8xf32>
    %135 = vector.shape_cast %134 : vector<8xf32> to vector<8x1xf32>
    %136 = vector.broadcast %135 : vector<8x1xf32> to vector<8x8xf32>
    %137 = arith.subf %133, %136 : vector<8x8xf32>
    %138 = math.exp %137 : vector<8x8xf32>
    %cst_42 = arith.constant dense<0.000000e+00> : vector<8xf32>
    %139 = vector.multi_reduction <add>, %138, %cst_42 [1] : vector<8x8xf32> to vector<8xf32>
    %140 = vector.shape_cast %139 : vector<8xf32> to vector<8x1xf32>
    %141 = tpu.reciprocal %140 {approx = true} : vector<8x1xf32> -> vector<8x1xf32>
    %142 = vector.broadcast %141 : vector<8x1xf32> to vector<8x8xf32>
    %143 = arith.mulf %138, %142 : vector<8x8xf32>
    %144 = arith.truncf %143 : vector<8x8xf32> to vector<8x8xbf16>
    %cst_43 = arith.constant dense<0.000000e+00> : vector<8x16xf32>
    %145 = tpu.matmul %144, %131, %cst_43 {dimension_numbers = #tpu.dot_dimension_numbers<[1], [0], [0], [1], [0, 0, 1, 1], [], []>} : vector<8x8xbf16>, vector<8x16xbf16>, vector<8x16xf32> -> vector<8x16xf32>
    %146 = arith.truncf %145 : vector<8x16xf32> to vector<8x16xbf16>
    %147 = vector.extract_strided_slice %22 {offsets = [80, 0], sizes = [16, 128], strides = [1, 1]} : vector<128x128xbf16> to vector<16x128xbf16>
    %cst_44 = arith.constant dense<0.000000e+00> : vector<8x128xf32>
    %148 = tpu.matmul %146, %147, %cst_44 {dimension_numbers = #tpu.dot_dimension_numbers<[1], [0], [0], [1], [0, 0, 1, 1], [], []>} : vector<8x16xbf16>, vector<16x128xbf16>, vector<8x128xf32> -> vector<8x128xf32>
    %149 = arith.addf %128, %148 : vector<8x128xf32>
    %150 = vector.extract_strided_slice %15 {offsets = [0, 96], sizes = [8, 16], strides = [1, 1]} : vector<8x128xbf16> to vector<8x16xbf16>
    %151 = vector.extract_strided_slice %17 {offsets = [0, 96], sizes = [8, 16], strides = [1, 1]} : vector<8x128xbf16> to vector<8x16xbf16>
    %152 = vector.extract_strided_slice %19 {offsets = [0, 96], sizes = [8, 16], strides = [1, 1]} : vector<8x128xbf16> to vector<8x16xbf16>
    %cst_45 = arith.constant dense<0.000000e+00> : vector<8x8xf32>
    %153 = tpu.matmul %150, %151, %cst_45 {dimension_numbers = #tpu.dot_dimension_numbers<[1], [1], [0], [0], [0, 0, 1, 0], [], []>} : vector<8x16xbf16>, vector<8x16xbf16>, vector<8x8xf32> -> vector<8x8xf32>
    %154 = arith.addf %153, %20 : vector<8x8xf32>
    %cst_46 = arith.constant dense<0xFF800000> : vector<8xf32>
    %155 = vector.multi_reduction <maximumf>, %154, %cst_46 [1] : vector<8x8xf32> to vector<8xf32>
    %156 = vector.shape_cast %155 : vector<8xf32> to vector<8x1xf32>
    %157 = vector.broadcast %156 : vector<8x1xf32> to vector<8x8xf32>
    %158 = arith.subf %154, %157 : vector<8x8xf32>
    %159 = math.exp %158 : vector<8x8xf32>
    %cst_47 = arith.constant dense<0.000000e+00> : vector<8xf32>
    %160 = vector.multi_reduction <add>, %159, %cst_47 [1] : vector<8x8xf32> to vector<8xf32>
    %161 = vector.shape_cast %160 : vector<8xf32> to vector<8x1xf32>
    %162 = tpu.reciprocal %161 {approx = true} : vector<8x1xf32> -> vector<8x1xf32>
    %163 = vector.broadcast %162 : vector<8x1xf32> to vector<8x8xf32>
    %164 = arith.mulf %159, %163 : vector<8x8xf32>
    %165 = arith.truncf %164 : vector<8x8xf32> to vector<8x8xbf16>
    %cst_48 = arith.constant dense<0.000000e+00> : vector<8x16xf32>
    %166 = tpu.matmul %165, %152, %cst_48 {dimension_numbers = #tpu.dot_dimension_numbers<[1], [0], [0], [1], [0, 0, 1, 1], [], []>} : vector<8x8xbf16>, vector<8x16xbf16>, vector<8x16xf32> -> vector<8x16xf32>
    %167 = arith.truncf %166 : vector<8x16xf32> to vector<8x16xbf16>
    %168 = vector.extract_strided_slice %22 {offsets = [96, 0], sizes = [16, 128], strides = [1, 1]} : vector<128x128xbf16> to vector<16x128xbf16>
    %cst_49 = arith.constant dense<0.000000e+00> : vector<8x128xf32>
    %169 = tpu.matmul %167, %168, %cst_49 {dimension_numbers = #tpu.dot_dimension_numbers<[1], [0], [0], [1], [0, 0, 1, 1], [], []>} : vector<8x16xbf16>, vector<16x128xbf16>, vector<8x128xf32> -> vector<8x128xf32>
    %170 = arith.addf %149, %169 : vector<8x128xf32>
    %171 = vector.extract_strided_slice %15 {offsets = [0, 112], sizes = [8, 16], strides = [1, 1]} : vector<8x128xbf16> to vector<8x16xbf16>
    %172 = vector.extract_strided_slice %17 {offsets = [0, 112], sizes = [8, 16], strides = [1, 1]} : vector<8x128xbf16> to vector<8x16xbf16>
    %173 = vector.extract_strided_slice %19 {offsets = [0, 112], sizes = [8, 16], strides = [1, 1]} : vector<8x128xbf16> to vector<8x16xbf16>
    %cst_50 = arith.constant dense<0.000000e+00> : vector<8x8xf32>
    %174 = tpu.matmul %171, %172, %cst_50 {dimension_numbers = #tpu.dot_dimension_numbers<[1], [1], [0], [0], [0, 0, 1, 0], [], []>} : vector<8x16xbf16>, vector<8x16xbf16>, vector<8x8xf32> -> vector<8x8xf32>
    %175 = arith.addf %174, %20 : vector<8x8xf32>
    %cst_51 = arith.constant dense<0xFF800000> : vector<8xf32>
    %176 = vector.multi_reduction <maximumf>, %175, %cst_51 [1] : vector<8x8xf32> to vector<8xf32>
    %177 = vector.shape_cast %176 : vector<8xf32> to vector<8x1xf32>
    %178 = vector.broadcast %177 : vector<8x1xf32> to vector<8x8xf32>
    %179 = arith.subf %175, %178 : vector<8x8xf32>
    %180 = math.exp %179 : vector<8x8xf32>
    %cst_52 = arith.constant dense<0.000000e+00> : vector<8xf32>
    %181 = vector.multi_reduction <add>, %180, %cst_52 [1] : vector<8x8xf32> to vector<8xf32>
    %182 = vector.shape_cast %181 : vector<8xf32> to vector<8x1xf32>
    %183 = tpu.reciprocal %182 {approx = true} : vector<8x1xf32> -> vector<8x1xf32>
    %184 = vector.broadcast %183 : vector<8x1xf32> to vector<8x8xf32>
    %185 = arith.mulf %180, %184 : vector<8x8xf32>
    %186 = arith.truncf %185 : vector<8x8xf32> to vector<8x8xbf16>
    %cst_53 = arith.constant dense<0.000000e+00> : vector<8x16xf32>
    %187 = tpu.matmul %186, %173, %cst_53 {dimension_numbers = #tpu.dot_dimension_numbers<[1], [0], [0], [1], [0, 0, 1, 1], [], []>} : vector<8x8xbf16>, vector<8x16xbf16>, vector<8x16xf32> -> vector<8x16xf32>
    %188 = arith.truncf %187 : vector<8x16xf32> to vector<8x16xbf16>
    %189 = vector.extract_strided_slice %22 {offsets = [112, 0], sizes = [16, 128], strides = [1, 1]} : vector<128x128xbf16> to vector<16x128xbf16>
    %cst_54 = arith.constant dense<0.000000e+00> : vector<8x128xf32>
    %190 = tpu.matmul %188, %189, %cst_54 {dimension_numbers = #tpu.dot_dimension_numbers<[1], [0], [0], [1], [0, 0, 1, 1], [], []>} : vector<8x16xbf16>, vector<16x128xbf16>, vector<8x128xf32> -> vector<8x128xf32>
    %191 = arith.addf %170, %190 : vector<8x128xf32>
    %c0_55 = arith.constant 0 : index
    %c0_56 = arith.constant 0 : index
    %c0_57 = arith.constant 0 : index
    %192 = vector.load %arg6[%c0_55, %c0_56, %c0_57] : memref<1x1x128xf32, #tpu.memory_space<vmem>>, vector<1x1x128xf32>
    %193 = vector.shape_cast %192 : vector<1x1x128xf32> to vector<1x128xf32>
    %194 = vector.broadcast %193 : vector<1x128xf32> to vector<8x128xf32>
    %195 = arith.addf %191, %194 : vector<8x128xf32>
    %196 = arith.addf %4, %195 : vector<8x128xf32>
    %cst_58 = arith.constant dense<0.000000e+00> : vector<8xf32>
    %197 = vector.multi_reduction <add>, %196, %cst_58 [1] : vector<8x128xf32> to vector<8xf32>
    %198 = vector.shape_cast %197 : vector<8xf32> to vector<8x1xf32>
    %cst_59 = arith.constant 1.280000e+02 : f32
    %199 = vector.broadcast %cst_59 : f32 to vector<8x1xf32>
    %200 = arith.divf %198, %199 : vector<8x1xf32>
    %201 = vector.broadcast %200 : vector<8x1xf32> to vector<8x128xf32>
    %202 = arith.subf %196, %201 : vector<8x128xf32>
    %203 = arith.mulf %202, %202 : vector<8x128xf32>
    %cst_60 = arith.constant dense<0.000000e+00> : vector<8xf32>
    %204 = vector.multi_reduction <add>, %203, %cst_60 [1] : vector<8x128xf32> to vector<8xf32>
    %205 = vector.shape_cast %204 : vector<8xf32> to vector<8x1xf32>
    %cst_61 = arith.constant 1.280000e+02 : f32
    %206 = vector.broadcast %cst_61 : f32 to vector<8x1xf32>
    %207 = arith.divf %205, %206 : vector<8x1xf32>
    %208 = vector.broadcast %200 : vector<8x1xf32> to vector<8x128xf32>
    %209 = arith.subf %196, %208 : vector<8x128xf32>
    %cst_62 = arith.constant 9.99999974E-6 : f32
    %210 = vector.broadcast %cst_62 : f32 to vector<8x1xf32>
    %211 = arith.addf %207, %210 : vector<8x1xf32>
    %212 = math.rsqrt %211 : vector<8x1xf32>
    %213 = vector.broadcast %212 : vector<8x1xf32> to vector<8x128xf32>
    %214 = arith.mulf %209, %213 : vector<8x128xf32>
    %c0_63 = arith.constant 0 : index
    %c0_64 = arith.constant 0 : index
    %c0_65 = arith.constant 0 : index
    %215 = vector.load %arg7[%c0_63, %c0_64, %c0_65] : memref<1x1x128xf32, #tpu.memory_space<vmem>>, vector<1x1x128xf32>
    %216 = vector.shape_cast %215 : vector<1x1x128xf32> to vector<1x128xf32>
    %217 = vector.broadcast %216 : vector<1x128xf32> to vector<8x128xf32>
    %218 = arith.mulf %214, %217 : vector<8x128xf32>
    %c0_66 = arith.constant 0 : index
    %c0_67 = arith.constant 0 : index
    %c0_68 = arith.constant 0 : index
    %219 = vector.load %arg8[%c0_66, %c0_67, %c0_68] : memref<1x1x128xf32, #tpu.memory_space<vmem>>, vector<1x1x128xf32>
    %220 = vector.shape_cast %219 : vector<1x1x128xf32> to vector<1x128xf32>
    %221 = vector.broadcast %220 : vector<1x128xf32> to vector<8x128xf32>
    %222 = arith.addf %218, %221 : vector<8x128xf32>
    %223 = arith.truncf %222 : vector<8x128xf32> to vector<8x128xbf16>
    %c0_69 = arith.constant 0 : index
    %c0_70 = arith.constant 0 : index
    %c0_71 = arith.constant 0 : index
    %224 = vector.load %arg9[%c0_69, %c0_70, %c0_71] : memref<1x128x512xbf16, #tpu.memory_space<vmem>>, vector<1x128x512xbf16>
    %225 = vector.shape_cast %224 : vector<1x128x512xbf16> to vector<128x512xbf16>
    %cst_72 = arith.constant dense<0.000000e+00> : vector<8x512xf32>
    %226 = tpu.matmul %223, %225, %cst_72 {dimension_numbers = #tpu.dot_dimension_numbers<[1], [0], [0], [1], [0, 0, 1, 1], [], []>} : vector<8x128xbf16>, vector<128x512xbf16>, vector<8x512xf32> -> vector<8x512xf32>
    %c0_73 = arith.constant 0 : index
    %c0_74 = arith.constant 0 : index
    %c0_75 = arith.constant 0 : index
    %227 = vector.load %arg10[%c0_73, %c0_74, %c0_75] : memref<1x1x512xf32, #tpu.memory_space<vmem>>, vector<1x1x512xf32>
    %228 = vector.shape_cast %227 : vector<1x1x512xf32> to vector<1x512xf32>
    %229 = vector.broadcast %228 : vector<1x512xf32> to vector<8x512xf32>
    %230 = arith.addf %226, %229 : vector<8x512xf32>
    %cst_76 = arith.constant 0.000000e+00 : f32
    %231 = vector.broadcast %cst_76 : f32 to vector<8x512xf32>
    %232 = arith.maximumf %230, %231 : vector<8x512xf32>
    %233 = arith.truncf %232 : vector<8x512xf32> to vector<8x512xbf16>
    %c0_77 = arith.constant 0 : index
    %c0_78 = arith.constant 0 : index
    %c0_79 = arith.constant 0 : index
    %234 = vector.load %arg11[%c0_77, %c0_78, %c0_79] : memref<1x512x128xbf16, #tpu.memory_space<vmem>>, vector<1x512x128xbf16>
    %235 = vector.shape_cast %234 : vector<1x512x128xbf16> to vector<512x128xbf16>
    %cst_80 = arith.constant dense<0.000000e+00> : vector<8x128xf32>
    %236 = tpu.matmul %233, %235, %cst_80 {dimension_numbers = #tpu.dot_dimension_numbers<[1], [0], [0], [1], [0, 0, 1, 1], [], []>} : vector<8x512xbf16>, vector<512x128xbf16>, vector<8x128xf32> -> vector<8x128xf32>
    %c0_81 = arith.constant 0 : index
    %c0_82 = arith.constant 0 : index
    %c0_83 = arith.constant 0 : index
    %237 = vector.load %arg12[%c0_81, %c0_82, %c0_83] : memref<1x1x128xf32, #tpu.memory_space<vmem>>, vector<1x1x128xf32>
    %238 = vector.shape_cast %237 : vector<1x1x128xf32> to vector<1x128xf32>
    %239 = vector.broadcast %238 : vector<1x128xf32> to vector<8x128xf32>
    %240 = arith.addf %236, %239 : vector<8x128xf32>
    %241 = arith.addf %222, %240 : vector<8x128xf32>
    %cst_84 = arith.constant dense<0.000000e+00> : vector<8xf32>
    %242 = vector.multi_reduction <add>, %241, %cst_84 [1] : vector<8x128xf32> to vector<8xf32>
    %243 = vector.shape_cast %242 : vector<8xf32> to vector<8x1xf32>
    %cst_85 = arith.constant 1.280000e+02 : f32
    %244 = vector.broadcast %cst_85 : f32 to vector<8x1xf32>
    %245 = arith.divf %243, %244 : vector<8x1xf32>
    %246 = vector.broadcast %245 : vector<8x1xf32> to vector<8x128xf32>
    %247 = arith.subf %241, %246 : vector<8x128xf32>
    %248 = arith.mulf %247, %247 : vector<8x128xf32>
    %cst_86 = arith.constant dense<0.000000e+00> : vector<8xf32>
    %249 = vector.multi_reduction <add>, %248, %cst_86 [1] : vector<8x128xf32> to vector<8xf32>
    %250 = vector.shape_cast %249 : vector<8xf32> to vector<8x1xf32>
    %cst_87 = arith.constant 1.280000e+02 : f32
    %251 = vector.broadcast %cst_87 : f32 to vector<8x1xf32>
    %252 = arith.divf %250, %251 : vector<8x1xf32>
    %253 = vector.broadcast %245 : vector<8x1xf32> to vector<8x128xf32>
    %254 = arith.subf %241, %253 : vector<8x128xf32>
    %cst_88 = arith.constant 9.99999974E-6 : f32
    %255 = vector.broadcast %cst_88 : f32 to vector<8x1xf32>
    %256 = arith.addf %252, %255 : vector<8x1xf32>
    %257 = math.rsqrt %256 : vector<8x1xf32>
    %258 = vector.broadcast %257 : vector<8x1xf32> to vector<8x128xf32>
    %259 = arith.mulf %254, %258 : vector<8x128xf32>
    %c0_89 = arith.constant 0 : index
    %c0_90 = arith.constant 0 : index
    %c0_91 = arith.constant 0 : index
    %260 = vector.load %arg13[%c0_89, %c0_90, %c0_91] : memref<1x1x128xf32, #tpu.memory_space<vmem>>, vector<1x1x128xf32>
    %261 = vector.shape_cast %260 : vector<1x1x128xf32> to vector<1x128xf32>
    %262 = vector.broadcast %261 : vector<1x128xf32> to vector<8x128xf32>
    %263 = arith.mulf %259, %262 : vector<8x128xf32>
    %c0_92 = arith.constant 0 : index
    %c0_93 = arith.constant 0 : index
    %c0_94 = arith.constant 0 : index
    %264 = vector.load %arg14[%c0_92, %c0_93, %c0_94] : memref<1x1x128xf32, #tpu.memory_space<vmem>>, vector<1x1x128xf32>
    %265 = vector.shape_cast %264 : vector<1x1x128xf32> to vector<1x128xf32>
    %266 = vector.broadcast %265 : vector<1x128xf32> to vector<8x128xf32>
    %267 = arith.addf %263, %266 : vector<8x128xf32>
    %268 = arith.truncf %267 : vector<8x128xf32> to vector<8x128xbf16>
    %c0_95 = arith.constant 0 : index
    %c0_96 = arith.constant 0 : index
    %269 = vector.load %arg15[%c0_95, %c0_96] : memref<8x128xbf16, #tpu.memory_space<vmem>>, vector<8x128xbf16>
    tpu.vector_store %arg15[%c0_95, %c0_96], %268 {strides = array<i32>} : memref<8x128xbf16, #tpu.memory_space<vmem>>, vector<8x128xbf16>,
    return
  }
  func.func @transform_0(%arg0: i32, %arg1: i32) -> (i32, i32) {
    %c0_i32 = arith.constant 0 : i32
    %c0_i32_0 = arith.constant 0 : i32
    return %arg0, %c0_i32 : i32, i32
  }
  func.func @transform_1(%arg0: i32, %arg1: i32) -> (i32, i32, i32) {
    %c0_i32 = arith.constant 0 : i32
    %c0_i32_0 = arith.constant 0 : i32
    %c0_i32_1 = arith.constant 0 : i32
    return %arg1, %c0_i32, %c0_i32_0 : i32, i32, i32
  }
  func.func @transform_2(%arg0: i32, %arg1: i32) -> (i32, i32, i32) {
    %c0_i32 = arith.constant 0 : i32
    %c0_i32_0 = arith.constant 0 : i32
    %c0_i32_1 = arith.constant 0 : i32
    return %arg1, %c0_i32, %c0_i32_0 : i32, i32, i32
  }
  func.func @transform_3(%arg0: i32, %arg1: i32) -> (i32, i32, i32) {
    %c0_i32 = arith.constant 0 : i32
    %c0_i32_0 = arith.constant 0 : i32
    %c0_i32_1 = arith.constant 0 : i32
    return %arg1, %c0_i32, %c0_i32_0 : i32, i32, i32
  }
  func.func @transform_4(%arg0: i32, %arg1: i32) -> (i32, i32, i32) {
    %c0_i32 = arith.constant 0 : i32
    %c0_i32_0 = arith.constant 0 : i32
    %c0_i32_1 = arith.constant 0 : i32
    return %arg1, %c0_i32, %c0_i32_0 : i32, i32, i32
  }
  func.func @transform_5(%arg0: i32, %arg1: i32) -> (i32, i32, i32) {
    %c0_i32 = arith.constant 0 : i32
    %c0_i32_0 = arith.constant 0 : i32
    %c0_i32_1 = arith.constant 0 : i32
    return %arg1, %c0_i32, %c0_i32_0 : i32, i32, i32
  }
  func.func @transform_6(%arg0: i32, %arg1: i32) -> (i32, i32, i32) {
    %c0_i32 = arith.constant 0 : i32
    %c0_i32_0 = arith.constant 0 : i32
    %c0_i32_1 = arith.constant 0 : i32
    return %arg1, %c0_i32, %c0_i32_0 : i32, i32, i32
  }
  func.func @transform_7(%arg0: i32, %arg1: i32) -> (i32, i32, i32) {
    %c0_i32 = arith.constant 0 : i32
    %c0_i32_0 = arith.constant 0 : i32
    %c0_i32_1 = arith.constant 0 : i32
    return %arg1, %c0_i32, %c0_i32_0 : i32, i32, i32
  }
  func.func @transform_8(%arg0: i32, %arg1: i32) -> (i32, i32, i32) {
    %c0_i32 = arith.constant 0 : i32
    %c0_i32_0 = arith.constant 0 : i32
    %c0_i32_1 = arith.constant 0 : i32
    return %arg1, %c0_i32, %c0_i32_0 : i32, i32, i32
  }
  func.func @transform_9(%arg0: i32, %arg1: i32) -> (i32, i32, i32) {
    %c0_i32 = arith.constant 0 : i32
    %c0_i32_0 = arith.constant 0 : i32
    %c0_i32_1 = arith.constant 0 : i32
    return %arg1, %c0_i32, %c0_i32_0 : i32, i32, i32
  }
  func.func @transform_10(%arg0: i32, %arg1: i32) -> (i32, i32, i32) {
    %c0_i32 = arith.constant 0 : i32
    %c0_i32_0 = arith.constant 0 : i32
    %c0_i32_1 = arith.constant 0 : i32
    return %arg1, %c0_i32, %c0_i32_0 : i32, i32, i32
  }
  func.func @transform_11(%arg0: i32, %arg1: i32) -> (i32, i32, i32) {
    %c0_i32 = arith.constant 0 : i32
    %c0_i32_0 = arith.constant 0 : i32
    %c0_i32_1 = arith.constant 0 : i32
    return %arg1, %c0_i32, %c0_i32_0 : i32, i32, i32
  }
  func.func @transform_12(%arg0: i32, %arg1: i32) -> (i32, i32, i32) {
    %c0_i32 = arith.constant 0 : i32
    %c0_i32_0 = arith.constant 0 : i32
    %c0_i32_1 = arith.constant 0 : i32
    return %arg1, %c0_i32, %c0_i32_0 : i32, i32, i32
  }
  func.func @transform_13(%arg0: i32, %arg1: i32) -> (i32, i32) {
    %c0_i32 = arith.constant 0 : i32
    %c0_i32_0 = arith.constant 0 : i32
    return %arg0, %c0_i32 : i32, i32
  }
}

</mosaic_0001>

<llo_original>
// kernel: lm_model_transformer_forward.3
$region0: #{lm_model_transformer_forward.3}
  #allocation0 [shape = 'u32[]', space=smem, size = 0x4, offset = 0x4, fixed_abs, tag = 'smem constant byte address 0x4 - core index']
  #allocation1 [shape = 'u32[72,128]{1,0:T(1,128)}', space=vmem, size = 0x9000, scoped, tag = 'internal scratch']
  #allocation2 [shape = 'f32[16,256]{1,0:T(8,128)}', space=vmem, size = 0x4000, scoped, tag = 'scratch operand']
  %s0 = inlined_call_operand.vmem [shape: bf16[16,128], index: 0, kind: input, shape index: {}]
  %s1 = inlined_call_operand.hbm [shape: bf16[128,256], index: 1, kind: input, shape index: {}]
  %s2 = inlined_call_operand.vmem [shape: f32[1,256], index: 2, kind: input, shape index: {}]
  %s3 = inlined_call_operand.hbm [shape: f32[16,256], index: 3, kind: output, shape index: {}]
  %s4 = sld [smem:[#allocation0]]
  $region34: #{lm_model_transformer_forward.3} parent=0
    _
  %s6 = ssub.s32 1, %s4
  %s7 = scalar_select 0, %s6, %s4
  $region1: #{lm_model_transformer_forward.3} parent=0
    #allocation3 [shape = 'u8[65536]{0}', space=vmem, size = 0x10000, scoped, tag = 'input window, operand 1, single buffered']
    #allocation4 [shape = 's32[1]{0}', space=sflag, size = 0x4, scoped, tag = 'scoped memory for lm_model_transformer_forward.3']
    #allocation5 [shape = 's32[1]{0}', space=sflag, size = 0x4, scoped, tag = 'scoped memory for lm_model_transformer_forward.3']
    #allocation6 [shape = 'u8[16384]{0}', space=vmem, size = 0x4000, scoped, tag = 'output window, operand 0, single buffered']
    %8 = vsyncpa [#allocation4], 0
    %9 = vsyncpa [#allocation5], 0
    // Predicated region
    $region2: #{lm_model_transformer_forward.3} parent=1 // pred_check
      _
    $region3: #{lm_model_transformer_forward.3} parent=1 // pred_check_branch
      %11 = sbr.rel (0) target = $region5
    $region4: #{lm_model_transformer_forward.3} parent=1 // pred_region
      _
    $region5: #{lm_model_transformer_forward.3} parent=1 // pred_fallthru
      _
    // Predicated region
    $region6: #{lm_model_transformer_forward.3} parent=1 // pred_check
      _
    $region7: #{lm_model_transformer_forward.3} parent=1 // pred_check_branch
      %13 = sbr.rel (0) target = $region9
    $region8: #{lm_model_transformer_forward.3} parent=1 // pred_region
      %15 = vsyncadd [#allocation4], 0
      %s16 = sshll.u32 %s1, 4
      %s17 = int_to_ptr.hbm [resolvable:$true] %s16
      %s18 = sshll.u32 [#allocation3], 4
      %s19 = int_to_ptr.vmem [resolvable:$true] %s18
      %24 = dma.hbm_to_vmem [thread:$0]  %s17, 2048, %s19, [#allocation4], 128, 128, 8
    $region9: #{lm_model_transformer_forward.3} parent=1 // pred_fallthru
      _
    // Predicated region
    $region10: #{lm_model_transformer_forward.3} parent=1 // pred_check
      _
    $region11: #{lm_model_transformer_forward.3} parent=1 // pred_check_branch
      %26 = sbr.rel (0) target = $region13
    $region12: #{lm_model_transformer_forward.3} parent=1 // pred_region
      _
    $region13: #{lm_model_transformer_forward.3} parent=1 // pred_fallthru
      _
    // Predicated region
    $region14: #{lm_model_transformer_forward.3} parent=1 // pred_check
      _
    $region15: #{lm_model_transformer_forward.3} parent=1 // pred_check_branch
      %28 = sbr.rel (0) target = $region17
    $region16: #{lm_model_transformer_forward.3} parent=1 // pred_region
      %30 = dma.done [#allocation4], 2048
    $region17: #{lm_model_transformer_forward.3} parent=1 // pred_fallthru
      _
    %p31 = scmp.eq.s32.totalorder 0, 0
    // Predicated region
    $region18: #{lm_model_transformer_forward.3} parent=1 // pred_check
      %p32 = pneg %p31
    $region19: #{lm_model_transformer_forward.3} parent=1 // pred_check_branch
      %34 = sbr.rel (%p32) target = $region21
    $region20: #{lm_model_transformer_forward.3} parent=1 // pred_region
      %35 = vst [vmem:[#allocation2] sm:$0xff] 0.0
      %36 = vst [vmem:[#allocation2 + $0x8] sm:$0xff] 0.0
      %37 = vst [vmem:[#allocation2 + $0x10] sm:$0xff] 0.0
      %38 = vst [vmem:[#allocation2 + $0x18] sm:$0xff] 0.0
    $region21: #{lm_model_transformer_forward.3} parent=1 // pred_fallthru
      _
    %v39 = vld [vmem:[#allocation2] sm:$0xff]
    %v40 = vld [vmem:[#allocation2 + $0x8] sm:$0xff]
    %v41 = vld [vmem:[#allocation2 + $0x10] sm:$0xff]
    %v42 = vld [vmem:[#allocation2 + $0x18] sm:$0xff]
    %v43 = vld [vmem:[%s0] sm:$0xf]
    %v44 = vld [vmem:[%s0 + $0x4] sm:$0xf]
    %v45 = vld [vmem:[#allocation3] sm:$0xff]
    %v46 = vld [vmem:[#allocation3 + $0x8] sm:$0xff]
    %v47 = vld [vmem:[#allocation3 + $0x10] sm:$0xff]
    %v48 = vld [vmem:[#allocation3 + $0x18] sm:$0xff]
    %v49 = vld [vmem:[#allocation3 + $0x20] sm:$0xff]
    %v50 = vld [vmem:[#allocation3 + $0x28] sm:$0xff]
    %v51 = vld [vmem:[#allocation3 + $0x30] sm:$0xff]
    %v52 = vld [vmem:[#allocation3 + $0x38] sm:$0xff]
    %v53 = vld [vmem:[#allocation3 + $0x40] sm:$0xff]
    %v54 = vld [vmem:[#allocation3 + $0x48] sm:$0xff]
    %v55 = vld [vmem:[#allocation3 + $0x50] sm:$0xff]
    %v56 = vld [vmem:[#allocation3 + $0x58] sm:$0xff]
    %v57 = vld [vmem:[#allocation3 + $0x60] sm:$0xff]
    %v58 = vld [vmem:[#allocation3 + $0x68] sm:$0xff]
    %v59 = vld [vmem:[#allocation3 + $0x70] sm:$0xff]
    %v60 = vld [vmem:[#allocation3 + $0x78] sm:$0xff]
    %v63 = vunpack.c.l.b16 %v43
    %v64 = vunpack.c.l.b16 %v44
    %v65 = vpack.c.b16 %v64, %v63
    %v83 = vunpack.c.l.b16 %v45
    %v84 = vunpack.c.h.b16 %v45
    %v85 = vunpack.c.l.b16 %v46
    %v86 = vunpack.c.h.b16 %v46
    %v87 = vunpack.c.l.b16 %v47
    %v88 = vunpack.c.h.b16 %v47
    %v89 = vunpack.c.l.b16 %v48
    %v90 = vunpack.c.h.b16 %v48
    %v91 = vunpack.c.l.b16 %v49
    %v92 = vunpack.c.h.b16 %v49
    %v93 = vunpack.c.l.b16 %v50
    %v94 = vunpack.c.h.b16 %v50
    %v95 = vunpack.c.l.b16 %v51
    %v96 = vunpack.c.h.b16 %v51
    %v97 = vunpack.c.l.b16 %v52
    %v98 = vunpack.c.h.b16 %v52
    %v99 = vunpack.c.l.b16 %v53
    %v100 = vunpack.c.h.b16 %v53
    %v101 = vunpack.c.l.b16 %v54
    %v102 = vunpack.c.h.b16 %v54
    %v103 = vunpack.c.l.b16 %v55
    %v104 = vunpack.c.h.b16 %v55
    %v105 = vunpack.c.l.b16 %v56
    %v106 = vunpack.c.h.b16 %v56
    %v107 = vunpack.c.l.b16 %v57
    %v108 = vunpack.c.h.b16 %v57
    %v109 = vunpack.c.l.b16 %v58
    %v110 = vunpack.c.h.b16 %v58
    %v111 = vunpack.c.l.b16 %v59
    %v112 = vunpack.c.h.b16 %v59
    %v113 = vunpack.c.l.b16 %v60
    %v114 = vunpack.c.h.b16 %v60
    %v115 = vpack.c.b16 %v85, %v83
    %v116 = vpack.c.b16 %v86, %v84
    %v117 = vpack.c.b16 %v89, %v87
    %v118 = vpack.c.b16 %v90, %v88
    %v119 = vpack.c.b16 %v93, %v91
    %v120 = vpack.c.b16 %v94, %v92
    %v121 = vpack.c.b16 %v97, %v95
    %v122 = vpack.c.b16 %v98, %v96
    %v123 = vpack.c.b16 %v101, %v99
    %v124 = vpack.c.b16 %v102, %v100
    %v125 = vpack.c.b16 %v105, %v103
    %v126 = vpack.c.b16 %v106, %v104
    %v127 = vpack.c.b16 %v109, %v107
    %v128 = vpack.c.b16 %v110, %v108
    %v129 = vpack.c.b16 %v113, %v111
    %v130 = vpack.c.b16 %v114, %v112
    %147 = vmatpush.bf16.msra.mxu0 %v129
    %148 = vmatpush.bf16.msra.mxu0 %v127
    %149 = vmatpush.bf16.msra.mxu0 %v125
    %150 = vmatpush.bf16.msra.mxu0 %v123
    %151 = vmatpush.bf16.msra.mxu0 %v121
    %152 = vmatpush.bf16.msra.mxu0 %v119
    %153 = vmatpush.bf16.msra.mxu0 %v117
    %154 = vmatpush.bf16.msra.mxu0 %v115
    %155 = vmatmul.bf16.gmra.mxu0 %v65
    %v156 = vpop.f32.mrf.mxu0
    %v157 = vadd.f32 0.0, %v156
    %v158 = vpop.f32.mrf.mxu0
    %v159 = vadd.f32 0.0, %v158
    %160 = vdwg.mxu0
    %161 = vmatpush.bf16.msra.mxu0 %v130
    %162 = vmatpush.bf16.msra.mxu0 %v128
    %163 = vmatpush.bf16.msra.mxu0 %v126
    %164 = vmatpush.bf16.msra.mxu0 %v124
    %165 = vmatpush.bf16.msra.mxu0 %v122
    %166 = vmatpush.bf16.msra.mxu0 %v120
    %167 = vmatpush.bf16.msra.mxu0 %v118
    %168 = vmatpush.bf16.msra.mxu0 %v116
    %169 = vmatmul.bf16.gmra.mxu0 %v65
    %v170 = vpop.f32.mrf.mxu0
    %v171 = vadd.f32 0.0, %v170
    %v172 = vpop.f32.mrf.mxu0
    %v173 = vadd.f32 0.0, %v172
    %174 = vdwg.mxu0
    %v175 = vadd.f32 %v39, %v157
    %v176 = vadd.f32 %v40, %v171
    %v177 = vadd.f32 %v41, %v159
    %v178 = vadd.f32 %v42, %v173
    %179 = vst [vmem:[#allocation2] sm:$0xff] %v175
    %180 = vst [vmem:[#allocation2 + $0x8] sm:$0xff] %v176
    %181 = vst [vmem:[#allocation2 + $0x10] sm:$0xff] %v177
    %182 = vst [vmem:[#allocation2 + $0x18] sm:$0xff] %v178
    // Predicated region
    $region22: #{lm_model_transformer_forward.3} parent=1 // pred_check
      %p183 = pneg %p31
    $region23: #{lm_model_transformer_forward.3} parent=1 // pred_check_branch
      %185 = sbr.rel (%p183) target = $region25
    $region24: #{lm_model_transformer_forward.3} parent=1 // pred_region
      %v186 = vld [vmem:[#allocation2] sm:$0xff]
      %v187 = vld [vmem:[#allocation2 + $0x8] sm:$0xff]
      %v188 = vld [vmem:[#allocation2 + $0x10] sm:$0xff]
      %v189 = vld [vmem:[#allocation2 + $0x18] sm:$0xff]
      %v190 = vld [vmem:[%s2] sm:$0x3]
      %v192 = vperm.slane %v190, 0
      %v193 = vperm.slane %v190, 1
      %v196 = vadd.f32 %v186, %v192
      %v197 = vadd.f32 %v187, %v193
      %v198 = vadd.f32 %v188, %v192
      %v199 = vadd.f32 %v189, %v193
      %200 = vst [vmem:[#allocation6] sm:$0xff] %v196
      %201 = vst [vmem:[#allocation6 + $0x8] sm:$0xff] %v197
      %202 = vst [vmem:[#allocation6 + $0x10] sm:$0xff] %v198
      %203 = vst [vmem:[#allocation6 + $0x18] sm:$0xff] %v199
    $region25: #{lm_model_transformer_forward.3} parent=1 // pred_fallthru
      _
    // Predicated region
    $region26: #{lm_model_transformer_forward.3} parent=1 // pred_check
      _
    $region27: #{lm_model_transformer_forward.3} parent=1 // pred_check_branch
      %205 = sbr.rel (0) target = $region29
    $region28: #{lm_model_transformer_forward.3} parent=1 // pred_region
      %207 = vsyncadd [#allocation5], 0
      %s208 = sshll.u32 [#allocation6], 4
      %s209 = int_to_ptr.vmem [resolvable:$true] %s208
      %s210 = sshll.u32 %s3, 4
      %s211 = int_to_ptr.hbm [resolvable:$true] %s210
      %216 = dma.vmem_to_hbm [thread:$0]  %s209, 512, %s211, [#allocation5], 256, 256, 16
    $region29: #{lm_model_transformer_forward.3} parent=1 // pred_fallthru
      _
    // Predicated region
    $region30: #{lm_model_transformer_forward.3} parent=1 // pred_check
      _
    $region31: #{lm_model_transformer_forward.3} parent=1 // pred_check_branch
      %218 = sbr.rel (0) target = $region33
    $region32: #{lm_model_transformer_forward.3} parent=1 // pred_region
      %220 = dma.done [#allocation5], 512
    $region33: #{lm_model_transformer_forward.3} parent=1 // pred_fallthru
      _
    %221 = vsyncpa [#allocation4], 1
    %222 = vsyncpa [#allocation5], 1

// kernel: lm_model_transformer_forward.2
$region0: #{lm_model_transformer_forward.2}
  #allocation0 [shape = 'u32[]', space=smem, size = 0x4, offset = 0x4, fixed_abs, tag = 'smem constant byte address 0x4 - core index']
  #allocation1 [shape = 'u32[72,128]{1,0:T(1,128)}', space=vmem, size = 0x9000, scoped, tag = 'internal scratch']
  #allocation2 [shape = 'f32[8,8]{1,0:T(8,128)}', space=vmem, size = 0x1000, scoped, tag = 'scratch operand']
  %s0 = inlined_call_operand.vmem [shape: bf16[16,128], index: 0, kind: input, shape index: {}]
  %s1 = inlined_call_operand.vmem [shape: bf16[2,128,384], index: 1, kind: input, shape index: {}]
  %s2 = inlined_call_operand.vmem [shape: f32[2,1,384], index: 2, kind: input, shape index: {}]
  %s3 = inlined_call_operand.vmem [shape: bf16[2,128,128], index: 3, kind: input, shape index: {}]
  %s4 = inlined_call_operand.vmem [shape: f32[2,1,128], index: 4, kind: input, shape index: {}]
  %s5 = inlined_call_operand.vmem [shape: f32[2,1,128], index: 5, kind: input, shape index: {}]
  %s6 = inlined_call_operand.vmem [shape: f32[2,1,128], index: 6, kind: input, shape index: {}]
  %s7 = inlined_call_operand.hbm [shape: bf16[2,128,512], index: 7, kind: input, shape index: {}]
  %s8 = inlined_call_operand.vmem [shape: f32[2,1,512], index: 8, kind: input, shape index: {}]
  %s9 = inlined_call_operand.hbm [shape: bf16[2,512,128], index: 9, kind: input, shape index: {}]
  %s10 = inlined_call_operand.vmem [shape: f32[2,1,128], index: 10, kind: input, shape index: {}]
  %s11 = inlined_call_operand.vmem [shape: f32[2,1,128], index: 11, kind: input, shape index: {}]
  %s12 = inlined_call_operand.vmem [shape: f32[2,1,128], index: 12, kind: input, shape index: {}]
  %s13 = inlined_call_operand.vmem [shape: bf16[16,128], index: 13, kind: output, shape index: {}]
  %s14 = sld [smem:[#allocation0]]
  $region97: #{lm_model_transformer_forward.2} parent=0
    _
  %s16 = ssub.s32 1, %s14
  %s17 = scalar_select 0, %s16, %s14
  $region1: #{lm_model_transformer_forward.2} parent=0
    #allocation3 [shape = 'u8[262144]{0}', space=vmem, size = 0x40000, scoped, tag = 'input window, operand 7']
    #allocation4 [shape = 's32[2]{0}', space=sflag, size = 0x8, scoped, tag = 'scoped memory for lm_model_transformer_forward.2']
    #allocation5 [shape = 'u8[262144]{0}', space=vmem, size = 0x40000, scoped, tag = 'input window, operand 9']
    #allocation6 [shape = 's32[2]{0}', space=sflag, size = 0x8, scoped, tag = 'scoped memory for lm_model_transformer_forward.2']
    %18 = vsyncpa [#allocation4], 0
    %s19 = scalar_lea.sflag [#allocation4], 1
    %20 = vsyncpa %s19, 0
    %21 = vsyncpa [#allocation6], 0
    %s22 = scalar_lea.sflag [#allocation6], 1
    %23 = vsyncpa %s22, 0
    loop: start=0, step=1, limit=6
    $region2: #{lm_model_transformer_forward.2} parent=1 // loop_pre_header
      _
    $region3: #{lm_model_transformer_forward.2} parent=1 // loop_header
      %s25 = sphi 0, %s29
      %p26 = scmp.ge.s32.totalorder %s25, 6
      %s32 = sphi 0, %s44
      %s33 = sphi 0, %s40
      %s34 = sphi 0, %s32
      %s35 = sphi 0, %s33
      %s36 = sphi 0, %s34
      %s37 = sphi 0, %s35
      %s47 = sphi 0, %s49
      %s50 = sphi 0, %s47
      %s51 = sphi 0, %s50
      %s67 = sphi 0, %s51
      %s73 = sphi 0, %s75
      %s76 = sphi 0, %s73
      %s77 = sphi 0, %s76
      %s93 = sphi 0, %s77
      %s99 = sphi 0, %s101
      %s102 = sphi 0, %s99
      %s103 = sphi 0, %s102
      %s119 = sphi 0, %s103
      %s125 = sphi 0, %s127
      %s128 = sphi 0, %s125
      %s129 = sphi 0, %s128
      %s145 = sphi 0, %s129
      %s151 = sphi 0, %s153
      %s154 = sphi 0, %s151
      %s155 = sphi 0, %s154
      %s171 = sphi 0, %s155
      %s177 = sphi 0, %s179
      %s180 = sphi 0, %s177
      %s181 = sphi 0, %s180
      %s197 = sphi 0, %s181
      %s203 = sphi 0, %s205
      %s206 = sphi 0, %s203
      %s207 = sphi 0, %s206
      %s223 = sphi 0, %s207
      %s229 = sphi 0, %s231
      %s232 = sphi 0, %s229
      %s233 = sphi 0, %s232
      %s249 = sphi 0, %s233
      %s255 = sphi 0, %s257
      %s258 = sphi 0, %s255
      %s259 = sphi 0, %s258
      %s275 = sphi 0, %s259
      %s281 = sphi 0, %s283
      %s284 = sphi 0, %s281
      %s285 = sphi 0, %s284
      %s301 = sphi 0, %s285
      %s307 = sphi 0, %s309
      %s310 = sphi 0, %s307
      %s311 = sphi 0, %s310
      %s327 = sphi 0, %s311
      %s333 = sphi 0, %s335
      %s336 = sphi 0, %s333
      %s337 = sphi 0, %s336
      %s353 = sphi 0, %s337
      %s359 = sphi 0, %s361
      %s362 = sphi 0, %s359
      %s363 = sphi 0, %s362
      %s379 = sphi 0, %s363
      %s385 = sphi 0, %s387
      %s388 = sphi 0, %s385
      %s389 = sphi 0, %s388
      %s405 = sphi 0, %s389
    $region4: #{lm_model_transformer_forward.2} parent=1 // loop_header_branch
      %28 = sbr.rel (%p26) target = $region8
    $region5: #{lm_model_transformer_forward.2} parent=1 // loop_body
      %s30 = ssub.s32 %s25, 1
      %s31 = ssub.s32 %s25, 2
      %s38 = sadd.s32 1, %s33
      %p39 = scmp.ge.s32.totalorder %s38, 2
      %s40 = scalar_select %p39, 0, %s38
      %s41 = sadd.s32 1, %s32
      %s42 = scalar_select %p39, %s41, %s32
      %p43 = scmp.ge.s32.totalorder %s42, 2
      %s44 = scalar_select %p43, 0, %s42
      %s45 = ssub.s32 %s32, %s44
      %p46 = scmp.eq.s32.totalorder %s45, 0
      %s48 = sadd.s32 %s47, 1
      %s49 = scalar_select %p46, %s47, %s48
      %p52 = pneg %p46
      %p53 = scmp.eq.s32.totalorder %s25, 3
      %p54 = por %p52, %p53
      %p55 = scmp.ne.s32.totalorder %s47, %s50
      %p56 = scmp.eq.s32.totalorder %s25, 0
      %p57 = por %p55, %p56
      %p58 = scmp.ne.s32.totalorder %s47, %s50
      %p59 = scmp.eq.s32.totalorder %s30, 3
      %p60 = por %p58, %p59
      %p61 = scmp.ne.s32.totalorder %s50, %s51
      %p62 = scmp.eq.s32.totalorder %s30, 0
      %p63 = por %p61, %p62
      %p64 = scmp.ne.s32.totalorder %s50, %s51
      %p65 = scmp.eq.s32.totalorder %s31, 3
      %p66 = por %p64, %p65
      %p68 = scmp.ne.s32.totalorder %s51, %s67
      %p69 = scmp.eq.s32.totalorder %s31, 0
      %p70 = por %p68, %p69
      %s71 = ssub.s32 %s33, %s40
      %p72 = scmp.eq.s32.totalorder %s71, 0
      %s74 = sadd.s32 %s73, 1
      %s75 = scalar_select %p72, %s73, %s74
      %p78 = pneg %p72
      %p79 = scmp.eq.s32.totalorder %s25, 3
      %p80 = por %p78, %p79
      %p81 = scmp.ne.s32.totalorder %s73, %s76
      %p82 = scmp.eq.s32.totalorder %s25, 0
      %p83 = por %p81, %p82
      %p84 = scmp.ne.s32.totalorder %s73, %s76
      %p85 = scmp.eq.s32.totalorder %s30, 3
      %p86 = por %p84, %p85
      %p87 = scmp.ne.s32.totalorder %s76, %s77
      %p88 = scmp.eq.s32.totalorder %s30, 0
      %p89 = por %p87, %p88
      %p90 = scmp.ne.s32.totalorder %s76, %s77
      %p91 = scmp.eq.s32.totalorder %s31, 3
      %p92 = por %p90, %p91
      %p94 = scmp.ne.s32.totalorder %s77, %s93
      %p95 = scmp.eq.s32.totalorder %s31, 0
      %p96 = por %p94, %p95
      %s97 = ssub.s32 %s33, %s40
      %p98 = scmp.eq.s32.totalorder %s97, 0
      %s100 = sadd.s32 %s99, 1
      %s101 = scalar_select %p98, %s99, %s100
      %p104 = pneg %p98
      %p105 = scmp.eq.s32.totalorder %s25, 3
      %p106 = por %p104, %p105
      %p107 = scmp.ne.s32.totalorder %s99, %s102
      %p108 = scmp.eq.s32.totalorder %s25, 0
      %p109 = por %p107, %p108
      %p110 = scmp.ne.s32.totalorder %s99, %s102
      %p111 = scmp.eq.s32.totalorder %s30, 3
      %p112 = por %p110, %p111
      %p113 = scmp.ne.s32.totalorder %s102, %s103
      %p114 = scmp.eq.s32.totalorder %s30, 0
      %p115 = por %p113, %p114
      %p116 = scmp.ne.s32.totalorder %s102, %s103
      %p117 = scmp.eq.s32.totalorder %s31, 3
      %p118 = por %p116, %p117
      %p120 = scmp.ne.s32.totalorder %s103, %s119
      %p121 = scmp.eq.s32.totalorder %s31, 0
      %p122 = por %p120, %p121
      %s123 = ssub.s32 %s33, %s40
      %p124 = scmp.eq.s32.totalorder %s123, 0
      %s126 = sadd.s32 %s125, 1
      %s127 = scalar_select %p124, %s125, %s126
      %p130 = pneg %p124
      %p131 = scmp.eq.s32.totalorder %s25, 3
      %p132 = por %p130, %p131
      %p133 = scmp.ne.s32.totalorder %s125, %s128
      %p134 = scmp.eq.s32.totalorder %s25, 0
      %p135 = por %p133, %p134
      %p136 = scmp.ne.s32.totalorder %s125, %s128
      %p137 = scmp.eq.s32.totalorder %s30, 3
      %p138 = por %p136, %p137
      %p139 = scmp.ne.s32.totalorder %s128, %s129
      %p140 = scmp.eq.s32.totalorder %s30, 0
      %p141 = por %p139, %p140
      %p142 = scmp.ne.s32.totalorder %s128, %s129
      %p143 = scmp.eq.s32.totalorder %s31, 3
      %p144 = por %p142, %p143
      %p146 = scmp.ne.s32.totalorder %s129, %s145
      %p147 = scmp.eq.s32.totalorder %s31, 0
      %p148 = por %p146, %p147
      %s149 = ssub.s32 %s33, %s40
      %p150 = scmp.eq.s32.totalorder %s149, 0
      %s152 = sadd.s32 %s151, 1
      %s153 = scalar_select %p150, %s151, %s152
      %p156 = pneg %p150
      %p157 = scmp.eq.s32.totalorder %s25, 3
      %p158 = por %p156, %p157
      %p159 = scmp.ne.s32.totalorder %s151, %s154
      %p160 = scmp.eq.s32.totalorder %s25, 0
      %p161 = por %p159, %p160
      %p162 = scmp.ne.s32.totalorder %s151, %s154
      %p163 = scmp.eq.s32.totalorder %s30, 3
      %p164 = por %p162, %p163
      %p165 = scmp.ne.s32.totalorder %s154, %s155
      %p166 = scmp.eq.s32.totalorder %s30, 0
      %p167 = por %p165, %p166
      %p168 = scmp.ne.s32.totalorder %s154, %s155
      %p169 = scmp.eq.s32.totalorder %s31, 3
      %p170 = por %p168, %p169
      %p172 = scmp.ne.s32.totalorder %s155, %s171
      %p173 = scmp.eq.s32.totalorder %s31, 0
      %p174 = por %p172, %p173
      %s175 = ssub.s32 %s33, %s40
      %p176 = scmp.eq.s32.totalorder %s175, 0
      %s178 = sadd.s32 %s177, 1
      %s179 = scalar_select %p176, %s177, %s178
      %p182 = pneg %p176
      %p183 = scmp.eq.s32.totalorder %s25, 3
      %p184 = por %p182, %p183
      %p185 = scmp.ne.s32.totalorder %s177, %s180
      %p186 = scmp.eq.s32.totalorder %s25, 0
      %p187 = por %p185, %p186
      %p188 = scmp.ne.s32.totalorder %s177, %s180
      %p189 = scmp.eq.s32.totalorder %s30, 3
      %p190 = por %p188, %p189
      %p191 = scmp.ne.s32.totalorder %s180, %s181
      %p192 = scmp.eq.s32.totalorder %s30, 0
      %p193 = por %p191, %p192
      %p194 = scmp.ne.s32.totalorder %s180, %s181
      %p195 = scmp.eq.s32.totalorder %s31, 3
      %p196 = por %p194, %p195
      %p198 = scmp.ne.s32.totalorder %s181, %s197
      %p199 = scmp.eq.s32.totalorder %s31, 0
      %p200 = por %p198, %p199
      %s201 = ssub.s32 %s33, %s40
      %p202 = scmp.eq.s32.totalorder %s201, 0
      %s204 = sadd.s32 %s203, 1
      %s205 = scalar_select %p202, %s203, %s204
      %p208 = pneg %p202
      %p209 = scmp.eq.s32.totalorder %s25, 3
      %p210 = por %p208, %p209
      %p211 = scmp.ne.s32.totalorder %s203, %s206
      %p212 = scmp.eq.s32.totalorder %s25, 0
      %p213 = por %p211, %p212
      %p214 = scmp.ne.s32.totalorder %s203, %s206
      %p215 = scmp.eq.s32.totalorder %s30, 3
      %p216 = por %p214, %p215
      %p217 = scmp.ne.s32.totalorder %s206, %s207
      %p218 = scmp.eq.s32.totalorder %s30, 0
      %p219 = por %p217, %p218
      %p220 = scmp.ne.s32.totalorder %s206, %s207
      %p221 = scmp.eq.s32.totalorder %s31, 3
      %p222 = por %p220, %p221
      %p224 = scmp.ne.s32.totalorder %s207, %s223
      %p225 = scmp.eq.s32.totalorder %s31, 0
      %p226 = por %p224, %p225
      %s227 = ssub.s32 %s33, %s40
      %p228 = scmp.eq.s32.totalorder %s227, 0
      %s230 = sadd.s32 %s229, 1
      %s231 = scalar_select %p228, %s229, %s230
      %p234 = pneg %p228
      %p235 = scmp.eq.s32.totalorder %s25, 3
      %p236 = por %p234, %p235
      %p237 = scmp.ne.s32.totalorder %s229, %s232
      %p238 = scmp.eq.s32.totalorder %s25, 0
      %p239 = por %p237, %p238
      %p240 = scmp.ne.s32.totalorder %s229, %s232
      %p241 = scmp.eq.s32.totalorder %s30, 3
      %p242 = por %p240, %p241
      %p243 = scmp.ne.s32.totalorder %s232, %s233
      %p244 = scmp.eq.s32.totalorder %s30, 0
      %p245 = por %p243, %p244
      %p246 = scmp.ne.s32.totalorder %s232, %s233
      %p247 = scmp.eq.s32.totalorder %s31, 3
      %p248 = por %p246, %p247
      %p250 = scmp.ne.s32.totalorder %s233, %s249
      %p251 = scmp.eq.s32.totalorder %s31, 0
      %p252 = por %p250, %p251
      %s253 = ssub.s32 %s33, %s40
      %p254 = scmp.eq.s32.totalorder %s253, 0
      %s256 = sadd.s32 %s255, 1
      %s257 = scalar_select %p254, %s255, %s256
      %p260 = pneg %p254
      %p261 = scmp.eq.s32.totalorder %s25, 3
      %p262 = por %p260, %p261
      %p263 = scmp.ne.s32.totalorder %s255, %s258
      %p264 = scmp.eq.s32.totalorder %s25, 0
      %p265 = por %p263, %p264
      %p266 = scmp.ne.s32.totalorder %s255, %s258
      %p267 = scmp.eq.s32.totalorder %s30, 3
      %p268 = por %p266, %p267
      %p269 = scmp.ne.s32.totalorder %s258, %s259
      %p270 = scmp.eq.s32.totalorder %s30, 0
      %p271 = por %p269, %p270
      %p272 = scmp.ne.s32.totalorder %s258, %s259
      %p273 = scmp.eq.s32.totalorder %s31, 3
      %p274 = por %p272, %p273
      %p276 = scmp.ne.s32.totalorder %s259, %s275
      %p277 = scmp.eq.s32.totalorder %s31, 0
      %p278 = por %p276, %p277
      %s279 = ssub.s32 %s33, %s40
      %p280 = scmp.eq.s32.totalorder %s279, 0
      %s282 = sadd.s32 %s281, 1
      %s283 = scalar_select %p280, %s281, %s282
      %p286 = pneg %p280
      %p287 = scmp.eq.s32.totalorder %s25, 3
      %p288 = por %p286, %p287
      %p289 = scmp.ne.s32.totalorder %s281, %s284
      %p290 = scmp.eq.s32.totalorder %s25, 0
      %p291 = por %p289, %p290
      %p292 = scmp.ne.s32.totalorder %s281, %s284
      %p293 = scmp.eq.s32.totalorder %s30, 3
      %p294 = por %p292, %p293
      %p295 = scmp.ne.s32.totalorder %s284, %s285
      %p296 = scmp.eq.s32.totalorder %s30, 0
      %p297 = por %p295, %p296
      %p298 = scmp.ne.s32.totalorder %s284, %s285
      %p299 = scmp.eq.s32.totalorder %s31, 3
      %p300 = por %p298, %p299
      %p302 = scmp.ne.s32.totalorder %s285, %s301
      %p303 = scmp.eq.s32.totalorder %s31, 0
      %p304 = por %p302, %p303
      %s305 = ssub.s32 %s33, %s40
      %p306 = scmp.eq.s32.totalorder %s305, 0
      %s308 = sadd.s32 %s307, 1
      %s309 = scalar_select %p306, %s307, %s308
      %p312 = pneg %p306
      %p313 = scmp.eq.s32.totalorder %s25, 3
      %p314 = por %p312, %p313
      %p315 = scmp.ne.s32.totalorder %s307, %s310
      %p316 = scmp.eq.s32.totalorder %s25, 0
      %p317 = por %p315, %p316
      %p318 = scmp.ne.s32.totalorder %s307, %s310
      %p319 = scmp.eq.s32.totalorder %s30, 3
      %p320 = por %p318, %p319
      %p321 = scmp.ne.s32.totalorder %s310, %s311
      %p322 = scmp.eq.s32.totalorder %s30, 0
      %p323 = por %p321, %p322
      %p324 = scmp.ne.s32.totalorder %s310, %s311
      %p325 = scmp.eq.s32.totalorder %s31, 3
      %p326 = por %p324, %p325
      %p328 = scmp.ne.s32.totalorder %s311, %s327
      %p329 = scmp.eq.s32.totalorder %s31, 0
      %p330 = por %p328, %p329
      %s331 = ssub.s32 %s33, %s40
      %p332 = scmp.eq.s32.totalorder %s331, 0
      %s334 = sadd.s32 %s333, 1
      %s335 = scalar_select %p332, %s333, %s334
      %p338 = pneg %p332
      %p339 = scmp.eq.s32.totalorder %s25, 3
      %p340 = por %p338, %p339
      %p341 = scmp.ne.s32.totalorder %s333, %s336
      %p342 = scmp.eq.s32.totalorder %s25, 0
      %p343 = por %p341, %p342
      %p344 = scmp.ne.s32.totalorder %s333, %s336
      %p345 = scmp.eq.s32.totalorder %s30, 3
      %p346 = por %p344, %p345
      %p347 = scmp.ne.s32.totalorder %s336, %s337
      %p348 = scmp.eq.s32.totalorder %s30, 0
      %p349 = por %p347, %p348
      %p350 = scmp.ne.s32.totalorder %s336, %s337
      %p351 = scmp.eq.s32.totalorder %s31, 3
      %p352 = por %p350, %p351
      %p354 = scmp.ne.s32.totalorder %s337, %s353
      %p355 = scmp.eq.s32.totalorder %s31, 0
      %p356 = por %p354, %p355
      %s357 = ssub.s32 %s33, %s40
      %p358 = scmp.eq.s32.totalorder %s357, 0
      %s360 = sadd.s32 %s359, 1
      %s361 = scalar_select %p358, %s359, %s360
      %p364 = pneg %p358
      %p365 = scmp.eq.s32.totalorder %s25, 3
      %p366 = por %p364, %p365
      %p367 = scmp.ne.s32.totalorder %s359, %s362
      %p368 = scmp.eq.s32.totalorder %s25, 0
      %p369 = por %p367, %p368
      %p370 = scmp.ne.s32.totalorder %s359, %s362
      %p371 = scmp.eq.s32.totalorder %s30, 3
      %p372 = por %p370, %p371
      %p373 = scmp.ne.s32.totalorder %s362, %s363
      %p374 = scmp.eq.s32.totalorder %s30, 0
      %p375 = por %p373, %p374
      %p376 = scmp.ne.s32.totalorder %s362, %s363
      %p377 = scmp.eq.s32.totalorder %s31, 3
      %p378 = por %p376, %p377
      %p380 = scmp.ne.s32.totalorder %s363, %s379
      %p381 = scmp.eq.s32.totalorder %s31, 0
      %p382 = por %p380, %p381
      %s383 = ssub.s32 %s32, %s44
      %p384 = scmp.eq.s32.totalorder %s383, 0
      %s386 = sadd.s32 %s385, 1
      %s387 = scalar_select %p384, %s385, %s386
      %p390 = pneg %p384
      %p391 = scmp.eq.s32.totalorder %s25, 3
      %p392 = por %p390, %p391
      %p393 = scmp.ne.s32.totalorder %s385, %s388
      %p394 = scmp.eq.s32.totalorder %s25, 0
      %p395 = por %p393, %p394
      %p396 = scmp.ne.s32.totalorder %s385, %s388
      %p397 = scmp.eq.s32.totalorder %s30, 3
      %p398 = por %p396, %p397
      %p399 = scmp.ne.s32.totalorder %s388, %s389
      %p400 = scmp.eq.s32.totalorder %s30, 0
      %p401 = por %p399, %p400
      %p402 = scmp.ne.s32.totalorder %s388, %s389
      %p403 = scmp.eq.s32.totalorder %s31, 3
      %p404 = por %p402, %p403
      %p406 = scmp.ne.s32.totalorder %s389, %s405
      %p407 = scmp.eq.s32.totalorder %s31, 0
      %p408 = por %p406, %p407
      %p409 = scmp.le.s32.totalorder 1, %s25
      %p410 = scmp.lt.s32.totalorder %s25, 5
      %p411 = pnand %p409, %p410
      %p412 = pneg %p411
      // Predicated region
      $region9: #{lm_model_transformer_forward.2} parent=5 // pred_check
        _
      $region10: #{lm_model_transformer_forward.2} parent=5 // pred_check_branch
        %414 = sbr.rel (%p411) target = $region12
      $region11: #{lm_model_transformer_forward.2} parent=5 // pred_region
        %s415 = ssub.s32 %s25, 1
      $region12: #{lm_model_transformer_forward.2} parent=5 // pred_fallthru
        _
      %p416 = scmp.lt.s32.totalorder %s25, 4
      // Predicated region
      $region13: #{lm_model_transformer_forward.2} parent=5 // pred_check
        %p417 = pneg %p416
      $region14: #{lm_model_transformer_forward.2} parent=5 // pred_check_branch
        %419 = sbr.rel (%p417) target = $region16
      $region15: #{lm_model_transformer_forward.2} parent=5 // pred_region
        // Predicated region
        $region17: #{lm_model_transformer_forward.2} parent=15 // pred_check
          %p420 = pneg %p57
        $region18: #{lm_model_transformer_forward.2} parent=15 // pred_check_branch
          %422 = sbr.rel (%p420) target = $region20
        $region19: #{lm_model_transformer_forward.2} parent=15 // pred_region
          %p423 = scmp.lt.s32.totalorder %s32, 1
          %s424 = scalar_select %p423, %s32, 1
          %s425 = smul.addr %s424, 4
          %s426 = scalar_lea.vmem %s0, %s425
        $region20: #{lm_model_transformer_forward.2} parent=15 // pred_fallthru
          _
        // Predicated region
        $region21: #{lm_model_transformer_forward.2} parent=15 // pred_check
          %p427 = pneg %p83
        $region22: #{lm_model_transformer_forward.2} parent=15 // pred_check_branch
          %429 = sbr.rel (%p427) target = $region24
        $region23: #{lm_model_transformer_forward.2} parent=15 // pred_region
          %p430 = scmp.lt.s32.totalorder %s33, 1
          %s431 = scalar_select %p430, %s33, 1
          %s432 = smul.addr %s431, 48
          %s433 = smul.addr %s432, 4
          %s434 = scalar_lea.vmem %s1, %s433
        $region24: #{lm_model_transformer_forward.2} parent=15 // pred_fallthru
          _
        // Predicated region
        $region25: #{lm_model_transformer_forward.2} parent=15 // pred_check
          %p435 = pneg %p109
        $region26: #{lm_model_transformer_forward.2} parent=15 // pred_check_branch
          %437 = sbr.rel (%p435) target = $region28
        $region27: #{lm_model_transformer_forward.2} parent=15 // pred_region
          %p438 = scmp.lt.s32.totalorder %s33, 1
          %s439 = scalar_select %p438, %s33, 1
          %s440 = smul.addr %s439, 3
          %s441 = scalar_lea.vmem %s2, %s440
        $region28: #{lm_model_transformer_forward.2} parent=15 // pred_fallthru
          _
        // Predicated region
        $region29: #{lm_model_transformer_forward.2} parent=15 // pred_check
          %p442 = pneg %p135
        $region30: #{lm_model_transformer_forward.2} parent=15 // pred_check_branch
          %444 = sbr.rel (%p442) target = $region32
        $region31: #{lm_model_transformer_forward.2} parent=15 // pred_region
          %p445 = scmp.lt.s32.totalorder %s33, 1
          %s446 = scalar_select %p445, %s33, 1
          %s447 = smul.addr %s446, 16
          %s448 = smul.addr %s447, 4
          %s449 = scalar_lea.vmem %s3, %s448
        $region32: #{lm_model_transformer_forward.2} parent=15 // pred_fallthru
          _
        // Predicated region
        $region33: #{lm_model_transformer_forward.2} parent=15 // pred_check
          %p450 = pneg %p161
        $region34: #{lm_model_transformer_forward.2} parent=15 // pred_check_branch
          %452 = sbr.rel (%p450) target = $region36
        $region35: #{lm_model_transformer_forward.2} parent=15 // pred_region
          %p453 = scmp.lt.s32.totalorder %s33, 1
          %s454 = scalar_select %p453, %s33, 1
          %s455 = scalar_lea.vmem %s4, %s454
        $region36: #{lm_model_transformer_forward.2} parent=15 // pred_fallthru
          _
        // Predicated region
        $region37: #{lm_model_transformer_forward.2} parent=15 // pred_check
          %p456 = pneg %p187
        $region38: #{lm_model_transformer_forward.2} parent=15 // pred_check_branch
          %458 = sbr.rel (%p456) target = $region40
        $region39: #{lm_model_transformer_forward.2} parent=15 // pred_region
          %p459 = scmp.lt.s32.totalorder %s33, 1
          %s460 = scalar_select %p459, %s33, 1
          %s461 = scalar_lea.vmem %s5, %s460
        $region40: #{lm_model_transformer_forward.2} parent=15 // pred_fallthru
          _
        // Predicated region
        $region41: #{lm_model_transformer_forward.2} parent=15 // pred_check
          %p462 = pneg %p213
        $region42: #{lm_model_transformer_forward.2} parent=15 // pred_check_branch
          %464 = sbr.rel (%p462) target = $region44
        $region43: #{lm_model_transformer_forward.2} parent=15 // pred_region
          %p465 = scmp.lt.s32.totalorder %s33, 1
          %s466 = scalar_select %p465, %s33, 1
          %s467 = scalar_lea.vmem %s6, %s466
        $region44: #{lm_model_transformer_forward.2} parent=15 // pred_fallthru
          _
        // Predicated region
        $region45: #{lm_model_transformer_forward.2} parent=15 // pred_check
          %p468 = pneg %p239
        $region46: #{lm_model_transformer_forward.2} parent=15 // pred_check_branch
          %470 = sbr.rel (%p468) target = $region48
        $region47: #{lm_model_transformer_forward.2} parent=15 // pred_region
          %s471 = sand.u32 %s229, 1
          %s472 = scalar_lea.sflag [#allocation4], %s471
          %s473 = sand.u32 %s229, 1
          %s474 = smul.addr %s473, 256
          %s475 = scalar_lea.vmem [#allocation3], %s474
          %477 = vsyncadd %s472, 0
          %s478 = smul.addr %s33, 64
          %s479 = smul.addr %s478, 4
          %s480 = scalar_lea.hbm %s7, %s479
          %s481 = sshll.u32 %s480, 4
          %s482 = int_to_ptr.hbm [resolvable:$true] %s481
          %s483 = sshll.u32 %s475, 4
          %s484 = int_to_ptr.vmem [resolvable:$true] %s483
          %489 = dma.hbm_to_vmem [thread:$0]  %s482, 4096, %s484, %s472, 256, 256, 16
        $region48: #{lm_model_transformer_forward.2} parent=15 // pred_fallthru
          _
        // Predicated region
        $region49: #{lm_model_transformer_forward.2} parent=15 // pred_check
          %p490 = pneg %p265
        $region50: #{lm_model_transformer_forward.2} parent=15 // pred_check_branch
          %492 = sbr.rel (%p490) target = $region52
        $region51: #{lm_model_transformer_forward.2} parent=15 // pred_region
          %p493 = scmp.lt.s32.totalorder %s33, 1
          %s494 = scalar_select %p493, %s33, 1
          %s495 = smul.addr %s494, 4
          %s496 = scalar_lea.vmem %s8, %s495
        $region52: #{lm_model_transformer_forward.2} parent=15 // pred_fallthru
          _
        // Predicated region
        $region53: #{lm_model_transformer_forward.2} parent=15 // pred_check
          %p497 = pneg %p291
        $region54: #{lm_model_transformer_forward.2} parent=15 // pred_check_branch
          %499 = sbr.rel (%p497) target = $region56
        $region55: #{lm_model_transformer_forward.2} parent=15 // pred_region
          %s500 = sand.u32 %s281, 1
          %s501 = scalar_lea.sflag [#allocation6], %s500
          %s502 = sand.u32 %s281, 1
          %s503 = smul.addr %s502, 256
          %s504 = scalar_lea.vmem [#allocation5], %s503
          %506 = vsyncadd %s501, 0
          %s507 = smul.addr %s33, 64
          %s508 = smul.addr %s507, 4
          %s509 = scalar_lea.hbm %s9, %s508
          %s510 = sshll.u32 %s509, 4
          %s511 = int_to_ptr.hbm [resolvable:$true] %s510
          %s512 = sshll.u32 %s504, 4
          %s513 = int_to_ptr.vmem [resolvable:$true] %s512
          %518 = dma.hbm_to_vmem [thread:$0]  %s511, 4096, %s513, %s501, 64, 64, 4
        $region56: #{lm_model_transformer_forward.2} parent=15 // pred_fallthru
          _
        // Predicated region
        $region57: #{lm_model_transformer_forward.2} parent=15 // pred_check
          %p519 = pneg %p317
        $region58: #{lm_model_transformer_forward.2} parent=15 // pred_check_branch
          %521 = sbr.rel (%p519) target = $region60
        $region59: #{lm_model_transformer_forward.2} parent=15 // pred_region
          %p522 = scmp.lt.s32.totalorder %s33, 1
          %s523 = scalar_select %p522, %s33, 1
          %s524 = scalar_lea.vmem %s10, %s523
        $region60: #{lm_model_transformer_forward.2} parent=15 // pred_fallthru
          _
        // Predicated region
        $region61: #{lm_model_transformer_forward.2} parent=15 // pred_check
          %p525 = pneg %p343
        $region62: #{lm_model_transformer_forward.2} parent=15 // pred_check_branch
          %527 = sbr.rel (%p525) target = $region64
        $region63: #{lm_model_transformer_forward.2} parent=15 // pred_region
          %p528 = scmp.lt.s32.totalorder %s33, 1
          %s529 = scalar_select %p528, %s33, 1
          %s530 = scalar_lea.vmem %s11, %s529
        $region64: #{lm_model_transformer_forward.2} parent=15 // pred_fallthru
          _
        // Predicated region
        $region65: #{lm_model_transformer_forward.2} parent=15 // pred_check
          %p531 = pneg %p369
        $region66: #{lm_model_transformer_forward.2} parent=15 // pred_check_branch
          %533 = sbr.rel (%p531) target = $region68
        $region67: #{lm_model_transformer_forward.2} parent=15 // pred_region
          %p534 = scmp.lt.s32.totalorder %s33, 1
          %s535 = scalar_select %p534, %s33, 1
          %s536 = scalar_lea.vmem %s12, %s535
        $region68: #{lm_model_transformer_forward.2} parent=15 // pred_fallthru
          _
      $region16: #{lm_model_transformer_forward.2} parent=5 // pred_fallthru
        _
      %p537 = scmp.le.s32.totalorder 1, %s25
      %p538 = scmp.lt.s32.totalorder %s25, 5
      %p539 = pnand %p537, %p538
      %p540 = pneg %p539
      // Predicated region
      $region69: #{lm_model_transformer_forward.2} parent=5 // pred_check
        _
      $region70: #{lm_model_transformer_forward.2} parent=5 // pred_check_branch
        %542 = sbr.rel (%p539) target = $region72
      $region71: #{lm_model_transformer_forward.2} parent=5 // pred_region
        %s543 = ssub.s32 %s25, 1
        %s544 = sand.u32 %s232, 1
        %s545 = scalar_lea.sflag [#allocation4], %s544
        %s546 = sand.u32 %s232, 1
        %s547 = smul.addr %s546, 256
        %s548 = scalar_lea.vmem [#allocation3], %s547
        // Predicated region
        $region73: #{lm_model_transformer_forward.2} parent=71 // pred_check
          %p549 = pneg %p245
        $region74: #{lm_model_transformer_forward.2} parent=71 // pred_check_branch
          %551 = sbr.rel (%p549) target = $region76
        $region75: #{lm_model_transformer_forward.2} parent=71 // pred_region
          %553 = dma.done %s545, 4096
        $region76: #{lm_model_transformer_forward.2} parent=71 // pred_fallthru
          _
        %s554 = sand.u32 %s284, 1
        %s555 = scalar_lea.sflag [#allocation6], %s554
        %s556 = sand.u32 %s284, 1
        %s557 = smul.addr %s556, 256
        %s558 = scalar_lea.vmem [#allocation5], %s557
        // Predicated region
        $region77: #{lm_model_transformer_forward.2} parent=71 // pred_check
          %p559 = pneg %p297
        $region78: #{lm_model_transformer_forward.2} parent=71 // pred_check_branch
          %561 = sbr.rel (%p559) target = $region80
        $region79: #{lm_model_transformer_forward.2} parent=71 // pred_region
          %563 = dma.done %s555, 4096
        $region80: #{lm_model_transformer_forward.2} parent=71 // pred_fallthru
          _
        %p564 = scmp.lt.s32.totalorder %s34, 1
        %s565 = scalar_select %p564, %s34, 1
        %s566 = smul.addr %s565, 4
        %s567 = scalar_lea.vmem %s0, %s566
        %p568 = pneg %p63
        %p569 = pneg %p60
        %p570 = scmp.lt.s32.totalorder %s35, 1
        %s571 = scalar_select %p570, %s35, 1
        %s572 = smul.addr %s571, 48
        %s573 = smul.addr %s572, 4
        %s574 = scalar_lea.vmem %s1, %s573
        %p575 = pneg %p89
        %p576 = pneg %p86
        %p577 = scmp.lt.s32.totalorder %s35, 1
        %s578 = scalar_select %p577, %s35, 1
        %s579 = smul.addr %s578, 3
        %s580 = scalar_lea.vmem %s2, %s579
        %p581 = pneg %p115
        %p582 = pneg %p112
        %p583 = scmp.lt.s32.totalorder %s35, 1
        %s584 = scalar_select %p583, %s35, 1
        %s585 = smul.addr %s584, 16
        %s586 = smul.addr %s585, 4
        %s587 = scalar_lea.vmem %s3, %s586
        %p588 = pneg %p141
        %p589 = pneg %p138
        %p590 = scmp.lt.s32.totalorder %s35, 1
        %s591 = scalar_select %p590, %s35, 1
        %s592 = scalar_lea.vmem %s4, %s591
        %p593 = pneg %p167
        %p594 = pneg %p164
        %p595 = scmp.lt.s32.totalorder %s35, 1
        %s596 = scalar_select %p595, %s35, 1
        %s597 = scalar_lea.vmem %s5, %s596
        %p598 = pneg %p193
        %p599 = pneg %p190
        %p600 = scmp.lt.s32.totalorder %s35, 1
        %s601 = scalar_select %p600, %s35, 1
        %s602 = scalar_lea.vmem %s6, %s601
        %p603 = pneg %p219
        %p604 = pneg %p216
        %s605 = sand.u32 %s232, 1
        %s606 = scalar_lea.sflag [#allocation4], %s605
        %s607 = sand.u32 %s232, 1
        %s608 = smul.addr %s607, 256
        %s609 = scalar_lea.vmem [#allocation3], %s608
        %p610 = pneg %p245
        %p611 = pneg %p242
        %p612 = scmp.lt.s32.totalorder %s35, 1
        %s613 = scalar_select %p612, %s35, 1
        %s614 = smul.addr %s613, 4
        %s615 = scalar_lea.vmem %s8, %s614
        %p616 = pneg %p271
        %p617 = pneg %p268
        %s618 = sand.u32 %s284, 1
        %s619 = scalar_lea.sflag [#allocation6], %s618
        %s620 = sand.u32 %s284, 1
        %s621 = smul.addr %s620, 256
        %s622 = scalar_lea.vmem [#allocation5], %s621
        %p623 = pneg %p297
        %p624 = pneg %p294
        %p625 = scmp.lt.s32.totalorder %s35, 1
        %s626 = scalar_select %p625, %s35, 1
        %s627 = scalar_lea.vmem %s10, %s626
        %p628 = pneg %p323
        %p629 = pneg %p320
        %p630 = scmp.lt.s32.totalorder %s35, 1
        %s631 = scalar_select %p630, %s35, 1
        %s632 = scalar_lea.vmem %s11, %s631
        %p633 = pneg %p349
        %p634 = pneg %p346
        %p635 = scmp.lt.s32.totalorder %s35, 1
        %s636 = scalar_select %p635, %s35, 1
        %s637 = scalar_lea.vmem %s12, %s636
        %p638 = pneg %p375
        %p639 = pneg %p372
        %p640 = pneg %p401
        %p641 = pneg %p398
        %p642 = scmp.lt.s32.totalorder %s34, 1
        %s643 = scalar_select %p642, %s34, 1
        %s644 = smul.addr %s643, 4
        %s645 = scalar_lea.vmem %s13, %s644
        %p646 = scmp.lt.s32.totalorder %s34, 1
        %s647 = scalar_select %p646, %s34, 1
        %s648 = smul.addr %s647, 4
        %s649 = scalar_lea.vmem %s0, %s648
        %p650 = scmp.lt.s32.totalorder %s35, 1
        %s651 = scalar_select %p650, %s35, 1
        %s652 = smul.addr %s651, 48
        %s653 = smul.addr %s652, 4
        %s654 = scalar_lea.vmem %s1, %s653
        %p655 = scmp.lt.s32.totalorder %s35, 1
        %s656 = scalar_select %p655, %s35, 1
        %s657 = smul.addr %s656, 3
        %s658 = scalar_lea.vmem %s2, %s657
        %p659 = scmp.lt.s32.totalorder %s35, 1
        %s660 = scalar_select %p659, %s35, 1
        %s661 = smul.addr %s660, 16
        %s662 = smul.addr %s661, 4
        %s663 = scalar_lea.vmem %s3, %s662
        %p664 = scmp.lt.s32.totalorder %s35, 1
        %s665 = scalar_select %p664, %s35, 1
        %s666 = scalar_lea.vmem %s4, %s665
        %p667 = scmp.lt.s32.totalorder %s35, 1
        %s668 = scalar_select %p667, %s35, 1
        %s669 = scalar_lea.vmem %s5, %s668
        %p670 = scmp.lt.s32.totalorder %s35, 1
        %s671 = scalar_select %p670, %s35, 1
        %s672 = scalar_lea.vmem %s6, %s671
        %p673 = scmp.lt.s32.totalorder %s35, 1
        %s674 = scalar_select %p673, %s35, 1
        %s675 = smul.addr %s674, 4
        %s676 = scalar_lea.vmem %s8, %s675
        %p677 = scmp.lt.s32.totalorder %s35, 1
        %s678 = scalar_select %p677, %s35, 1
        %s679 = scalar_lea.vmem %s10, %s678
        %p680 = scmp.lt.s32.totalorder %s35, 1
        %s681 = scalar_select %p680, %s35, 1
        %s682 = scalar_lea.vmem %s11, %s681
        %p683 = scmp.lt.s32.totalorder %s35, 1
        %s684 = scalar_select %p683, %s35, 1
        %s685 = scalar_lea.vmem %s12, %s684
        %p686 = scmp.lt.s32.totalorder %s34, 1
        %s687 = scalar_select %p686, %s34, 1
        %s688 = smul.addr %s687, 4
        %s689 = scalar_lea.vmem %s13, %s688
        %p691 = scmp.eq.s32.totalorder %s35, 0
        // Predicated region
        $region81: #{lm_model_transformer_forward.2} parent=71 // pred_check
          %p692 = pneg %p691
        $region82: #{lm_model_transformer_forward.2} parent=71 // pred_check_branch
          %694 = sbr.rel (%p692) target = $region84
        $region83: #{lm_model_transformer_forward.2} parent=71 // pred_region
          %v695 = vld [vmem:[%s649] sm:$0xf]
          %696 = vst [vmem:[%s689] sm:$0xf] %v695
          %v697 = vlaneseq
          %v698 = vshrl.u32 %v697, 7
          %v699 = vlaneseq
          %v700 = vand.u32 %v699, 127
          %vm701 = vcmp.le.s32.totalorder %v700, %v698
          %v702 = vsel %vm701, 0.0, -1e+30
          %vm703 = vcmask 64512
          %704 = vst.msk [vmem:[#allocation2] sm:$0xff] %vm703, %v702
        $region84: #{lm_model_transformer_forward.2} parent=71 // pred_fallthru
          _
        %v705 = vld [vmem:[%s689] sm:$0xf]
        %v706 = vunpack.c.l.bf16 %v705
        %v707 = vld [vmem:[%s654] sm:$0xff]
        %v708 = vld [vmem:[%s654 + $0x8] sm:$0xf]
        %v709 = vld [vmem:[%s654 + $0xc] sm:$0xff]
        %v710 = vld [vmem:[%s654 + $0x14] sm:$0xf]
        %v711 = vld [vmem:[%s654 + $0x18] sm:$0xff]
        %v712 = vld [vmem:[%s654 + $0x20] sm:$0xf]
        %v713 = vld [vmem:[%s654 + $0x24] sm:$0xff]
        %v714 = vld [vmem:[%s654 + $0x2c] sm:$0xf]
        %v715 = vld [vmem:[%s654 + $0x30] sm:$0xff]
        %v716 = vld [vmem:[%s654 + $0x38] sm:$0xf]
        %v717 = vld [vmem:[%s654 + $0x3c] sm:$0xff]
        %v718 = vld [vmem:[%s654 + $0x44] sm:$0xf]
        %v719 = vld [vmem:[%s654 + $0x48] sm:$0xff]
        %v720 = vld [vmem:[%s654 + $0x50] sm:$0xf]
        %v721 = vld [vmem:[%s654 + $0x54] sm:$0xff]
        %v722 = vld [vmem:[%s654 + $0x5c] sm:$0xf]
        %v723 = vld [vmem:[%s654 + $0x60] sm:$0xff]
        %v724 = vld [vmem:[%s654 + $0x68] sm:$0xf]
        %v725 = vld [vmem:[%s654 + $0x6c] sm:$0xff]
        %v726 = vld [vmem:[%s654 + $0x74] sm:$0xf]
        %v727 = vld [vmem:[%s654 + $0x78] sm:$0xff]
        %v728 = vld [vmem:[%s654 + $0x80] sm:$0xf]
        %v729 = vld [vmem:[%s654 + $0x84] sm:$0xff]
        %v730 = vld [vmem:[%s654 + $0x8c] sm:$0xf]
        %v731 = vld [vmem:[%s654 + $0x90] sm:$0xff]
        %v732 = vld [vmem:[%s654 + $0x98] sm:$0xf]
        %v733 = vld [vmem:[%s654 + $0x9c] sm:$0xff]
        %v734 = vld [vmem:[%s654 + $0xa4] sm:$0xf]
        %v735 = vld [vmem:[%s654 + $0xa8] sm:$0xff]
        %v736 = vld [vmem:[%s654 + $0xb0] sm:$0xf]
        %v737 = vld [vmem:[%s654 + $0xb4] sm:$0xff]
        %v738 = vld [vmem:[%s654 + $0xbc] sm:$0xf]
        %v739 = vld [vmem:[%s658] sm:$0x7]
        %v741 = vperm.slane %v739, 0
        %v742 = vperm.slane %v739, 1
        %v743 = vperm.slane %v739, 2
        %v779 = vunpack.c.l.b16 %v707
        %v780 = vunpack.c.h.b16 %v707
        %v781 = vunpack.c.l.b16 %v708
        %v782 = vunpack.c.l.b16 %v709
        %v783 = vunpack.c.h.b16 %v709
        %v784 = vunpack.c.l.b16 %v710
        %v785 = vunpack.c.l.b16 %v711
        %v786 = vunpack.c.h.b16 %v711
        %v787 = vunpack.c.l.b16 %v712
        %v788 = vunpack.c.l.b16 %v713
        %v789 = vunpack.c.h.b16 %v713
        %v790 = vunpack.c.l.b16 %v714
        %v791 = vunpack.c.l.b16 %v715
        %v792 = vunpack.c.h.b16 %v715
        %v793 = vunpack.c.l.b16 %v716
        %v794 = vunpack.c.l.b16 %v717
        %v795 = vunpack.c.h.b16 %v717
        %v796 = vunpack.c.l.b16 %v718
        %v797 = vunpack.c.l.b16 %v719
        %v798 = vunpack.c.h.b16 %v719
        %v799 = vunpack.c.l.b16 %v720
        %v800 = vunpack.c.l.b16 %v721
        %v801 = vunpack.c.h.b16 %v721
        %v802 = vunpack.c.l.b16 %v722
        %v803 = vunpack.c.l.b16 %v723
        %v804 = vunpack.c.h.b16 %v723
        %v805 = vunpack.c.l.b16 %v724
        %v806 = vunpack.c.l.b16 %v725
        %v807 = vunpack.c.h.b16 %v725
        %v808 = vunpack.c.l.b16 %v726
        %v809 = vunpack.c.l.b16 %v727
        %v810 = vunpack.c.h.b16 %v727
        %v811 = vunpack.c.l.b16 %v728
        %v812 = vunpack.c.l.b16 %v729
        %v813 = vunpack.c.h.b16 %v729
        %v814 = vunpack.c.l.b16 %v730
        %v815 = vunpack.c.l.b16 %v731
        %v816 = vunpack.c.h.b16 %v731
        %v817 = vunpack.c.l.b16 %v732
        %v818 = vunpack.c.l.b16 %v733
        %v819 = vunpack.c.h.b16 %v733
        %v820 = vunpack.c.l.b16 %v734
        %v821 = vunpack.c.l.b16 %v735
        %v822 = vunpack.c.h.b16 %v735
        %v823 = vunpack.c.l.b16 %v736
        %v824 = vunpack.c.l.b16 %v737
        %v825 = vunpack.c.h.b16 %v737
        %v826 = vunpack.c.l.b16 %v738
        %v827 = vpack.c.b16 %v782, %v779
        %v828 = vpack.c.b16 %v783, %v780
        %v829 = vpack.c.b16 %v784, %v781
        %v830 = vpack.c.b16 %v788, %v785
        %v831 = vpack.c.b16 %v789, %v786
        %v832 = vpack.c.b16 %v790, %v787
        %v833 = vpack.c.b16 %v794, %v791
        %v834 = vpack.c.b16 %v795, %v792
        %v835 = vpack.c.b16 %v796, %v793
        %v836 = vpack.c.b16 %v800, %v797
        %v837 = vpack.c.b16 %v801, %v798
        %v838 = vpack.c.b16 %v802, %v799
        %v839 = vpack.c.b16 %v806, %v803
        %v840 = vpack.c.b16 %v807, %v804
        %v841 = vpack.c.b16 %v808, %v805
        %v842 = vpack.c.b16 %v812, %v809
        %v843 = vpack.c.b16 %v813, %v810
        %v844 = vpack.c.b16 %v814, %v811
        %v845 = vpack.c.b16 %v818, %v815
        %v846 = vpack.c.b16 %v819, %v816
        %v847 = vpack.c.b16 %v820, %v817
        %v848 = vpack.c.b16 %v824, %v821
        %v849 = vpack.c.b16 %v825, %v822
        %v850 = vpack.c.b16 %v826, %v823
        %875 = vmatpush.bf16.msra.mxu0 %v848
        %876 = vmatpush.bf16.msra.mxu0 %v845
        %877 = vmatpush.bf16.msra.mxu0 %v842
        %878 = vmatpush.bf16.msra.mxu0 %v839
        %879 = vmatpush.bf16.msra.mxu0 %v836
        %880 = vmatpush.bf16.msra.mxu0 %v833
        %881 = vmatpush.bf16.msra.mxu0 %v830
        %882 = vmatpush.bf16.msra.mxu0 %v827
        %883 = vmatmul.bf16.gmra.mxu0 %v705
        %v884 = vpop.f32.mrf.mxu0
        %v885 = vadd.f32 %v741, %v884
        %v886 = vpop.f32.mrf.mxu0
        %887 = vdwg.mxu0
        %888 = vmatpush.bf16.msra.mxu0 %v849
        %889 = vmatpush.bf16.msra.mxu0 %v846
        %890 = vmatpush.bf16.msra.mxu0 %v843
        %891 = vmatpush.bf16.msra.mxu0 %v840
        %892 = vmatpush.bf16.msra.mxu0 %v837
        %893 = vmatpush.bf16.msra.mxu0 %v834
        %894 = vmatpush.bf16.msra.mxu0 %v831
        %895 = vmatpush.bf16.msra.mxu0 %v828
        %896 = vmatmul.bf16.gmra.mxu0 %v705
        %v897 = vpop.f32.mrf.mxu0
        %v898 = vadd.f32 %v742, %v897
        %v899 = vpop.f32.mrf.mxu0
        %900 = vdwg.mxu0
        %901 = vmatpush.bf16.msra.mxu0 %v850
        %902 = vmatpush.bf16.msra.mxu0 %v847
        %903 = vmatpush.bf16.msra.mxu0 %v844
        %904 = vmatpush.bf16.msra.mxu0 %v841
        %905 = vmatpush.bf16.msra.mxu0 %v838
        %906 = vmatpush.bf16.msra.mxu0 %v835
        %907 = vmatpush.bf16.msra.mxu0 %v832
        %908 = vmatpush.bf16.msra.mxu0 %v829
        %909 = vmatmul.bf16.gmra.mxu0 %v705
        %v910 = vpop.f32.mrf.mxu0
        %v911 = vadd.f32 %v743, %v910
        %v912 = vpop.f32.mrf.mxu0
        %913 = vdwg.mxu0
        %v914 = vmul.f32 %v885, 0.25
        %v915 = vpack.c.bf16 %v914, %v914
        %v916 = vpack.c.bf16 %v898, %v898
        %v917 = vpack.c.bf16 %v911, %v911
        %v918 = vld [vmem:[#allocation2] sm:$0xff]
        %v919 = vld [vmem:[%s663] sm:$0xf]
        %v920 = vld [vmem:[%s663 + $0x4] sm:$0xf]
        %v921 = vld [vmem:[%s663 + $0x8] sm:$0xf]
        %v922 = vld [vmem:[%s663 + $0xc] sm:$0xf]
        %v923 = vld [vmem:[%s663 + $0x10] sm:$0xf]
        %v924 = vld [vmem:[%s663 + $0x14] sm:$0xf]
        %v925 = vld [vmem:[%s663 + $0x18] sm:$0xf]
        %v926 = vld [vmem:[%s663 + $0x1c] sm:$0xf]
        %v927 = vld [vmem:[%s663 + $0x20] sm:$0xf]
        %v928 = vld [vmem:[%s663 + $0x24] sm:$0xf]
        %v929 = vld [vmem:[%s663 + $0x28] sm:$0xf]
        %v930 = vld [vmem:[%s663 + $0x2c] sm:$0xf]
        %v931 = vld [vmem:[%s663 + $0x30] sm:$0xf]
        %v932 = vld [vmem:[%s663 + $0x34] sm:$0xf]
        %v933 = vld [vmem:[%s663 + $0x38] sm:$0xf]
        %v934 = vld [vmem:[%s663 + $0x3c] sm:$0xf]
        %vm935 = vcmask 130048
        %v937 = vsel %vm935, %v915, 0
        %v940 = vsel %vm935, %v916, 0
        %942 = vmatpush.bf16.xpose.msra.mxu0 0
        %943 = vmatpush.bf16.xpose.msra.mxu0 0
        %944 = vmatpush.bf16.xpose.msra.mxu0 0
        %945 = vmatpush.bf16.xpose.msra.mxu0 0
        %946 = vmatpush.bf16.xpose.msra.mxu0 0
        %947 = vmatpush.bf16.xpose.msra.mxu0 0
        %948 = vmatpush.bf16.xpose.msra.mxu0 0
        %949 = vmatpush.bf16.xpose.msra.mxu0 %v940
        %950 = vmatmul.bf16.gmra.mxu0 %v937
        %v951 = vpop.f32.mrf.mxu0
        %v952 = vadd.f32 %v918, %v951
        %v953 = vpop.f32.mrf.mxu0
        %954 = vdwg.mxu0
        %vm955 = vcmask 64512
        %v956 = vsel %vm955, %v952, -inf
        %957 = vmax.xlane.f32.xlu0 %v956
        %v958 = vpop.xlane.xlu0 %957
        %v959 = vsub.f32 %v952, %v958
        %v960 = vmul.f32 %v959, 1.442695
        %v961 = vpow.pop %v960
        %v962 = vsel %vm955, %v961, 0.0
        %963 = vadd.xlane.f32.xlu0 %v962
        %v964 = vpop.xlane.xlu0 %963
        %v965 = vrcp.pop %v964
        %v966 = vmul.f32 %v961, %v965
        %v967 = vpack.c.bf16 %v966, %v966
        %v969 = vsel %vm955, %v967, 0
        %vm971 = vcmask 1043456
        %v973 = vsel %vm971, %v917, 0
        %975 = vmatpush.bf16.msra.mxu0 0
        %976 = vmatpush.bf16.msra.mxu0 0
        %977 = vmatpush.bf16.msra.mxu0 0
        %978 = vmatpush.bf16.msra.mxu0 0
        %979 = vmatpush.bf16.msra.mxu0 0
        %980 = vmatpush.bf16.msra.mxu0 0
        %981 = vmatpush.bf16.msra.mxu0 0
        %982 = vmatpush.bf16.msra.mxu0 %v973
        %983 = vmatmul.bf16.gmra.mxu0 %v969
        %v984 = vpop.f32.mrf.mxu0
        %v985 = vadd.f32 0.0, %v984
        %v986 = vpop.f32.mrf.mxu0
        %987 = vdwg.mxu0
        %v988 = vpack.c.bf16 %v985, %v985
        %v990 = vunpack.c.l.b16 %v915
        %v991 = vpack.c.b16 %v990, %v990
        %992 = vrot.lane.b32.xlu0 %v991, 112
        %v993 = vpop.permute.xlu0 %992
        %v995 = vunpack.c.l.b16 %v916
        %v996 = vpack.c.b16 %v995, %v995
        %997 = vrot.lane.b32.xlu0 %v996, 112
        %v998 = vpop.permute.xlu0 %997
        %v1000 = vsel %vm935, %v993, 0
        %v1003 = vsel %vm935, %v998, 0
        %1005 = vmatpush.bf16.xpose.msra.mxu0 0
        %1006 = vmatpush.bf16.xpose.msra.mxu0 0
        %1007 = vmatpush.bf16.xpose.msra.mxu0 0
        %1008 = vmatpush.bf16.xpose.msra.mxu0 0
        %1009 = vmatpush.bf16.xpose.msra.mxu0 0
        %1010 = vmatpush.bf16.xpose.msra.mxu0 0
        %1011 = vmatpush.bf16.xpose.msra.mxu0 0
        %1012 = vmatpush.bf16.xpose.msra.mxu0 %v1003
        %1013 = vmatmul.bf16.gmra.mxu0 %v1000
        %v1014 = vpop.f32.mrf.mxu0
        %v1015 = vadd.f32 %v918, %v1014
        %v1016 = vpop.f32.mrf.mxu0
        %1017 = vdwg.mxu0
        %v1018 = vsel %vm955, %v1015, -inf
        %1019 = vmax.xlane.f32.xlu0 %v1018
        %v1020 = vpop.xlane.xlu0 %1019
        %v1021 = vsub.f32 %v1015, %v1020
        %v1022 = vmul.f32 %v1021, 1.442695
        %v1023 = vpow.pop %v1022
        %v1024 = vsel %vm955, %v1023, 0.0
        %1025 = vadd.xlane.f32.xlu0 %v1024
        %v1026 = vpop.xlane.xlu0 %1025
        %v1027 = vrcp.pop %v1026
        %v1028 = vmul.f32 %v1023, %v1027
        %v1029 = vpack.c.bf16 %v1028, %v1028
        %v1031 = vunpack.c.l.b16 %v917
        %v1032 = vpack.c.b16 %v1031, %v1031
        %1033 = vrot.lane.b32.xlu0 %v1032, 112
        %v1034 = vpop.permute.xlu0 %1033
        %v1036 = vsel %vm955, %v1029, 0
        %v1039 = vsel %vm971, %v1034, 0
        %1041 = vmatpush.bf16.msra.mxu0 0
        %1042 = vmatpush.bf16.msra.mxu0 0
        %1043 = vmatpush.bf16.msra.mxu0 0
        %1044 = vmatpush.bf16.msra.mxu0 0
        %1045 = vmatpush.bf16.msra.mxu0 0
        %1046 = vmatpush.bf16.msra.mxu0 0
        %1047 = vmatpush.bf16.msra.mxu0 0
        %1048 = vmatpush.bf16.msra.mxu0 %v1039
        %1049 = vmatmul.bf16.gmra.mxu0 %v1036
        %v1050 = vpop.f32.mrf.mxu0
        %v1051 = vadd.f32 0.0, %v1050
        %v1052 = vpop.f32.mrf.mxu0
        %1053 = vdwg.mxu0
        %v1054 = vpack.c.bf16 %v1051, %v1051
        %v1057 = vunpack.c.l.b16 %v921
        %v1058 = vunpack.c.l.b16 %v922
        %v1059 = vpack.c.b16 %v1058, %v1057
        %v1062 = vsel %vm935, %v1054, 0
        %1064 = vmatpush.bf16.msra.mxu0 0
        %1065 = vmatpush.bf16.msra.mxu0 0
        %1066 = vmatpush.bf16.msra.mxu0 0
        %1067 = vmatpush.bf16.msra.mxu0 0
        %1068 = vmatpush.bf16.msra.mxu0 0
        %1069 = vmatpush.bf16.msra.mxu0 0
        %1070 = vmatpush.bf16.msra.mxu0 0
        %1071 = vmatpush.bf16.msra.mxu0 %v1059
        %1072 = vmatmul.bf16.gmra.mxu0 %v1062
        %v1073 = vpop.f32.mrf.mxu0
        %v1074 = vadd.f32 0.0, %v1073
        %v1075 = vpop.f32.mrf.mxu0
        %1076 = vdwg.mxu0
        %v1079 = vunpack.c.l.b16 %v919
        %v1080 = vunpack.c.l.b16 %v920
        %v1081 = vpack.c.b16 %v1080, %v1079
        %v1084 = vsel %vm935, %v988, 0
        %1086 = vmatpush.bf16.msra.mxu0 0
        %1087 = vmatpush.bf16.msra.mxu0 0
        %1088 = vmatpush.bf16.msra.mxu0 0
        %1089 = vmatpush.bf16.msra.mxu0 0
        %1090 = vmatpush.bf16.msra.mxu0 0
        %1091 = vmatpush.bf16.msra.mxu0 0
        %1092 = vmatpush.bf16.msra.mxu0 0
        %1093 = vmatpush.bf16.msra.mxu0 %v1081
        %1094 = vmatmul.bf16.gmra.mxu0 %v1084
        %v1095 = vpop.f32.mrf.mxu0
        %v1096 = vadd.f32 %v1074, %v1095
        %v1097 = vpop.f32.mrf.mxu0
        %1098 = vdwg.mxu0
        %1099 = vrot.lane.b32.xlu0 %v991, 96
        %v1100 = vpop.permute.xlu0 %1099
        %1101 = vrot.lane.b32.xlu0 %v996, 96
        %v1102 = vpop.permute.xlu0 %1101
        %v1104 = vsel %vm935, %v1100, 0
        %v1107 = vsel %vm935, %v1102, 0
        %1109 = vmatpush.bf16.xpose.msra.mxu0 0
        %1110 = vmatpush.bf16.xpose.msra.mxu0 0
        %1111 = vmatpush.bf16.xpose.msra.mxu0 0
        %1112 = vmatpush.bf16.xpose.msra.mxu0 0
        %1113 = vmatpush.bf16.xpose.msra.mxu0 0
        %1114 = vmatpush.bf16.xpose.msra.mxu0 0
        %1115 = vmatpush.bf16.xpose.msra.mxu0 0
        %1116 = vmatpush.bf16.xpose.msra.mxu0 %v1107
        %1117 = vmatmul.bf16.gmra.mxu0 %v1104
        %v1118 = vpop.f32.mrf.mxu0
        %v1119 = vadd.f32 %v918, %v1118
        %v1120 = vpop.f32.mrf.mxu0
        %1121 = vdwg.mxu0
        %v1122 = vsel %vm955, %v1119, -inf
        %1123 = vmax.xlane.f32.xlu0 %v1122
        %v1124 = vpop.xlane.xlu0 %1123
        %v1125 = vsub.f32 %v1119, %v1124
        %v1126 = vmul.f32 %v1125, 1.442695
        %v1127 = vpow.pop %v1126
        %v1128 = vsel %vm955, %v1127, 0.0
        %1129 = vadd.xlane.f32.xlu0 %v1128
        %v1130 = vpop.xlane.xlu0 %1129
        %v1131 = vrcp.pop %v1130
        %v1132 = vmul.f32 %v1127, %v1131
        %v1133 = vpack.c.bf16 %v1132, %v1132
        %1134 = vrot.lane.b32.xlu0 %v1032, 96
        %v1135 = vpop.permute.xlu0 %1134
        %v1137 = vsel %vm955, %v1133, 0
        %v1140 = vsel %vm971, %v1135, 0
        %1142 = vmatpush.bf16.msra.mxu0 0
        %1143 = vmatpush.bf16.msra.mxu0 0
        %1144 = vmatpush.bf16.msra.mxu0 0
        %1145 = vmatpush.bf16.msra.mxu0 0
        %1146 = vmatpush.bf16.msra.mxu0 0
        %1147 = vmatpush.bf16.msra.mxu0 0
        %1148 = vmatpush.bf16.msra.mxu0 0
        %1149 = vmatpush.bf16.msra.mxu0 %v1140
        %1150 = vmatmul.bf16.gmra.mxu0 %v1137
        %v1151 = vpop.f32.mrf.mxu0
        %v1152 = vadd.f32 0.0, %v1151
        %v1153 = vpop.f32.mrf.mxu0
        %1154 = vdwg.mxu0
        %v1155 = vpack.c.bf16 %v1152, %v1152
        %v1158 = vunpack.c.l.b16 %v923
        %v1159 = vunpack.c.l.b16 %v924
        %v1160 = vpack.c.b16 %v1159, %v1158
        %v1163 = vsel %vm935, %v1155, 0
        %1165 = vmatpush.bf16.msra.mxu0 0
        %1166 = vmatpush.bf16.msra.mxu0 0
        %1167 = vmatpush.bf16.msra.mxu0 0
        %1168 = vmatpush.bf16.msra.mxu0 0
        %1169 = vmatpush.bf16.msra.mxu0 0
        %1170 = vmatpush.bf16.msra.mxu0 0
        %1171 = vmatpush.bf16.msra.mxu0 0
        %1172 = vmatpush.bf16.msra.mxu0 %v1160
        %1173 = vmatmul.bf16.gmra.mxu0 %v1163
        %v1174 = vpop.f32.mrf.mxu0
        %v1175 = vadd.f32 0.0, %v1174
        %v1176 = vpop.f32.mrf.mxu0
        %1177 = vdwg.mxu0
        %v1178 = vadd.f32 %v1096, %v1175
        %1179 = vrot.lane.b32.xlu0 %v991, 80
        %v1180 = vpop.permute.xlu0 %1179
        %1181 = vrot.lane.b32.xlu0 %v996, 80
        %v1182 = vpop.permute.xlu0 %1181
        %v1184 = vsel %vm935, %v1180, 0
        %v1187 = vsel %vm935, %v1182, 0
        %1189 = vmatpush.bf16.xpose.msra.mxu0 0
        %1190 = vmatpush.bf16.xpose.msra.mxu0 0
        %1191 = vmatpush.bf16.xpose.msra.mxu0 0
        %1192 = vmatpush.bf16.xpose.msra.mxu0 0
        %1193 = vmatpush.bf16.xpose.msra.mxu0 0
        %1194 = vmatpush.bf16.xpose.msra.mxu0 0
        %1195 = vmatpush.bf16.xpose.msra.mxu0 0
        %1196 = vmatpush.bf16.xpose.msra.mxu0 %v1187
        %1197 = vmatmul.bf16.gmra.mxu0 %v1184
        %v1198 = vpop.f32.mrf.mxu0
        %v1199 = vadd.f32 %v918, %v1198
        %v1200 = vpop.f32.mrf.mxu0
        %1201 = vdwg.mxu0
        %v1202 = vsel %vm955, %v1199, -inf
        %1203 = vmax.xlane.f32.xlu0 %v1202
        %v1204 = vpop.xlane.xlu0 %1203
        %v1205 = vsub.f32 %v1199, %v1204
        %v1206 = vmul.f32 %v1205, 1.442695
        %v1207 = vpow.pop %v1206
        %v1208 = vsel %vm955, %v1207, 0.0
        %1209 = vadd.xlane.f32.xlu0 %v1208
        %v1210 = vpop.xlane.xlu0 %1209
        %v1211 = vrcp.pop %v1210
        %v1212 = vmul.f32 %v1207, %v1211
        %v1213 = vpack.c.bf16 %v1212, %v1212
        %1214 = vrot.lane.b32.xlu0 %v1032, 80
        %v1215 = vpop.permute.xlu0 %1214
        %v1217 = vsel %vm955, %v1213, 0
        %v1220 = vsel %vm971, %v1215, 0
        %1222 = vmatpush.bf16.msra.mxu0 0
        %1223 = vmatpush.bf16.msra.mxu0 0
        %1224 = vmatpush.bf16.msra.mxu0 0
        %1225 = vmatpush.bf16.msra.mxu0 0
        %1226 = vmatpush.bf16.msra.mxu0 0
        %1227 = vmatpush.bf16.msra.mxu0 0
        %1228 = vmatpush.bf16.msra.mxu0 0
        %1229 = vmatpush.bf16.msra.mxu0 %v1220
        %1230 = vmatmul.bf16.gmra.mxu0 %v1217
        %v1231 = vpop.f32.mrf.mxu0
        %v1232 = vadd.f32 0.0, %v1231
        %v1233 = vpop.f32.mrf.mxu0
        %1234 = vdwg.mxu0
        %v1235 = vpack.c.bf16 %v1232, %v1232
        %v1238 = vunpack.c.l.b16 %v925
        %v1239 = vunpack.c.l.b16 %v926
        %v1240 = vpack.c.b16 %v1239, %v1238
        %v1243 = vsel %vm935, %v1235, 0
        %1245 = vmatpush.bf16.msra.mxu0 0
        %1246 = vmatpush.bf16.msra.mxu0 0
        %1247 = vmatpush.bf16.msra.mxu0 0
        %1248 = vmatpush.bf16.msra.mxu0 0
        %1249 = vmatpush.bf16.msra.mxu0 0
        %1250 = vmatpush.bf16.msra.mxu0 0
        %1251 = vmatpush.bf16.msra.mxu0 0
        %1252 = vmatpush.bf16.msra.mxu0 %v1240
        %1253 = vmatmul.bf16.gmra.mxu0 %v1243
        %v1254 = vpop.f32.mrf.mxu0
        %v1255 = vadd.f32 0.0, %v1254
        %v1256 = vpop.f32.mrf.mxu0
        %1257 = vdwg.mxu0
        %v1258 = vadd.f32 %v1178, %v1255
        %1259 = vrot.lane.b32.xlu0 %v991, 64
        %v1260 = vpop.permute.xlu0 %1259
        %1261 = vrot.lane.b32.xlu0 %v996, 64
        %v1262 = vpop.permute.xlu0 %1261
        %v1264 = vsel %vm935, %v1260, 0
        %v1267 = vsel %vm935, %v1262, 0
        %1269 = vmatpush.bf16.xpose.msra.mxu0 0
        %1270 = vmatpush.bf16.xpose.msra.mxu0 0
        %1271 = vmatpush.bf16.xpose.msra.mxu0 0
        %1272 = vmatpush.bf16.xpose.msra.mxu0 0
        %1273 = vmatpush.bf16.xpose.msra.mxu0 0
        %1274 = vmatpush.bf16.xpose.msra.mxu0 0
        %1275 = vmatpush.bf16.xpose.msra.mxu0 0
        %1276 = vmatpush.bf16.xpose.msra.mxu0 %v1267
        %1277 = vmatmul.bf16.gmra.mxu0 %v1264
        %v1278 = vpop.f32.mrf.mxu0
        %v1279 = vadd.f32 %v918, %v1278
        %v1280 = vpop.f32.mrf.mxu0
        %1281 = vdwg.mxu0
        %v1282 = vsel %vm955, %v1279, -inf
        %1283 = vmax.xlane.f32.xlu0 %v1282
        %v1284 = vpop.xlane.xlu0 %1283
        %v1285 = vsub.f32 %v1279, %v1284
        %v1286 = vmul.f32 %v1285, 1.442695
        %v1287 = vpow.pop %v1286
        %v1288 = vsel %vm955, %v1287, 0.0
        %1289 = vadd.xlane.f32.xlu0 %v1288
        %v1290 = vpop.xlane.xlu0 %1289
        %v1291 = vrcp.pop %v1290
        %v1292 = vmul.f32 %v1287, %v1291
        %v1293 = vpack.c.bf16 %v1292, %v1292
        %1294 = vrot.lane.b32.xlu0 %v1032, 64
        %v1295 = vpop.permute.xlu0 %1294
        %v1297 = vsel %vm955, %v1293, 0
        %v1300 = vsel %vm971, %v1295, 0
        %1302 = vmatpush.bf16.msra.mxu0 0
        %1303 = vmatpush.bf16.msra.mxu0 0
        %1304 = vmatpush.bf16.msra.mxu0 0
        %1305 = vmatpush.bf16.msra.mxu0 0
        %1306 = vmatpush.bf16.msra.mxu0 0
        %1307 = vmatpush.bf16.msra.mxu0 0
        %1308 = vmatpush.bf16.msra.mxu0 0
        %1309 = vmatpush.bf16.msra.mxu0 %v1300
        %1310 = vmatmul.bf16.gmra.mxu0 %v1297
        %v1311 = vpop.f32.mrf.mxu0
        %v1312 = vadd.f32 0.0, %v1311
        %v1313 = vpop.f32.mrf.mxu0
        %1314 = vdwg.mxu0
        %v1315 = vpack.c.bf16 %v1312, %v1312
        %v1318 = vunpack.c.l.b16 %v927
        %v1319 = vunpack.c.l.b16 %v928
        %v1320 = vpack.c.b16 %v1319, %v1318
        %v1323 = vsel %vm935, %v1315, 0
        %1325 = vmatpush.bf16.msra.mxu0 0
        %1326 = vmatpush.bf16.msra.mxu0 0
        %1327 = vmatpush.bf16.msra.mxu0 0
        %1328 = vmatpush.bf16.msra.mxu0 0
        %1329 = vmatpush.bf16.msra.mxu0 0
        %1330 = vmatpush.bf16.msra.mxu0 0
        %1331 = vmatpush.bf16.msra.mxu0 0
        %1332 = vmatpush.bf16.msra.mxu0 %v1320
        %1333 = vmatmul.bf16.gmra.mxu0 %v1323
        %v1334 = vpop.f32.mrf.mxu0
        %v1335 = vadd.f32 0.0, %v1334
        %v1336 = vpop.f32.mrf.mxu0
        %1337 = vdwg.mxu0
        %v1338 = vadd.f32 %v1258, %v1335
        %1339 = vrot.lane.b32.xlu0 %v991, 48
        %v1340 = vpop.permute.xlu0 %1339
        %1341 = vrot.lane.b32.xlu0 %v996, 48
        %v1342 = vpop.permute.xlu0 %1341
        %v1344 = vsel %vm935, %v1340, 0
        %v1347 = vsel %vm935, %v1342, 0
        %1349 = vmatpush.bf16.xpose.msra.mxu0 0
        %1350 = vmatpush.bf16.xpose.msra.mxu0 0
        %1351 = vmatpush.bf16.xpose.msra.mxu0 0
        %1352 = vmatpush.bf16.xpose.msra.mxu0 0
        %1353 = vmatpush.bf16.xpose.msra.mxu0 0
        %1354 = vmatpush.bf16.xpose.msra.mxu0 0
        %1355 = vmatpush.bf16.xpose.msra.mxu0 0
        %1356 = vmatpush.bf16.xpose.msra.mxu0 %v1347
        %1357 = vmatmul.bf16.gmra.mxu0 %v1344
        %v1358 = vpop.f32.mrf.mxu0
        %v1359 = vadd.f32 %v918, %v1358
        %v1360 = vpop.f32.mrf.mxu0
        %1361 = vdwg.mxu0
        %v1362 = vsel %vm955, %v1359, -inf
        %1363 = vmax.xlane.f32.xlu0 %v1362
        %v1364 = vpop.xlane.xlu0 %1363
        %v1365 = vsub.f32 %v1359, %v1364
        %v1366 = vmul.f32 %v1365, 1.442695
        %v1367 = vpow.pop %v1366
        %v1368 = vsel %vm955, %v1367, 0.0
        %1369 = vadd.xlane.f32.xlu0 %v1368
        %v1370 = vpop.xlane.xlu0 %1369
        %v1371 = vrcp.pop %v1370
        %v1372 = vmul.f32 %v1367, %v1371
        %v1373 = vpack.c.bf16 %v1372, %v1372
        %1374 = vrot.lane.b32.xlu0 %v1032, 48
        %v1375 = vpop.permute.xlu0 %1374
        %v1377 = vsel %vm955, %v1373, 0
        %v1380 = vsel %vm971, %v1375, 0
        %1382 = vmatpush.bf16.msra.mxu0 0
        %1383 = vmatpush.bf16.msra.mxu0 0
        %1384 = vmatpush.bf16.msra.mxu0 0
        %1385 = vmatpush.bf16.msra.mxu0 0
        %1386 = vmatpush.bf16.msra.mxu0 0
        %1387 = vmatpush.bf16.msra.mxu0 0
        %1388 = vmatpush.bf16.msra.mxu0 0
        %1389 = vmatpush.bf16.msra.mxu0 %v1380
        %1390 = vmatmul.bf16.gmra.mxu0 %v1377
        %v1391 = vpop.f32.mrf.mxu0
        %v1392 = vadd.f32 0.0, %v1391
        %v1393 = vpop.f32.mrf.mxu0
        %1394 = vdwg.mxu0
        %v1395 = vpack.c.bf16 %v1392, %v1392
        %v1398 = vunpack.c.l.b16 %v929
        %v1399 = vunpack.c.l.b16 %v930
        %v1400 = vpack.c.b16 %v1399, %v1398
        %v1403 = vsel %vm935, %v1395, 0
        %1405 = vmatpush.bf16.msra.mxu0 0
        %1406 = vmatpush.bf16.msra.mxu0 0
        %1407 = vmatpush.bf16.msra.mxu0 0
        %1408 = vmatpush.bf16.msra.mxu0 0
        %1409 = vmatpush.bf16.msra.mxu0 0
        %1410 = vmatpush.bf16.msra.mxu0 0
        %1411 = vmatpush.bf16.msra.mxu0 0
        %1412 = vmatpush.bf16.msra.mxu0 %v1400
        %1413 = vmatmul.bf16.gmra.mxu0 %v1403
        %v1414 = vpop.f32.mrf.mxu0
        %v1415 = vadd.f32 0.0, %v1414
        %v1416 = vpop.f32.mrf.mxu0
        %1417 = vdwg.mxu0
        %v1418 = vadd.f32 %v1338, %v1415
        %1419 = vrot.lane.b32.xlu0 %v991, 32
        %v1420 = vpop.permute.xlu0 %1419
        %1421 = vrot.lane.b32.xlu0 %v996, 32
        %v1422 = vpop.permute.xlu0 %1421
        %v1424 = vsel %vm935, %v1420, 0
        %v1427 = vsel %vm935, %v1422, 0
        %1429 = vmatpush.bf16.xpose.msra.mxu0 0
        %1430 = vmatpush.bf16.xpose.msra.mxu0 0
        %1431 = vmatpush.bf16.xpose.msra.mxu0 0
        %1432 = vmatpush.bf16.xpose.msra.mxu0 0
        %1433 = vmatpush.bf16.xpose.msra.mxu0 0
        %1434 = vmatpush.bf16.xpose.msra.mxu0 0
        %1435 = vmatpush.bf16.xpose.msra.mxu0 0
        %1436 = vmatpush.bf16.xpose.msra.mxu0 %v1427
        %1437 = vmatmul.bf16.gmra.mxu0 %v1424
        %v1438 = vpop.f32.mrf.mxu0
        %v1439 = vadd.f32 %v918, %v1438
        %v1440 = vpop.f32.mrf.mxu0
        %1441 = vdwg.mxu0
        %v1442 = vsel %vm955, %v1439, -inf
        %1443 = vmax.xlane.f32.xlu0 %v1442
        %v1444 = vpop.xlane.xlu0 %1443
        %v1445 = vsub.f32 %v1439, %v1444
        %v1446 = vmul.f32 %v1445, 1.442695
        %v1447 = vpow.pop %v1446
        %v1448 = vsel %vm955, %v1447, 0.0
        %1449 = vadd.xlane.f32.xlu0 %v1448
        %v1450 = vpop.xlane.xlu0 %1449
        %v1451 = vrcp.pop %v1450
        %v1452 = vmul.f32 %v1447, %v1451
        %v1453 = vpack.c.bf16 %v1452, %v1452
        %1454 = vrot.lane.b32.xlu0 %v1032, 32
        %v1455 = vpop.permute.xlu0 %1454
        %v1457 = vsel %vm955, %v1453, 0
        %v1460 = vsel %vm971, %v1455, 0
        %1462 = vmatpush.bf16.msra.mxu0 0
        %1463 = vmatpush.bf16.msra.mxu0 0
        %1464 = vmatpush.bf16.msra.mxu0 0
        %1465 = vmatpush.bf16.msra.mxu0 0
        %1466 = vmatpush.bf16.msra.mxu0 0
        %1467 = vmatpush.bf16.msra.mxu0 0
        %1468 = vmatpush.bf16.msra.mxu0 0
        %1469 = vmatpush.bf16.msra.mxu0 %v1460
        %1470 = vmatmul.bf16.gmra.mxu0 %v1457
        %v1471 = vpop.f32.mrf.mxu0
        %v1472 = vadd.f32 0.0, %v1471
        %v1473 = vpop.f32.mrf.mxu0
        %1474 = vdwg.mxu0
        %v1475 = vpack.c.bf16 %v1472, %v1472
        %v1478 = vunpack.c.l.b16 %v931
        %v1479 = vunpack.c.l.b16 %v932
        %v1480 = vpack.c.b16 %v1479, %v1478
        %v1483 = vsel %vm935, %v1475, 0
        %1485 = vmatpush.bf16.msra.mxu0 0
        %1486 = vmatpush.bf16.msra.mxu0 0
        %1487 = vmatpush.bf16.msra.mxu0 0
        %1488 = vmatpush.bf16.msra.mxu0 0
        %1489 = vmatpush.bf16.msra.mxu0 0
        %1490 = vmatpush.bf16.msra.mxu0 0
        %1491 = vmatpush.bf16.msra.mxu0 0
        %1492 = vmatpush.bf16.msra.mxu0 %v1480
        %1493 = vmatmul.bf16.gmra.mxu0 %v1483
        %v1494 = vpop.f32.mrf.mxu0
        %v1495 = vadd.f32 0.0, %v1494
        %v1496 = vpop.f32.mrf.mxu0
        %1497 = vdwg.mxu0
        %v1498 = vadd.f32 %v1418, %v1495
        %1499 = vrot.lane.b32.xlu0 %v991, 16
        %v1500 = vpop.permute.xlu0 %1499
        %1501 = vrot.lane.b32.xlu0 %v996, 16
        %v1502 = vpop.permute.xlu0 %1501
        %v1504 = vsel %vm935, %v1500, 0
        %v1507 = vsel %vm935, %v1502, 0
        %1509 = vmatpush.bf16.xpose.msra.mxu0 0
        %1510 = vmatpush.bf16.xpose.msra.mxu0 0
        %1511 = vmatpush.bf16.xpose.msra.mxu0 0
        %1512 = vmatpush.bf16.xpose.msra.mxu0 0
        %1513 = vmatpush.bf16.xpose.msra.mxu0 0
        %1514 = vmatpush.bf16.xpose.msra.mxu0 0
        %1515 = vmatpush.bf16.xpose.msra.mxu0 0
        %1516 = vmatpush.bf16.xpose.msra.mxu0 %v1507
        %1517 = vmatmul.bf16.gmra.mxu0 %v1504
        %v1518 = vpop.f32.mrf.mxu0
        %v1519 = vadd.f32 %v918, %v1518
        %v1520 = vpop.f32.mrf.mxu0
        %1521 = vdwg.mxu0
        %v1522 = vsel %vm955, %v1519, -inf
        %1523 = vmax.xlane.f32.xlu0 %v1522
        %v1524 = vpop.xlane.xlu0 %1523
        %v1525 = vsub.f32 %v1519, %v1524
        %v1526 = vmul.f32 %v1525, 1.442695
        %v1527 = vpow.pop %v1526
        %v1528 = vsel %vm955, %v1527, 0.0
        %1529 = vadd.xlane.f32.xlu0 %v1528
        %v1530 = vpop.xlane.xlu0 %1529
        %v1531 = vrcp.pop %v1530
        %v1532 = vmul.f32 %v1527, %v1531
        %v1533 = vpack.c.bf16 %v1532, %v1532
        %1534 = vrot.lane.b32.xlu0 %v1032, 16
        %v1535 = vpop.permute.xlu0 %1534
        %v1537 = vsel %vm955, %v1533, 0
        %v1540 = vsel %vm971, %v1535, 0
        %1542 = vmatpush.bf16.msra.mxu0 0
        %1543 = vmatpush.bf16.msra.mxu0 0
        %1544 = vmatpush.bf16.msra.mxu0 0
        %1545 = vmatpush.bf16.msra.mxu0 0
        %1546 = vmatpush.bf16.msra.mxu0 0
        %1547 = vmatpush.bf16.msra.mxu0 0
        %1548 = vmatpush.bf16.msra.mxu0 0
        %1549 = vmatpush.bf16.msra.mxu0 %v1540
        %1550 = vmatmul.bf16.gmra.mxu0 %v1537
        %v1551 = vpop.f32.mrf.mxu0
        %v1552 = vadd.f32 0.0, %v1551
        %v1553 = vpop.f32.mrf.mxu0
        %1554 = vdwg.mxu0
        %v1555 = vpack.c.bf16 %v1552, %v1552
        %v1558 = vunpack.c.l.b16 %v933
        %v1559 = vunpack.c.l.b16 %v934
        %v1560 = vpack.c.b16 %v1559, %v1558
        %v1563 = vsel %vm935, %v1555, 0
        %1565 = vmatpush.bf16.msra.mxu0 0
        %1566 = vmatpush.bf16.msra.mxu0 0
        %1567 = vmatpush.bf16.msra.mxu0 0
        %1568 = vmatpush.bf16.msra.mxu0 0
        %1569 = vmatpush.bf16.msra.mxu0 0
        %1570 = vmatpush.bf16.msra.mxu0 0
        %1571 = vmatpush.bf16.msra.mxu0 0
        %1572 = vmatpush.bf16.msra.mxu0 %v1560
        %1573 = vmatmul.bf16.gmra.mxu0 %v1563
        %v1574 = vpop.f32.mrf.mxu0
        %v1575 = vadd.f32 0.0, %v1574
        %v1576 = vpop.f32.mrf.mxu0
        %1577 = vdwg.mxu0
        %v1578 = vadd.f32 %v1498, %v1575
        %v1579 = vld [vmem:[%s666] sm:$0x1]
        %v1581 = vperm.slane %v1579, 0
        %v1583 = vadd.f32 %v1578, %v1581
        %v1584 = vadd.f32 %v706, %v1583
        %1585 = vadd.xlane.f32.xlu0 %v1584
        %v1586 = vpop.xlane.xlu0 %1585
        %v1587 = vrcp.pop 128.0
        %v1588 = vmul.f32 128.0, %v1587
        %v1589 = vsub.f32 1.0, %v1588
        %v1590 = vmul.f32 %v1587, %v1589
        %v1591 = vadd.f32 %v1587, %v1590
        %vm1592 = vweird.f32 %v1587
        %v1593 = vsel %vm1592, %v1587, %v1591
        %v1594 = vmul.f32 %v1586, %v1593
        %v1595 = vsub.f32 %v1584, %v1594
        %v1596 = vmul.f32 %v1595, %v1595
        %1597 = vadd.xlane.f32.xlu0 %v1596
        %v1598 = vpop.xlane.xlu0 %1597
        %v1599 = vmul.f32 %v1598, %v1593
        %v1600 = vadd.f32 %v1599, 1e-05
        %v1601 = vrsqrt.pop %v1600
        %v1602 = vmul.f32 %v1601, %v1600
        %v1603 = vmul.f32 %v1602, %v1601
        %v1604 = vmul.f32 0.5, %v1603
        %v1605 = vsub.f32 1.5, %v1604
        %v1606 = vmul.f32 %v1601, %v1605
        %vm1607 = vweird.f32 %v1600
        %vm1608 = vweird.f32 %v1601
        %vm1609 = vmor %vm1607, %vm1608
        %v1610 = vsel %vm1609, %v1601, %v1606
        %v1611 = vmul.f32 %v1595, %v1610
        %v1612 = vld [vmem:[%s669] sm:$0x1]
        %v1614 = vperm.slane %v1612, 0
        %v1616 = vmul.f32 %v1611, %v1614
        %v1617 = vld [vmem:[%s672] sm:$0x1]
        %v1619 = vperm.slane %v1617, 0
        %v1621 = vadd.f32 %v1616, %v1619
        %v1622 = vpack.c.bf16 %v1621, %v1621
        %v1623 = vld [vmem:[%s548] sm:$0xff]
        %v1624 = vld [vmem:[%s548 + $0x8] sm:$0xff]
        %v1625 = vld [vmem:[%s548 + $0x10] sm:$0xff]
        %v1626 = vld [vmem:[%s548 + $0x18] sm:$0xff]
        %v1627 = vld [vmem:[%s548 + $0x20] sm:$0xff]
        %v1628 = vld [vmem:[%s548 + $0x28] sm:$0xff]
        %v1629 = vld [vmem:[%s548 + $0x30] sm:$0xff]
        %v1630 = vld [vmem:[%s548 + $0x38] sm:$0xff]
        %v1631 = vld [vmem:[%s548 + $0x40] sm:$0xff]
        %v1632 = vld [vmem:[%s548 + $0x48] sm:$0xff]
        %v1633 = vld [vmem:[%s548 + $0x50] sm:$0xff]
        %v1634 = vld [vmem:[%s548 + $0x58] sm:$0xff]
        %v1635 = vld [vmem:[%s548 + $0x60] sm:$0xff]
        %v1636 = vld [vmem:[%s548 + $0x68] sm:$0xff]
        %v1637 = vld [vmem:[%s548 + $0x70] sm:$0xff]
        %v1638 = vld [vmem:[%s548 + $0x78] sm:$0xff]
        %v1639 = vld [vmem:[%s548 + $0x80] sm:$0xff]
        %v1640 = vld [vmem:[%s548 + $0x88] sm:$0xff]
        %v1641 = vld [vmem:[%s548 + $0x90] sm:$0xff]
        %v1642 = vld [vmem:[%s548 + $0x98] sm:$0xff]
        %v1643 = vld [vmem:[%s548 + $0xa0] sm:$0xff]
        %v1644 = vld [vmem:[%s548 + $0xa8] sm:$0xff]
        %v1645 = vld [vmem:[%s548 + $0xb0] sm:$0xff]
        %v1646 = vld [vmem:[%s548 + $0xb8] sm:$0xff]
        %v1647 = vld [vmem:[%s548 + $0xc0] sm:$0xff]
        %v1648 = vld [vmem:[%s548 + $0xc8] sm:$0xff]
        %v1649 = vld [vmem:[%s548 + $0xd0] sm:$0xff]
        %v1650 = vld [vmem:[%s548 + $0xd8] sm:$0xff]
        %v1651 = vld [vmem:[%s548 + $0xe0] sm:$0xff]
        %v1652 = vld [vmem:[%s548 + $0xe8] sm:$0xff]
        %v1653 = vld [vmem:[%s548 + $0xf0] sm:$0xff]
        %v1654 = vld [vmem:[%s548 + $0xf8] sm:$0xff]
        %v1655 = vld [vmem:[%s676] sm:$0xf]
        %v1657 = vperm.slane %v1655, 0
        %v1658 = vperm.slane %v1655, 1
        %v1659 = vperm.slane %v1655, 2
        %v1660 = vperm.slane %v1655, 3
        %v1697 = vunpack.c.l.b16 %v1623
        %v1698 = vunpack.c.h.b16 %v1623
        %v1699 = vunpack.c.l.b16 %v1624
        %v1700 = vunpack.c.h.b16 %v1624
        %v1701 = vunpack.c.l.b16 %v1625
        %v1702 = vunpack.c.h.b16 %v1625
        %v1703 = vunpack.c.l.b16 %v1626
        %v1704 = vunpack.c.h.b16 %v1626
        %v1705 = vunpack.c.l.b16 %v1627
        %v1706 = vunpack.c.h.b16 %v1627
        %v1707 = vunpack.c.l.b16 %v1628
        %v1708 = vunpack.c.h.b16 %v1628
        %v1709 = vunpack.c.l.b16 %v1629
        %v1710 = vunpack.c.h.b16 %v1629
        %v1711 = vunpack.c.l.b16 %v1630
        %v1712 = vunpack.c.h.b16 %v1630
        %v1713 = vunpack.c.l.b16 %v1631
        %v1714 = vunpack.c.h.b16 %v1631
        %v1715 = vunpack.c.l.b16 %v1632
        %v1716 = vunpack.c.h.b16 %v1632
        %v1717 = vunpack.c.l.b16 %v1633
        %v1718 = vunpack.c.h.b16 %v1633
        %v1719 = vunpack.c.l.b16 %v1634
        %v1720 = vunpack.c.h.b16 %v1634
        %v1721 = vunpack.c.l.b16 %v1635
        %v1722 = vunpack.c.h.b16 %v1635
        %v1723 = vunpack.c.l.b16 %v1636
        %v1724 = vunpack.c.h.b16 %v1636
        %v1725 = vunpack.c.l.b16 %v1637
        %v1726 = vunpack.c.h.b16 %v1637
        %v1727 = vunpack.c.l.b16 %v1638
        %v1728 = vunpack.c.h.b16 %v1638
        %v1729 = vunpack.c.l.b16 %v1639
        %v1730 = vunpack.c.h.b16 %v1639
        %v1731 = vunpack.c.l.b16 %v1640
        %v1732 = vunpack.c.h.b16 %v1640
        %v1733 = vunpack.c.l.b16 %v1641
        %v1734 = vunpack.c.h.b16 %v1641
        %v1735 = vunpack.c.l.b16 %v1642
        %v1736 = vunpack.c.h.b16 %v1642
        %v1737 = vunpack.c.l.b16 %v1643
        %v1738 = vunpack.c.h.b16 %v1643
        %v1739 = vunpack.c.l.b16 %v1644
        %v1740 = vunpack.c.h.b16 %v1644
        %v1741 = vunpack.c.l.b16 %v1645
        %v1742 = vunpack.c.h.b16 %v1645
        %v1743 = vunpack.c.l.b16 %v1646
        %v1744 = vunpack.c.h.b16 %v1646
        %v1745 = vunpack.c.l.b16 %v1647
        %v1746 = vunpack.c.h.b16 %v1647
        %v1747 = vunpack.c.l.b16 %v1648
        %v1748 = vunpack.c.h.b16 %v1648
        %v1749 = vunpack.c.l.b16 %v1649
        %v1750 = vunpack.c.h.b16 %v1649
        %v1751 = vunpack.c.l.b16 %v1650
        %v1752 = vunpack.c.h.b16 %v1650
        %v1753 = vunpack.c.l.b16 %v1651
        %v1754 = vunpack.c.h.b16 %v1651
        %v1755 = vunpack.c.l.b16 %v1652
        %v1756 = vunpack.c.h.b16 %v1652
        %v1757 = vunpack.c.l.b16 %v1653
        %v1758 = vunpack.c.h.b16 %v1653
        %v1759 = vunpack.c.l.b16 %v1654
        %v1760 = vunpack.c.h.b16 %v1654
        %v1761 = vpack.c.b16 %v1701, %v1697
        %v1762 = vpack.c.b16 %v1702, %v1698
        %v1763 = vpack.c.b16 %v1703, %v1699
        %v1764 = vpack.c.b16 %v1704, %v1700
        %v1765 = vpack.c.b16 %v1709, %v1705
        %v1766 = vpack.c.b16 %v1710, %v1706
        %v1767 = vpack.c.b16 %v1711, %v1707
        %v1768 = vpack.c.b16 %v1712, %v1708
        %v1769 = vpack.c.b16 %v1717, %v1713
        %v1770 = vpack.c.b16 %v1718, %v1714
        %v1771 = vpack.c.b16 %v1719, %v1715
        %v1772 = vpack.c.b16 %v1720, %v1716
        %v1773 = vpack.c.b16 %v1725, %v1721
        %v1774 = vpack.c.b16 %v1726, %v1722
        %v1775 = vpack.c.b16 %v1727, %v1723
        %v1776 = vpack.c.b16 %v1728, %v1724
        %v1777 = vpack.c.b16 %v1733, %v1729
        %v1778 = vpack.c.b16 %v1734, %v1730
        %v1779 = vpack.c.b16 %v1735, %v1731
        %v1780 = vpack.c.b16 %v1736, %v1732
        %v1781 = vpack.c.b16 %v1741, %v1737
        %v1782 = vpack.c.b16 %v1742, %v1738
        %v1783 = vpack.c.b16 %v1743, %v1739
        %v1784 = vpack.c.b16 %v1744, %v1740
        %v1785 = vpack.c.b16 %v1749, %v1745
        %v1786 = vpack.c.b16 %v1750, %v1746
        %v1787 = vpack.c.b16 %v1751, %v1747
        %v1788 = vpack.c.b16 %v1752, %v1748
        %v1789 = vpack.c.b16 %v1757, %v1753
        %v1790 = vpack.c.b16 %v1758, %v1754
        %v1791 = vpack.c.b16 %v1759, %v1755
        %v1792 = vpack.c.b16 %v1760, %v1756
        %1825 = vmatpush.bf16.msra.mxu0 %v1789
        %1826 = vmatpush.bf16.msra.mxu0 %v1785
        %1827 = vmatpush.bf16.msra.mxu0 %v1781
        %1828 = vmatpush.bf16.msra.mxu0 %v1777
        %1829 = vmatpush.bf16.msra.mxu0 %v1773
        %1830 = vmatpush.bf16.msra.mxu0 %v1769
        %1831 = vmatpush.bf16.msra.mxu0 %v1765
        %1832 = vmatpush.bf16.msra.mxu0 %v1761
        %1833 = vmatmul.bf16.gmra.mxu0 %v1622
        %v1834 = vpop.f32.mrf.mxu0
        %v1835 = vadd.f32 %v1657, %v1834
        %v1836 = vpop.f32.mrf.mxu0
        %1837 = vdwg.mxu0
        %1838 = vmatpush.bf16.msra.mxu0 %v1790
        %1839 = vmatpush.bf16.msra.mxu0 %v1786
        %1840 = vmatpush.bf16.msra.mxu0 %v1782
        %1841 = vmatpush.bf16.msra.mxu0 %v1778
        %1842 = vmatpush.bf16.msra.mxu0 %v1774
        %1843 = vmatpush.bf16.msra.mxu0 %v1770
        %1844 = vmatpush.bf16.msra.mxu0 %v1766
        %1845 = vmatpush.bf16.msra.mxu0 %v1762
        %1846 = vmatmul.bf16.gmra.mxu0 %v1622
        %v1847 = vpop.f32.mrf.mxu0
        %v1848 = vadd.f32 %v1658, %v1847
        %v1849 = vpop.f32.mrf.mxu0
        %1850 = vdwg.mxu0
        %1851 = vmatpush.bf16.msra.mxu0 %v1791
        %1852 = vmatpush.bf16.msra.mxu0 %v1787
        %1853 = vmatpush.bf16.msra.mxu0 %v1783
        %1854 = vmatpush.bf16.msra.mxu0 %v1779
        %1855 = vmatpush.bf16.msra.mxu0 %v1775
        %1856 = vmatpush.bf16.msra.mxu0 %v1771
        %1857 = vmatpush.bf16.msra.mxu0 %v1767
        %1858 = vmatpush.bf16.msra.mxu0 %v1763
        %1859 = vmatmul.bf16.gmra.mxu0 %v1622
        %v1860 = vpop.f32.mrf.mxu0
        %v1861 = vadd.f32 %v1659, %v1860
        %v1862 = vpop.f32.mrf.mxu0
        %1863 = vdwg.mxu0
        %1864 = vmatpush.bf16.msra.mxu0 %v1792
        %1865 = vmatpush.bf16.msra.mxu0 %v1788
        %1866 = vmatpush.bf16.msra.mxu0 %v1784
        %1867 = vmatpush.bf16.msra.mxu0 %v1780
        %1868 = vmatpush.bf16.msra.mxu0 %v1776
        %1869 = vmatpush.bf16.msra.mxu0 %v1772
        %1870 = vmatpush.bf16.msra.mxu0 %v1768
        %1871 = vmatpush.bf16.msra.mxu0 %v1764
        %1872 = vmatmul.bf16.gmra.mxu0 %v1622
        %v1873 = vpop.f32.mrf.mxu0
        %v1874 = vadd.f32 %v1660, %v1873
        %v1875 = vpop.f32.mrf.mxu0
        %1876 = vdwg.mxu0
        %v1877 = vmax.f32 %v1835, 0.0
        %v1878 = vmax.f32 %v1848, 0.0
        %v1879 = vmax.f32 %v1861, 0.0
        %v1880 = vmax.f32 %v1874, 0.0
        %v1881 = vpack.c.bf16 %v1877, %v1877
        %v1882 = vpack.c.bf16 %v1878, %v1878
        %v1883 = vpack.c.bf16 %v1879, %v1879
        %v1884 = vpack.c.bf16 %v1880, %v1880
        %v1885 = vld [vmem:[%s558] sm:$0xf]
        %v1886 = vld [vmem:[%s558 + $0x4] sm:$0xf]
        %v1887 = vld [vmem:[%s558 + $0x8] sm:$0xf]
        %v1888 = vld [vmem:[%s558 + $0xc] sm:$0xf]
        %v1889 = vld [vmem:[%s558 + $0x10] sm:$0xf]
        %v1890 = vld [vmem:[%s558 + $0x14] sm:$0xf]
        %v1891 = vld [vmem:[%s558 + $0x18] sm:$0xf]
        %v1892 = vld [vmem:[%s558 + $0x1c] sm:$0xf]
        %v1893 = vld [vmem:[%s558 + $0x20] sm:$0xf]
        %v1894 = vld [vmem:[%s558 + $0x24] sm:$0xf]
        %v1895 = vld [vmem:[%s558 + $0x28] sm:$0xf]
        %v1896 = vld [vmem:[%s558 + $0x2c] sm:$0xf]
        %v1897 = vld [vmem:[%s558 + $0x30] sm:$0xf]
        %v1898 = vld [vmem:[%s558 + $0x34] sm:$0xf]
        %v1899 = vld [vmem:[%s558 + $0x38] sm:$0xf]
        %v1900 = vld [vmem:[%s558 + $0x3c] sm:$0xf]
        %v1901 = vld [vmem:[%s558 + $0x40] sm:$0xf]
        %v1902 = vld [vmem:[%s558 + $0x44] sm:$0xf]
        %v1903 = vld [vmem:[%s558 + $0x48] sm:$0xf]
        %v1904 = vld [vmem:[%s558 + $0x4c] sm:$0xf]
        %v1905 = vld [vmem:[%s558 + $0x50] sm:$0xf]
        %v1906 = vld [vmem:[%s558 + $0x54] sm:$0xf]
        %v1907 = vld [vmem:[%s558 + $0x58] sm:$0xf]
        %v1908 = vld [vmem:[%s558 + $0x5c] sm:$0xf]
        %v1909 = vld [vmem:[%s558 + $0x60] sm:$0xf]
        %v1910 = vld [vmem:[%s558 + $0x64] sm:$0xf]
        %v1911 = vld [vmem:[%s558 + $0x68] sm:$0xf]
        %v1912 = vld [vmem:[%s558 + $0x6c] sm:$0xf]
        %v1913 = vld [vmem:[%s558 + $0x70] sm:$0xf]
        %v1914 = vld [vmem:[%s558 + $0x74] sm:$0xf]
        %v1915 = vld [vmem:[%s558 + $0x78] sm:$0xf]
        %v1916 = vld [vmem:[%s558 + $0x7c] sm:$0xf]
        %v1917 = vld [vmem:[%s558 + $0x80] sm:$0xf]
        %v1918 = vld [vmem:[%s558 + $0x84] sm:$0xf]
        %v1919 = vld [vmem:[%s558 + $0x88] sm:$0xf]
        %v1920 = vld [vmem:[%s558 + $0x8c] sm:$0xf]
        %v1921 = vld [vmem:[%s558 + $0x90] sm:$0xf]
        %v1922 = vld [vmem:[%s558 + $0x94] sm:$0xf]
        %v1923 = vld [vmem:[%s558 + $0x98] sm:$0xf]
        %v1924 = vld [vmem:[%s558 + $0x9c] sm:$0xf]
        %v1925 = vld [vmem:[%s558 + $0xa0] sm:$0xf]
        %v1926 = vld [vmem:[%s558 + $0xa4] sm:$0xf]
        %v1927 = vld [vmem:[%s558 + $0xa8] sm:$0xf]
        %v1928 = vld [vmem:[%s558 + $0xac] sm:$0xf]
        %v1929 = vld [vmem:[%s558 + $0xb0] sm:$0xf]
        %v1930 = vld [vmem:[%s558 + $0xb4] sm:$0xf]
        %v1931 = vld [vmem:[%s558 + $0xb8] sm:$0xf]
        %v1932 = vld [vmem:[%s558 + $0xbc] sm:$0xf]
        %v1933 = vld [vmem:[%s558 + $0xc0] sm:$0xf]
        %v1934 = vld [vmem:[%s558 + $0xc4] sm:$0xf]
        %v1935 = vld [vmem:[%s558 + $0xc8] sm:$0xf]
        %v1936 = vld [vmem:[%s558 + $0xcc] sm:$0xf]
        %v1937 = vld [vmem:[%s558 + $0xd0] sm:$0xf]
        %v1938 = vld [vmem:[%s558 + $0xd4] sm:$0xf]
        %v1939 = vld [vmem:[%s558 + $0xd8] sm:$0xf]
        %v1940 = vld [vmem:[%s558 + $0xdc] sm:$0xf]
        %v1941 = vld [vmem:[%s558 + $0xe0] sm:$0xf]
        %v1942 = vld [vmem:[%s558 + $0xe4] sm:$0xf]
        %v1943 = vld [vmem:[%s558 + $0xe8] sm:$0xf]
        %v1944 = vld [vmem:[%s558 + $0xec] sm:$0xf]
        %v1945 = vld [vmem:[%s558 + $0xf0] sm:$0xf]
        %v1946 = vld [vmem:[%s558 + $0xf4] sm:$0xf]
        %v1947 = vld [vmem:[%s558 + $0xf8] sm:$0xf]
        %v1948 = vld [vmem:[%s558 + $0xfc] sm:$0xf]
        %v1949 = vld [vmem:[%s679] sm:$0x1]
        %v1951 = vperm.slane %v1949, 0
        %v2017 = vunpack.c.l.b16 %v1885
        %v2018 = vunpack.c.l.b16 %v1886
        %v2019 = vunpack.c.l.b16 %v1887
        %v2020 = vunpack.c.l.b16 %v1888
        %v2021 = vunpack.c.l.b16 %v1889
        %v2022 = vunpack.c.l.b16 %v1890
        %v2023 = vunpack.c.l.b16 %v1891
        %v2024 = vunpack.c.l.b16 %v1892
        %v2025 = vunpack.c.l.b16 %v1893
        %v2026 = vunpack.c.l.b16 %v1894
        %v2027 = vunpack.c.l.b16 %v1895
        %v2028 = vunpack.c.l.b16 %v1896
        %v2029 = vunpack.c.l.b16 %v1897
        %v2030 = vunpack.c.l.b16 %v1898
        %v2031 = vunpack.c.l.b16 %v1899
        %v2032 = vunpack.c.l.b16 %v1900
        %v2033 = vunpack.c.l.b16 %v1901
        %v2034 = vunpack.c.l.b16 %v1902
        %v2035 = vunpack.c.l.b16 %v1903
        %v2036 = vunpack.c.l.b16 %v1904
        %v2037 = vunpack.c.l.b16 %v1905
        %v2038 = vunpack.c.l.b16 %v1906
        %v2039 = vunpack.c.l.b16 %v1907
        %v2040 = vunpack.c.l.b16 %v1908
        %v2041 = vunpack.c.l.b16 %v1909
        %v2042 = vunpack.c.l.b16 %v1910
        %v2043 = vunpack.c.l.b16 %v1911
        %v2044 = vunpack.c.l.b16 %v1912
        %v2045 = vunpack.c.l.b16 %v1913
        %v2046 = vunpack.c.l.b16 %v1914
        %v2047 = vunpack.c.l.b16 %v1915
        %v2048 = vunpack.c.l.b16 %v1916
        %v2049 = vunpack.c.l.b16 %v1917
        %v2050 = vunpack.c.l.b16 %v1918
        %v2051 = vunpack.c.l.b16 %v1919
        %v2052 = vunpack.c.l.b16 %v1920
        %v2053 = vunpack.c.l.b16 %v1921
        %v2054 = vunpack.c.l.b16 %v1922
        %v2055 = vunpack.c.l.b16 %v1923
        %v2056 = vunpack.c.l.b16 %v1924
        %v2057 = vunpack.c.l.b16 %v1925
        %v2058 = vunpack.c.l.b16 %v1926
        %v2059 = vunpack.c.l.b16 %v1927
        %v2060 = vunpack.c.l.b16 %v1928
        %v2061 = vunpack.c.l.b16 %v1929
        %v2062 = vunpack.c.l.b16 %v1930
        %v2063 = vunpack.c.l.b16 %v1931
        %v2064 = vunpack.c.l.b16 %v1932
        %v2065 = vunpack.c.l.b16 %v1933
        %v2066 = vunpack.c.l.b16 %v1934
        %v2067 = vunpack.c.l.b16 %v1935
        %v2068 = vunpack.c.l.b16 %v1936
        %v2069 = vunpack.c.l.b16 %v1937
        %v2070 = vunpack.c.l.b16 %v1938
        %v2071 = vunpack.c.l.b16 %v1939
        %v2072 = vunpack.c.l.b16 %v1940
        %v2073 = vunpack.c.l.b16 %v1941
        %v2074 = vunpack.c.l.b16 %v1942
        %v2075 = vunpack.c.l.b16 %v1943
        %v2076 = vunpack.c.l.b16 %v1944
        %v2077 = vunpack.c.l.b16 %v1945
        %v2078 = vunpack.c.l.b16 %v1946
        %v2079 = vunpack.c.l.b16 %v1947
        %v2080 = vunpack.c.l.b16 %v1948
        %v2081 = vpack.c.b16 %v2018, %v2017
        %v2082 = vpack.c.b16 %v2020, %v2019
        %v2083 = vpack.c.b16 %v2022, %v2021
        %v2084 = vpack.c.b16 %v2024, %v2023
        %v2085 = vpack.c.b16 %v2026, %v2025
        %v2086 = vpack.c.b16 %v2028, %v2027
        %v2087 = vpack.c.b16 %v2030, %v2029
        %v2088 = vpack.c.b16 %v2032, %v2031
        %v2089 = vpack.c.b16 %v2034, %v2033
        %v2090 = vpack.c.b16 %v2036, %v2035
        %v2091 = vpack.c.b16 %v2038, %v2037
        %v2092 = vpack.c.b16 %v2040, %v2039
        %v2093 = vpack.c.b16 %v2042, %v2041
        %v2094 = vpack.c.b16 %v2044, %v2043
        %v2095 = vpack.c.b16 %v2046, %v2045
        %v2096 = vpack.c.b16 %v2048, %v2047
        %v2097 = vpack.c.b16 %v2050, %v2049
        %v2098 = vpack.c.b16 %v2052, %v2051
        %v2099 = vpack.c.b16 %v2054, %v2053
        %v2100 = vpack.c.b16 %v2056, %v2055
        %v2101 = vpack.c.b16 %v2058, %v2057
        %v2102 = vpack.c.b16 %v2060, %v2059
        %v2103 = vpack.c.b16 %v2062, %v2061
        %v2104 = vpack.c.b16 %v2064, %v2063
        %v2105 = vpack.c.b16 %v2066, %v2065
        %v2106 = vpack.c.b16 %v2068, %v2067
        %v2107 = vpack.c.b16 %v2070, %v2069
        %v2108 = vpack.c.b16 %v2072, %v2071
        %v2109 = vpack.c.b16 %v2074, %v2073
        %v2110 = vpack.c.b16 %v2076, %v2075
        %v2111 = vpack.c.b16 %v2078, %v2077
        %v2112 = vpack.c.b16 %v2080, %v2079
        %2145 = vmatpush.bf16.msra.mxu0 %v2088
        %2146 = vmatpush.bf16.msra.mxu0 %v2087
        %2147 = vmatpush.bf16.msra.mxu0 %v2086
        %2148 = vmatpush.bf16.msra.mxu0 %v2085
        %2149 = vmatpush.bf16.msra.mxu0 %v2084
        %2150 = vmatpush.bf16.msra.mxu0 %v2083
        %2151 = vmatpush.bf16.msra.mxu0 %v2082
        %2152 = vmatpush.bf16.msra.mxu0 %v2081
        %2153 = vmatmul.bf16.gmra.mxu0 %v1881
        %v2154 = vpop.f32.mrf.mxu0
        %v2155 = vadd.f32 %v1951, %v2154
        %v2156 = vpop.f32.mrf.mxu0
        %2157 = vdwg.mxu0
        %2158 = vmatpush.bf16.msra.mxu0 %v2096
        %2159 = vmatpush.bf16.msra.mxu0 %v2095
        %2160 = vmatpush.bf16.msra.mxu0 %v2094
        %2161 = vmatpush.bf16.msra.mxu0 %v2093
        %2162 = vmatpush.bf16.msra.mxu0 %v2092
        %2163 = vmatpush.bf16.msra.mxu0 %v2091
        %2164 = vmatpush.bf16.msra.mxu0 %v2090
        %2165 = vmatpush.bf16.msra.mxu0 %v2089
        %2166 = vmatmul.bf16.gmra.mxu0 %v1882
        %v2167 = vpop.f32.mrf.mxu0
        %v2168 = vadd.f32 %v2155, %v2167
        %v2169 = vpop.f32.mrf.mxu0
        %2170 = vdwg.mxu0
        %2171 = vmatpush.bf16.msra.mxu0 %v2104
        %2172 = vmatpush.bf16.msra.mxu0 %v2103
        %2173 = vmatpush.bf16.msra.mxu0 %v2102
        %2174 = vmatpush.bf16.msra.mxu0 %v2101
        %2175 = vmatpush.bf16.msra.mxu0 %v2100
        %2176 = vmatpush.bf16.msra.mxu0 %v2099
        %2177 = vmatpush.bf16.msra.mxu0 %v2098
        %2178 = vmatpush.bf16.msra.mxu0 %v2097
        %2179 = vmatmul.bf16.gmra.mxu0 %v1883
        %v2180 = vpop.f32.mrf.mxu0
        %v2181 = vadd.f32 %v2168, %v2180
        %v2182 = vpop.f32.mrf.mxu0
        %2183 = vdwg.mxu0
        %2184 = vmatpush.bf16.msra.mxu0 %v2112
        %2185 = vmatpush.bf16.msra.mxu0 %v2111
        %2186 = vmatpush.bf16.msra.mxu0 %v2110
        %2187 = vmatpush.bf16.msra.mxu0 %v2109
        %2188 = vmatpush.bf16.msra.mxu0 %v2108
        %2189 = vmatpush.bf16.msra.mxu0 %v2107
        %2190 = vmatpush.bf16.msra.mxu0 %v2106
        %2191 = vmatpush.bf16.msra.mxu0 %v2105
        %2192 = vmatmul.bf16.gmra.mxu0 %v1884
        %v2193 = vpop.f32.mrf.mxu0
        %v2194 = vadd.f32 %v2181, %v2193
        %v2195 = vpop.f32.mrf.mxu0
        %2196 = vdwg.mxu0
        %v2197 = vadd.f32 %v1621, %v2194
        %2198 = vadd.xlane.f32.xlu0 %v2197
        %v2199 = vpop.xlane.xlu0 %2198
        %v2200 = vmul.f32 %v2199, %v1593
        %v2201 = vsub.f32 %v2197, %v2200
        %v2202 = vmul.f32 %v2201, %v2201
        %2203 = vadd.xlane.f32.xlu0 %v2202
        %v2204 = vpop.xlane.xlu0 %2203
        %v2205 = vmul.f32 %v2204, %v1593
        %v2206 = vadd.f32 %v2205, 1e-05
        %v2207 = vrsqrt.pop %v2206
        %v2208 = vmul.f32 %v2207, %v2206
        %v2209 = vmul.f32 %v2208, %v2207
        %v2210 = vmul.f32 0.5, %v2209
        %v2211 = vsub.f32 1.5, %v2210
        %v2212 = vmul.f32 %v2207, %v2211
        %vm2213 = vweird.f32 %v2206
        %vm2214 = vweird.f32 %v2207
        %vm2215 = vmor %vm2213, %vm2214
        %v2216 = vsel %vm2215, %v2207, %v2212
        %v2217 = vmul.f32 %v2201, %v2216
        %v2218 = vld [vmem:[%s682] sm:$0x1]
        %v2220 = vperm.slane %v2218, 0
        %v2222 = vmul.f32 %v2217, %v2220
        %v2223 = vld [vmem:[%s685] sm:$0x1]
        %v2225 = vperm.slane %v2223, 0
        %v2227 = vadd.f32 %v2222, %v2225
        %v2228 = vpack.c.bf16 %v2227, %v2227
        %2229 = vst [vmem:[%s689] sm:$0xf] %v2228
        %p2230 = scmp.lt.s32.totalorder %s34, 1
        %s2231 = scalar_select %p2230, %s34, 1
        %s2232 = smul.addr %s2231, 4
        %s2233 = scalar_lea.vmem %s13, %s2232
        // Predicated region
        $region85: #{lm_model_transformer_forward.2} parent=71 // pred_check
          %p2234 = pneg %p398
        $region86: #{lm_model_transformer_forward.2} parent=71 // pred_check_branch
          %2236 = sbr.rel (%p2234) target = $region88
        $region87: #{lm_model_transformer_forward.2} parent=71 // pred_region
          _
        $region88: #{lm_model_transformer_forward.2} parent=71 // pred_fallthru
          _
      $region72: #{lm_model_transformer_forward.2} parent=5 // pred_fallthru
        _
      %p2237 = scmp.le.s32.totalorder 2, %s25
      // Predicated region
      $region89: #{lm_model_transformer_forward.2} parent=5 // pred_check
        %p2238 = pneg %p2237
      $region90: #{lm_model_transformer_forward.2} parent=5 // pred_check_branch
        %2240 = sbr.rel (%p2238) target = $region92
      $region91: #{lm_model_transformer_forward.2} parent=5 // pred_region
        %s2241 = ssub.s32 %s25, 2
        // Predicated region
        $region93: #{lm_model_transformer_forward.2} parent=91 // pred_check
          %p2242 = pneg %p404
        $region94: #{lm_model_transformer_forward.2} parent=91 // pred_check_branch
          %2244 = sbr.rel (%p2242) target = $region96
        $region95: #{lm_model_transformer_forward.2} parent=91 // pred_region
          %p2245 = scmp.lt.s32.totalorder %s36, 1
          %s2246 = scalar_select %p2245, %s36, 1
          %s2247 = smul.addr %s2246, 4
          %s2248 = scalar_lea.vmem %s13, %s2247
        $region96: #{lm_model_transformer_forward.2} parent=91 // pred_fallthru
          _
      $region92: #{lm_model_transformer_forward.2} parent=5 // pred_fallthru
        _
    $region6: #{lm_model_transformer_forward.2} parent=1 // loop_footer
      %s29 = sadd.s32 1, %s25
    $region7: #{lm_model_transformer_forward.2} parent=1 // loop_footer_branch
      %24 = sbr.rel target = $region3
    $region8: #{lm_model_transformer_forward.2} parent=1 // loop_exit
      _
    %2249 = vsyncpa [#allocation4], 1
    %s2250 = scalar_lea.sflag [#allocation4], 1
    %2251 = vsyncpa %s2250, 1
    %2252 = vsyncpa [#allocation6], 1
    %s2253 = scalar_lea.sflag [#allocation6], 1
    %2254 = vsyncpa %s2253, 1

</llo_original>
